<compile_context>
chip_gen: v7x
topology: tpu7x:2x2x1
jax: 0.10.0
libtpu: 0.0.40
codegen_flags: <defaults>
</compile_context>

<pallas_src>
import functools
import math

import jax
import jax.numpy as jnp
from jax.experimental import pallas as pl
from jax.experimental.pallas import tpu as pltpu

LN_EPS = 1e-5  # PyTorch nn.LayerNorm default

# row indices inside the packed per-layer vector bundle
_BQ, _BK, _BV, _BO, _B1, _B2, _G1, _BE1, _G2, _BE2 = range(10)


# ---------------------------------------------------------------------------
# Kernel
# ---------------------------------------------------------------------------
def _layernorm(x, g, b):
    mu = jnp.mean(x, axis=-1, keepdims=True)
    var = jnp.mean((x - mu) ** 2, axis=-1, keepdims=True)
    return (x - mu) * jax.lax.rsqrt(var + LN_EPS) * g + b


def fused_encoder_kernel(x_ref, wqkv_ref, wo_ref, w1_ref, w2_ref, vec_ref, lnf_ref,
                         o_ref, x_scr,
                         *, n_head, seq_len, batch_tile, matmul_dtype):
    """One (batch_tile, layer) grid step of the fully fused encoder."""
    l = pl.program_id(1)
    n_layers = pl.num_programs(1)

    # Layer 0: pull the lane-dense (rows, D) slab (PE already added in the
    # wrapper) into the VMEM-resident activation; it stays there all layers.
    @pl.when(l == 0)
    def _():
        x_scr[...] = x_ref[...].astype(jnp.float32)

    x = x_scr[...]                                # (rows, D) f32
    d = x.shape[-1]
    d_inner = w1_ref.shape[-1]
    hd = d // n_head
    md = matmul_dtype
    xm = x.astype(md)

    # Packed per-layer vectors: one DMA stream instead of ten.
    bq = vec_ref[_BQ:_BQ + 1, :d]                 # 1/sqrt(hd) already folded in
    bk = vec_ref[_BK:_BK + 1, :d]
    bv = vec_ref[_BV:_BV + 1, :d]
    bo = vec_ref[_BO:_BO + 1, :d]
    b1 = vec_ref[_B1:_B1 + 1, :d_inner]
    b2 = vec_ref[_B2:_B2 + 1, :d]
    g1 = vec_ref[_G1:_G1 + 1, :d]
    be1 = vec_ref[_BE1:_BE1 + 1, :d]
    g2 = vec_ref[_G2:_G2 + 1, :d]
    be2 = vec_ref[_BE2:_BE2 + 1, :d]

    # --- Q/K/V projections: bf16 weights straight from HBM, f32 accumulation.
    # wqkv is (3, D, D) so each projection is its own MXU tile (no sub-128-lane
    # slices of a fused (rows, 3D) result).  1/sqrt(hd) folded into wq/bq.
    q = jnp.dot(xm, wqkv_ref[0], preferred_element_type=jnp.float32) + bq
    k = jnp.dot(xm, wqkv_ref[1], preferred_element_type=jnp.float32) + bk
    v = jnp.dot(xm, wqkv_ref[2], preferred_element_type=jnp.float32) + bv

    # --- head-batched self-attention, statically unrolled over the batch
    # elements of this row tile (no attention across batch elements).
    # TODO(synk): for production sequence lengths, tile this over KV
    # (flash-style online softmax) instead of materializing (H, S, S) scores.
    attn_parts = []
    for b in range(batch_tile):
        r0 = b * seq_len
        qb = q[r0:r0 + seq_len]
        kb = k[r0:r0 + seq_len]
        vb = v[r0:r0 + seq_len]
        qh = jnp.transpose(qb.reshape(seq_len, n_head, hd), (1, 0, 2))   # (H,S,hd)
        kh = jnp.transpose(kb.reshape(seq_len, n_head, hd), (1, 0, 2))
        vh = jnp.transpose(vb.reshape(seq_len, n_head, hd), (1, 0, 2))
        s = jnp.einsum("hqd,hkd->hqk", qh.astype(md), kh.astype(md),
                       preferred_element_type=jnp.float32)               # (H,S,S)
        s = s - jnp.max(s, axis=-1, keepdims=True)
        p = jnp.exp(s)
        p = p * pl.reciprocal(jnp.sum(p, axis=-1, keepdims=True), approx=True)
        ctx = jnp.einsum("hqk,hkd->qhd", p.astype(md), vh.astype(md),
                         preferred_element_type=jnp.float32)              # (S,H,hd)
        attn_parts.append(ctx.reshape(seq_len, d))
    attn = attn_parts[0] if batch_tile == 1 else jnp.concatenate(attn_parts, axis=0)

    attn = jnp.dot(attn.astype(md), wo_ref[...],
                   preferred_element_type=jnp.float32) + bo

    # --- residual + LayerNorm1 (dropout omitted: inference forward) ----------
    y = _layernorm(x + attn, g1, be1)

    # --- feed-forward: linear -> relu -> linear -------------------------------
    hid = jnp.dot(y.astype(md), w1_ref[...], preferred_element_type=jnp.float32) + b1
    hid = jnp.maximum(hid, 0.0)
    ffn = jnp.dot(hid.astype(md), w2_ref[...], preferred_element_type=jnp.float32) + b2

    # --- residual + LayerNorm2 ------------------------------------------------
    z = _layernorm(y + ffn, g2, be2)
    x_scr[...] = z

    # --- last layer: final LayerNorm, lane-dense (rows, D) store --------------
    @pl.when(l == n_layers - 1)
    def _():
        o_ref[...] = _layernorm(z, lnf_ref[0:1, :], lnf_ref[1:2, :]).astype(o_ref.dtype)


# ---------------------------------------------------------------------------
# Wrapper
# ---------------------------------------------------------------------------
def _pick_batch_tile(n, s, rows_target):
    """Largest batch tile (divisor of n) whose row count fits rows_target and is
    sublane-legal (multiple of 8 rows, or the whole batch = full array extent)."""
    legal = [bt for bt in range(1, n + 1)
             if n % bt == 0 and (bt == n or (bt * s) % 8 == 0)]
    fitting = [bt for bt in legal if bt * s <= max(rows_target, s)]
    return max(fitting) if fitting else min(legal)


def tf_encoder_forward(feat, params, n_head, *, matmul_dtype=jnp.bfloat16,
                       rows_target=256):
    """feat: (N, C, H, W) NCHW with C == d_model.  Returns (N, C, H, W)."""
    n, c, h, w = feat.shape
    s = h * w
    d = c

    # XLA-side layout plumbing: NCHW -> lane-dense (N*S, D) slab + PE add
    # (PositionalEncoding dropout is identity at inference).
    pe = params["pe"][:s]
    x = jnp.transpose(feat.reshape(n, c, s), (0, 2, 1)).astype(jnp.float32)
    x = (x + pe[None]).reshape(n * s, d)

    n_layers = params["wqkv"].shape[0]
    d_inner = params["w1"].shape[-1]
    kmax = params["vec"].shape[-1]

    bt = _pick_batch_tile(n, s, rows_target)
    n_bt = n // bt
    rows = bt * s

    kernel = functools.partial(fused_encoder_kernel,
                               n_head=n_head, seq_len=s, batch_tile=bt,
                               matmul_dtype=matmul_dtype)

    in_specs = [
        pl.BlockSpec((rows, d), lambda b, l: (b, 0)),                 # activations
        pl.BlockSpec((None, 3, d, d), lambda b, l: (l, 0, 0, 0)),     # wqkv  (bf16)
        pl.BlockSpec((None, d, d), lambda b, l: (l, 0, 0)),           # wo    (bf16)
        pl.BlockSpec((None, d, d_inner), lambda b, l: (l, 0, 0)),     # w1    (bf16)
        pl.BlockSpec((None, d_inner, d), lambda b, l: (l, 0, 0)),     # w2    (bf16)
        pl.BlockSpec((None, 10, kmax), lambda b, l: (l, 0, 0)),       # packed vecs
        pl.BlockSpec((2, d), lambda b, l: (0, 0)),                    # final LN
    ]
    # TODO(synk): if the layer-weight DMA is still exposed at production sizes,
    # add pipeline_mode=pl.Buffered(3) to the wqkv/w1/w2 specs (skip on v7x if
    # it pushes the working set past ~48 MiB).

    out = pl.pallas_call(
        kernel,
        out_shape=jax.ShapeDtypeStruct((n * s, d), feat.dtype),
        grid=(n_bt, n_layers),
        in_specs=in_specs,
        out_specs=pl.BlockSpec((rows, d), lambda b, l: (b, 0)),
        scratch_shapes=[pltpu.VMEM((rows, d), jnp.float32)],  # resident activation
        compiler_params=pltpu.CompilerParams(
            # Layer axis must stay innermost + "arbitrary" (resident scratch /
            # output).  On v7x the row/batch-tile axis can be pltpu.CORE_PARALLEL
            # to use both TensorCores; never the layer axis.
            dimension_semantics=("parallel", "arbitrary"),
            vmem_limit_bytes=48 * 1024 * 1024),   # stays under v7x's 64 MiB VMEM
    )(x, params["wqkv"], params["wo"], params["w1"], params["w2"],
      params["vec"], params["lnf"])

    # (N*S, D) -> (N, C, H, W)
    return jnp.transpose(out.reshape(n, s, d), (0, 2, 1)).reshape(n, c, h, w)


# ---------------------------------------------------------------------------
# Parameters
# ---------------------------------------------------------------------------
def sinusoid_pe_table(max_len, d_model):
    position = jnp.arange(max_len, dtype=jnp.float32)[:, None]
    div_term = jnp.exp(jnp.arange(0, d_model, 2, dtype=jnp.float32)
                       * (-math.log(10000.0) / d_model))
    pe = jnp.zeros((max_len, d_model), jnp.float32)
    pe = pe.at[:, 0::2].set(jnp.sin(position * div_term))
    pe = pe.at[:, 1::2].set(jnp.cos(position * div_term))
    return pe


def init_params(key, n_layers, d_model, d_inner, n_head, max_len,
                weight_dtype=jnp.bfloat16):
    """Kernel-ready parameter bundle.

    Conventions a PyTorch checkpoint loader must match:
      * linear weights stored (in, out): transpose nn.Linear / in_proj weights,
      * wqkv stacked (L, 3, D, D) with the Q weights and bq pre-scaled by
        1/sqrt(head_dim),
      * large matmul weights stored bf16 (streamed + consumed by the MXU as
        bf16); biases / LN params stay f32, packed into one (L, 10, Kmax) array.
    """
    hd = d_model // n_head
    scale = 1.0 / math.sqrt(hd)
    kmax = max(d_model, d_inner)

    def w(k, shape):
        return jax.random.normal(k, shape, jnp.float32) * 0.02

    wqkv, wo, w1, w2, vec = [], [], [], [], []
    for lk in jax.random.split(key, n_layers):
        ks = jax.random.split(lk, 8)
        wq = w(ks[0], (d_model, d_model)) * scale          # fold 1/sqrt(hd)
        wk = w(ks[1], (d_model, d_model))
        wv = w(ks[2], (d_model, d_model))
        wqkv.append(jnp.stack([wq, wk, wv]))
        wo.append(w(ks[3], (d_model, d_model)))
        w1.append(w(ks[4], (d_model, d_inner)))
        w2.append(w(ks[5], (d_inner, d_model)))

        vrow = jnp.zeros((10, kmax), jnp.float32)
        vrow = vrow.at[_BQ, :d_model].set(w(ks[6], (d_model,)) * scale)
        vrow = vrow.at[_BK, :d_model].set(w(ks[7], (d_model,)))
        # bv/bo/b1/b2 = 0; LayerNorm gammas = 1, betas = 0 (PyTorch defaults)
        vrow = vrow.at[_G1, :d_model].set(1.0)
        vrow = vrow.at[_G2, :d_model].set(1.0)
        vec.append(vrow)

    lnf = jnp.stack([jnp.ones((d_model,), jnp.float32),
                     jnp.zeros((d_model,), jnp.float32)])

    return dict(
        wqkv=jnp.stack(wqkv).astype(weight_dtype),
        wo=jnp.stack(wo).astype(weight_dtype),
        w1=jnp.stack(w1).astype(weight_dtype),
        w2=jnp.stack(w2).astype(weight_dtype),
        vec=jnp.stack(vec),
        lnf=lnf,
        pe=sinusoid_pe_table(max_len, d_model),
    )
# TODO(synk): dropout layers (p=0.1) are identity here — inference-mode forward only.


# ---------------------------------------------------------------------------
# Pure-JAX reference (mirrors kernel numerics: bf16 matmul inputs, f32 accum)
# ---------------------------------------------------------------------------
def reference_forward(feat, params, n_head):
    n, c, h, w = feat.shape
    s, d = h * w, c
    bf = params["wqkv"].dtype
    vec, lnf = params["vec"], params["lnf"]
    d_inner = params["w1"].shape[-1]
    hd = d // n_head

    def ln(v, g, b):
        mu = v.mean(-1, keepdims=True)
        var = ((v - mu) ** 2).mean(-1, keepdims=True)
        return (v - mu) * jax.lax.rsqrt(var + LN_EPS) * g + b

    x = jnp.transpose(feat.reshape(n, c, s), (0, 2, 1)).astype(jnp.float32)
    x = x + params["pe"][:s][None]
    for l in range(params["wqkv"].shape[0]):
        xm = x.astype(bf)
        q = jnp.einsum("nsd,de->nse", xm, params["wqkv"][l, 0],
                       preferred_element_type=jnp.float32) + vec[l, _BQ, :d]
        k = jnp.einsum("nsd,de->nse", xm, params["wqkv"][l, 1],
                       preferred_element_type=jnp.float32) + vec[l, _BK, :d]
        v = jnp.einsum("nsd,de->nse", xm, params["wqkv"][l, 2],
                       preferred_element_type=jnp.float32) + vec[l, _BV, :d]
        qh = q.reshape(n, s, n_head, hd)
        kh = k.reshape(n, s, n_head, hd)
        vh = v.reshape(n, s, n_head, hd)
        sc = jnp.einsum("nqhd,nkhd->nhqk", qh.astype(bf), kh.astype(bf),
                        preferred_element_type=jnp.float32)
        p = jax.nn.softmax(sc, axis=-1)
        ctx = jnp.einsum("nhqk,nkhd->nqhd", p.astype(bf), vh.astype(bf),
                         preferred_element_type=jnp.float32)
        attn = jnp.einsum("nsd,de->nse", ctx.reshape(n, s, d).astype(bf),
                          params["wo"][l],
                          preferred_element_type=jnp.float32) + vec[l, _BO, :d]
        y = ln(x + attn, vec[l, _G1, :d], vec[l, _BE1, :d])
        hid = jnp.maximum(
            jnp.einsum("nsd,df->nsf", y.astype(bf), params["w1"][l],
                       preferred_element_type=jnp.float32) + vec[l, _B1, :d_inner],
            0.0)
        ffn = jnp.einsum("nsf,fd->nsd", hid.astype(bf), params["w2"][l],
                         preferred_element_type=jnp.float32) + vec[l, _B2, :d]
        x = ln(y + ffn, vec[l, _G2, :d], vec[l, _BE2, :d])
    out = ln(x, lnf[0], lnf[1])
    return jnp.transpose(out, (0, 2, 1)).reshape(n, c, h, w)


# ---------------------------------------------------------------------------
if __name__ == "__main__":
    # Small shapes consistent with the module: c == d_model, seq = h*w.
    N, C, H, W = 2, 32, 4, 4
    D_MODEL, N_HEAD, D_INNER, N_LAYERS = C, 4, 64, 2
    MAX_LEN = 8 * 32 * 8

    key = jax.random.PRNGKey(0)
    k_feat, k_par = jax.random.split(key)
    feat = jax.random.normal(k_feat, (N, C, H, W), jnp.float32)
    params = init_params(k_par, N_LAYERS, D_MODEL, D_INNER, N_HEAD, MAX_LEN)

    out = jax.block_until_ready(tf_encoder_forward(feat, params, N_HEAD))

    assert out.shape == (N, C, H, W), out.shape
    assert bool(jnp.all(jnp.isfinite(out)))

    ref = jax.block_until_ready(reference_forward(feat, params, N_HEAD))
    max_diff = float(jnp.max(jnp.abs(out - ref)))
    assert max_diff < 5e-2, f"max |kernel - reference| = {max_diff}"

    print("KERNEL_OK")
</pallas_src>

<mosaic_0001>
module attributes {stable_mosaic.version = 11 : i64} {
  func.func @fused_encoder_kernel(%arg0: i32, %arg1: i32, %arg2: memref<32x32xf32, #tpu.memory_space<vmem>>, %arg3: memref<1x3x32x32xbf16, #tpu.memory_space<vmem>>, %arg4: memref<1x32x32xbf16, #tpu.memory_space<vmem>>, %arg5: memref<1x32x64xbf16, #tpu.memory_space<vmem>>, %arg6: memref<1x64x32xbf16, #tpu.memory_space<vmem>>, %arg7: memref<1x10x64xf32, #tpu.memory_space<vmem>>, %arg8: memref<2x32xf32, #tpu.memory_space<vmem>>, %arg9: memref<32x32xf32, #tpu.memory_space<vmem>>, %arg10: memref<32x32xf32, #tpu.memory_space<vmem>>) attributes {dimension_semantics = [#tpu.dimension_semantics<parallel>, #tpu.dimension_semantics<arbitrary>], iteration_bounds = array<i64: 1, 2>, scalar_prefetch = 0 : i64, scratch_operands = 1 : i64, tpu.core_type = #tpu.core_type<tc>, window_params = [{transform_indices = @transform_0, window_bounds = array<i64: 32, 32>}, {transform_indices = @transform_1, window_bounds = array<i64: 1, 3, 32, 32>}, {transform_indices = @transform_2, window_bounds = array<i64: 1, 32, 32>}, {transform_indices = @transform_3, window_bounds = array<i64: 1, 32, 64>}, {transform_indices = @transform_4, window_bounds = array<i64: 1, 64, 32>}, {transform_indices = @transform_5, window_bounds = array<i64: 1, 10, 64>}, {pipeline_mode = #tpu.pipeline_mode<synchronous>, transform_indices = @transform_6, window_bounds = array<i64: 2, 32>}, {transform_indices = @transform_7, window_bounds = array<i64: 32, 32>}]} {
    %c0_i32 = arith.constant 0 : i32
    %0 = arith.cmpi eq, %arg1, %c0_i32 : i32
    %1 = arith.extui %0 : i1 to i32
    %c0_i32_0 = arith.constant 0 : i32
    %2 = arith.cmpi ne, %1, %c0_i32_0 : i32
    scf.if %2 {
      %c0_71 = arith.constant 0 : index
      %c0_72 = arith.constant 0 : index
      %165 = vector.load %arg2[%c0_71, %c0_72] : memref<32x32xf32, #tpu.memory_space<vmem>>, vector<32x32xf32>
      %c0_73 = arith.constant 0 : index
      %c0_74 = arith.constant 0 : index
      %166 = vector.load %arg10[%c0_73, %c0_74] : memref<32x32xf32, #tpu.memory_space<vmem>>, vector<32x32xf32>
      tpu.vector_store %arg10[%c0_73, %c0_74], %165 {strides = array<i32>} : memref<32x32xf32, #tpu.memory_space<vmem>>, vector<32x32xf32>,
    } else {
    }
    %c0 = arith.constant 0 : index
    %c0_1 = arith.constant 0 : index
    %3 = vector.load %arg10[%c0, %c0_1] : memref<32x32xf32, #tpu.memory_space<vmem>>, vector<32x32xf32>
    %4 = arith.truncf %3 : vector<32x32xf32> to vector<32x32xbf16>
    %c0_2 = arith.constant 0 : index
    %c0_3 = arith.constant 0 : index
    %c0_4 = arith.constant 0 : index
    %5 = vector.load %arg7[%c0_2, %c0_3, %c0_4] : memref<1x10x64xf32, #tpu.memory_space<vmem>>, vector<1x1x32xf32>
    %6 = vector.shape_cast %5 : vector<1x1x32xf32> to vector<1x32xf32>
    %c0_5 = arith.constant 0 : index
    %c1 = arith.constant 1 : index
    %c0_6 = arith.constant 0 : index
    %7 = vector.load %arg7[%c0_5, %c1, %c0_6] : memref<1x10x64xf32, #tpu.memory_space<vmem>>, vector<1x1x32xf32>
    %8 = vector.shape_cast %7 : vector<1x1x32xf32> to vector<1x32xf32>
    %c0_7 = arith.constant 0 : index
    %c2 = arith.constant 2 : index
    %c0_8 = arith.constant 0 : index
    %9 = vector.load %arg7[%c0_7, %c2, %c0_8] : memref<1x10x64xf32, #tpu.memory_space<vmem>>, vector<1x1x32xf32>
    %10 = vector.shape_cast %9 : vector<1x1x32xf32> to vector<1x32xf32>
    %c0_9 = arith.constant 0 : index
    %c3 = arith.constant 3 : index
    %c0_10 = arith.constant 0 : index
    %11 = vector.load %arg7[%c0_9, %c3, %c0_10] : memref<1x10x64xf32, #tpu.memory_space<vmem>>, vector<1x1x32xf32>
    %12 = vector.shape_cast %11 : vector<1x1x32xf32> to vector<1x32xf32>
    %c0_11 = arith.constant 0 : index
    %c4 = arith.constant 4 : index
    %c0_12 = arith.constant 0 : index
    %13 = vector.load %arg7[%c0_11, %c4, %c0_12] : memref<1x10x64xf32, #tpu.memory_space<vmem>>, vector<1x1x64xf32>
    %14 = vector.shape_cast %13 : vector<1x1x64xf32> to vector<1x64xf32>
    %c0_13 = arith.constant 0 : index
    %c5 = arith.constant 5 : index
    %c0_14 = arith.constant 0 : index
    %15 = vector.load %arg7[%c0_13, %c5, %c0_14] : memref<1x10x64xf32, #tpu.memory_space<vmem>>, vector<1x1x32xf32>
    %16 = vector.shape_cast %15 : vector<1x1x32xf32> to vector<1x32xf32>
    %c0_15 = arith.constant 0 : index
    %c6 = arith.constant 6 : index
    %c0_16 = arith.constant 0 : index
    %17 = vector.load %arg7[%c0_15, %c6, %c0_16] : memref<1x10x64xf32, #tpu.memory_space<vmem>>, vector<1x1x32xf32>
    %18 = vector.shape_cast %17 : vector<1x1x32xf32> to vector<1x32xf32>
    %c0_17 = arith.constant 0 : index
    %c7 = arith.constant 7 : index
    %c0_18 = arith.constant 0 : index
    %19 = vector.load %arg7[%c0_17, %c7, %c0_18] : memref<1x10x64xf32, #tpu.memory_space<vmem>>, vector<1x1x32xf32>
    %20 = vector.shape_cast %19 : vector<1x1x32xf32> to vector<1x32xf32>
    %c0_19 = arith.constant 0 : index
    %c8 = arith.constant 8 : index
    %c0_20 = arith.constant 0 : index
    %21 = vector.load %arg7[%c0_19, %c8, %c0_20] : memref<1x10x64xf32, #tpu.memory_space<vmem>>, vector<1x1x32xf32>
    %22 = vector.shape_cast %21 : vector<1x1x32xf32> to vector<1x32xf32>
    %c0_21 = arith.constant 0 : index
    %c9 = arith.constant 9 : index
    %c0_22 = arith.constant 0 : index
    %23 = vector.load %arg7[%c0_21, %c9, %c0_22] : memref<1x10x64xf32, #tpu.memory_space<vmem>>, vector<1x1x32xf32>
    %24 = vector.shape_cast %23 : vector<1x1x32xf32> to vector<1x32xf32>
    %c0_23 = arith.constant 0 : index
    %c0_24 = arith.constant 0 : index
    %c0_25 = arith.constant 0 : index
    %c0_26 = arith.constant 0 : index
    %25 = vector.load %arg3[%c0_23, %c0_24, %c0_25, %c0_26] : memref<1x3x32x32xbf16, #tpu.memory_space<vmem>>, vector<1x1x32x32xbf16>
    %26 = vector.shape_cast %25 : vector<1x1x32x32xbf16> to vector<32x32xbf16>
    %cst = arith.constant dense<0.000000e+00> : vector<32x32xf32>
    %27 = tpu.matmul %4, %26, %cst {dimension_numbers = #tpu.dot_dimension_numbers<[1], [0], [0], [1], [0, 0, 1, 1], [], []>} : vector<32x32xbf16>, vector<32x32xbf16>, vector<32x32xf32> -> vector<32x32xf32>
    %28 = vector.broadcast %6 : vector<1x32xf32> to vector<32x32xf32>
    %29 = arith.addf %27, %28 : vector<32x32xf32>
    %c0_27 = arith.constant 0 : index
    %c1_28 = arith.constant 1 : index
    %c0_29 = arith.constant 0 : index
    %c0_30 = arith.constant 0 : index
    %30 = vector.load %arg3[%c0_27, %c1_28, %c0_29, %c0_30] : memref<1x3x32x32xbf16, #tpu.memory_space<vmem>>, vector<1x1x32x32xbf16>
    %31 = vector.shape_cast %30 : vector<1x1x32x32xbf16> to vector<32x32xbf16>
    %cst_31 = arith.constant dense<0.000000e+00> : vector<32x32xf32>
    %32 = tpu.matmul %4, %31, %cst_31 {dimension_numbers = #tpu.dot_dimension_numbers<[1], [0], [0], [1], [0, 0, 1, 1], [], []>} : vector<32x32xbf16>, vector<32x32xbf16>, vector<32x32xf32> -> vector<32x32xf32>
    %33 = vector.broadcast %8 : vector<1x32xf32> to vector<32x32xf32>
    %34 = arith.addf %32, %33 : vector<32x32xf32>
    %c0_32 = arith.constant 0 : index
    %c2_33 = arith.constant 2 : index
    %c0_34 = arith.constant 0 : index
    %c0_35 = arith.constant 0 : index
    %35 = vector.load %arg3[%c0_32, %c2_33, %c0_34, %c0_35] : memref<1x3x32x32xbf16, #tpu.memory_space<vmem>>, vector<1x1x32x32xbf16>
    %36 = vector.shape_cast %35 : vector<1x1x32x32xbf16> to vector<32x32xbf16>
    %cst_36 = arith.constant dense<0.000000e+00> : vector<32x32xf32>
    %37 = tpu.matmul %4, %36, %cst_36 {dimension_numbers = #tpu.dot_dimension_numbers<[1], [0], [0], [1], [0, 0, 1, 1], [], []>} : vector<32x32xbf16>, vector<32x32xbf16>, vector<32x32xf32> -> vector<32x32xf32>
    %38 = vector.broadcast %10 : vector<1x32xf32> to vector<32x32xf32>
    %39 = arith.addf %37, %38 : vector<32x32xf32>
    %40 = vector.extract_strided_slice %29 {offsets = [0, 0], sizes = [16, 32], strides = [1, 1]} : vector<32x32xf32> to vector<16x32xf32>
    %41 = vector.extract_strided_slice %34 {offsets = [0, 0], sizes = [16, 32], strides = [1, 1]} : vector<32x32xf32> to vector<16x32xf32>
    %42 = vector.extract_strided_slice %39 {offsets = [0, 0], sizes = [16, 32], strides = [1, 1]} : vector<32x32xf32> to vector<16x32xf32>
    %43 = vector.shape_cast %40 : vector<16x32xf32> to vector<16x4x8xf32>
    %44 = tpu.transpose %43, [1, 0, 2] : vector<16x4x8xf32> -> vector<4x16x8xf32>
    %45 = vector.shape_cast %41 : vector<16x32xf32> to vector<16x4x8xf32>
    %46 = tpu.transpose %45, [1, 0, 2] : vector<16x4x8xf32> -> vector<4x16x8xf32>
    %47 = vector.shape_cast %42 : vector<16x32xf32> to vector<16x4x8xf32>
    %48 = tpu.transpose %47, [1, 0, 2] : vector<16x4x8xf32> -> vector<4x16x8xf32>
    %49 = arith.truncf %44 : vector<4x16x8xf32> to vector<4x16x8xbf16>
    %50 = arith.truncf %46 : vector<4x16x8xf32> to vector<4x16x8xbf16>
    "tpu.trace_start"() <{level = 10 : i32, message = "hqd,hkd->hqk"}> : () -> ()
    %cst_37 = arith.constant dense<0.000000e+00> : vector<4x16x16xf32>
    %51 = tpu.matmul %49, %50, %cst_37 {dimension_numbers = #tpu.dot_dimension_numbers<[2], [2], [1], [1], [0, 0, 0, 1, 1, 1], [0], [0]>} : vector<4x16x8xbf16>, vector<4x16x8xbf16>, vector<4x16x16xf32> -> vector<4x16x16xf32>
    "tpu.trace_stop"() : () -> ()
    %cst_38 = arith.constant dense<0xFF800000> : vector<4x16xf32>
    %52 = vector.multi_reduction <maximumf>, %51, %cst_38 [2] : vector<4x16x16xf32> to vector<4x16xf32>
    %53 = vector.shape_cast %52 : vector<4x16xf32> to vector<4x16x1xf32>
    %54 = vector.broadcast %53 : vector<4x16x1xf32> to vector<4x16x16xf32>
    %55 = arith.subf %51, %54 : vector<4x16x16xf32>
    %56 = math.exp %55 : vector<4x16x16xf32>
    %cst_39 = arith.constant dense<0.000000e+00> : vector<4x16xf32>
    %57 = vector.multi_reduction <add>, %56, %cst_39 [2] : vector<4x16x16xf32> to vector<4x16xf32>
    %58 = vector.shape_cast %57 : vector<4x16xf32> to vector<4x16x1xf32>
    %59 = tpu.reciprocal %58 {approx = true} : vector<4x16x1xf32> -> vector<4x16x1xf32>
    %60 = vector.broadcast %59 : vector<4x16x1xf32> to vector<4x16x16xf32>
    %61 = arith.mulf %56, %60 : vector<4x16x16xf32>
    %62 = arith.truncf %61 : vector<4x16x16xf32> to vector<4x16x16xbf16>
    %63 = arith.truncf %48 : vector<4x16x8xf32> to vector<4x16x8xbf16>
    "tpu.trace_start"() <{level = 10 : i32, message = "hqk,hkd->qhd"}> : () -> ()
    %cst_40 = arith.constant dense<0.000000e+00> : vector<4x8x16xf32>
    %64 = tpu.matmul %63, %62, %cst_40 {dimension_numbers = #tpu.dot_dimension_numbers<[1], [2], [2], [1], [0, 0, 0, 2, 1, 1], [0], [0]>} : vector<4x16x8xbf16>, vector<4x16x16xbf16>, vector<4x8x16xf32> -> vector<4x8x16xf32>
    %65 = tpu.transpose %64, [2, 0, 1] : vector<4x8x16xf32> -> vector<16x4x8xf32>
    "tpu.trace_stop"() : () -> ()
    %66 = vector.shape_cast %65 : vector<16x4x8xf32> to vector<16x32xf32>
    %67 = vector.extract_strided_slice %29 {offsets = [16, 0], sizes = [16, 32], strides = [1, 1]} : vector<32x32xf32> to vector<16x32xf32>
    %68 = vector.extract_strided_slice %34 {offsets = [16, 0], sizes = [16, 32], strides = [1, 1]} : vector<32x32xf32> to vector<16x32xf32>
    %69 = vector.extract_strided_slice %39 {offsets = [16, 0], sizes = [16, 32], strides = [1, 1]} : vector<32x32xf32> to vector<16x32xf32>
    %70 = vector.shape_cast %67 : vector<16x32xf32> to vector<16x4x8xf32>
    %71 = tpu.transpose %70, [1, 0, 2] : vector<16x4x8xf32> -> vector<4x16x8xf32>
    %72 = vector.shape_cast %68 : vector<16x32xf32> to vector<16x4x8xf32>
    %73 = tpu.transpose %72, [1, 0, 2] : vector<16x4x8xf32> -> vector<4x16x8xf32>
    %74 = vector.shape_cast %69 : vector<16x32xf32> to vector<16x4x8xf32>
    %75 = tpu.transpose %74, [1, 0, 2] : vector<16x4x8xf32> -> vector<4x16x8xf32>
    %76 = arith.truncf %71 : vector<4x16x8xf32> to vector<4x16x8xbf16>
    %77 = arith.truncf %73 : vector<4x16x8xf32> to vector<4x16x8xbf16>
    "tpu.trace_start"() <{level = 10 : i32, message = "hqd,hkd->hqk"}> : () -> ()
    %cst_41 = arith.constant dense<0.000000e+00> : vector<4x16x16xf32>
    %78 = tpu.matmul %76, %77, %cst_41 {dimension_numbers = #tpu.dot_dimension_numbers<[2], [2], [1], [1], [0, 0, 0, 1, 1, 1], [0], [0]>} : vector<4x16x8xbf16>, vector<4x16x8xbf16>, vector<4x16x16xf32> -> vector<4x16x16xf32>
    "tpu.trace_stop"() : () -> ()
    %cst_42 = arith.constant dense<0xFF800000> : vector<4x16xf32>
    %79 = vector.multi_reduction <maximumf>, %78, %cst_42 [2] : vector<4x16x16xf32> to vector<4x16xf32>
    %80 = vector.shape_cast %79 : vector<4x16xf32> to vector<4x16x1xf32>
    %81 = vector.broadcast %80 : vector<4x16x1xf32> to vector<4x16x16xf32>
    %82 = arith.subf %78, %81 : vector<4x16x16xf32>
    %83 = math.exp %82 : vector<4x16x16xf32>
    %cst_43 = arith.constant dense<0.000000e+00> : vector<4x16xf32>
    %84 = vector.multi_reduction <add>, %83, %cst_43 [2] : vector<4x16x16xf32> to vector<4x16xf32>
    %85 = vector.shape_cast %84 : vector<4x16xf32> to vector<4x16x1xf32>
    %86 = tpu.reciprocal %85 {approx = true} : vector<4x16x1xf32> -> vector<4x16x1xf32>
    %87 = vector.broadcast %86 : vector<4x16x1xf32> to vector<4x16x16xf32>
    %88 = arith.mulf %83, %87 : vector<4x16x16xf32>
    %89 = arith.truncf %88 : vector<4x16x16xf32> to vector<4x16x16xbf16>
    %90 = arith.truncf %75 : vector<4x16x8xf32> to vector<4x16x8xbf16>
    "tpu.trace_start"() <{level = 10 : i32, message = "hqk,hkd->qhd"}> : () -> ()
    %cst_44 = arith.constant dense<0.000000e+00> : vector<4x8x16xf32>
    %91 = tpu.matmul %90, %89, %cst_44 {dimension_numbers = #tpu.dot_dimension_numbers<[1], [2], [2], [1], [0, 0, 0, 2, 1, 1], [0], [0]>} : vector<4x16x8xbf16>, vector<4x16x16xbf16>, vector<4x8x16xf32> -> vector<4x8x16xf32>
    %92 = tpu.transpose %91, [2, 0, 1] : vector<4x8x16xf32> -> vector<16x4x8xf32>
    "tpu.trace_stop"() : () -> ()
    %93 = vector.shape_cast %92 : vector<16x4x8xf32> to vector<16x32xf32>
    %94 = tpu.concatenate %66, %93 in 0 : vector<16x32xf32>, vector<16x32xf32> -> vector<32x32xf32>
    %95 = arith.truncf %94 : vector<32x32xf32> to vector<32x32xbf16>
    %c0_45 = arith.constant 0 : index
    %c0_46 = arith.constant 0 : index
    %c0_47 = arith.constant 0 : index
    %96 = vector.load %arg4[%c0_45, %c0_46, %c0_47] : memref<1x32x32xbf16, #tpu.memory_space<vmem>>, vector<1x32x32xbf16>
    %97 = vector.shape_cast %96 : vector<1x32x32xbf16> to vector<32x32xbf16>
    %cst_48 = arith.constant dense<0.000000e+00> : vector<32x32xf32>
    %98 = tpu.matmul %95, %97, %cst_48 {dimension_numbers = #tpu.dot_dimension_numbers<[1], [0], [0], [1], [0, 0, 1, 1], [], []>} : vector<32x32xbf16>, vector<32x32xbf16>, vector<32x32xf32> -> vector<32x32xf32>
    %99 = vector.broadcast %12 : vector<1x32xf32> to vector<32x32xf32>
    %100 = arith.addf %98, %99 : vector<32x32xf32>
    %101 = arith.addf %3, %100 : vector<32x32xf32>
    %cst_49 = arith.constant dense<0.000000e+00> : vector<32xf32>
    %102 = vector.multi_reduction <add>, %101, %cst_49 [1] : vector<32x32xf32> to vector<32xf32>
    %103 = vector.shape_cast %102 : vector<32xf32> to vector<32x1xf32>
    %cst_50 = arith.constant 3.200000e+01 : f32
    %104 = vector.broadcast %cst_50 : f32 to vector<32x1xf32>
    %105 = arith.divf %103, %104 : vector<32x1xf32>
    %106 = vector.broadcast %105 : vector<32x1xf32> to vector<32x32xf32>
    %107 = arith.subf %101, %106 : vector<32x32xf32>
    %108 = arith.mulf %107, %107 : vector<32x32xf32>
    %cst_51 = arith.constant dense<0.000000e+00> : vector<32xf32>
    %109 = vector.multi_reduction <add>, %108, %cst_51 [1] : vector<32x32xf32> to vector<32xf32>
    %110 = vector.shape_cast %109 : vector<32xf32> to vector<32x1xf32>
    %cst_52 = arith.constant 3.200000e+01 : f32
    %111 = vector.broadcast %cst_52 : f32 to vector<32x1xf32>
    %112 = arith.divf %110, %111 : vector<32x1xf32>
    %113 = vector.broadcast %105 : vector<32x1xf32> to vector<32x32xf32>
    %114 = arith.subf %101, %113 : vector<32x32xf32>
    %cst_53 = arith.constant 9.99999974E-6 : f32
    %115 = vector.broadcast %cst_53 : f32 to vector<32x1xf32>
    %116 = arith.addf %112, %115 : vector<32x1xf32>
    %117 = math.rsqrt %116 : vector<32x1xf32>
    %118 = vector.broadcast %117 : vector<32x1xf32> to vector<32x32xf32>
    %119 = arith.mulf %114, %118 : vector<32x32xf32>
    %120 = vector.broadcast %18 : vector<1x32xf32> to vector<32x32xf32>
    %121 = arith.mulf %119, %120 : vector<32x32xf32>
    %122 = vector.broadcast %20 : vector<1x32xf32> to vector<32x32xf32>
    %123 = arith.addf %121, %122 : vector<32x32xf32>
    %124 = arith.truncf %123 : vector<32x32xf32> to vector<32x32xbf16>
    %c0_54 = arith.constant 0 : index
    %c0_55 = arith.constant 0 : index
    %c0_56 = arith.constant 0 : index
    %125 = vector.load %arg5[%c0_54, %c0_55, %c0_56] : memref<1x32x64xbf16, #tpu.memory_space<vmem>>, vector<1x32x64xbf16>
    %126 = vector.shape_cast %125 : vector<1x32x64xbf16> to vector<32x64xbf16>
    %cst_57 = arith.constant dense<0.000000e+00> : vector<32x64xf32>
    %127 = tpu.matmul %124, %126, %cst_57 {dimension_numbers = #tpu.dot_dimension_numbers<[1], [0], [0], [1], [0, 0, 1, 1], [], []>} : vector<32x32xbf16>, vector<32x64xbf16>, vector<32x64xf32> -> vector<32x64xf32>
    %128 = vector.broadcast %14 : vector<1x64xf32> to vector<32x64xf32>
    %129 = arith.addf %127, %128 : vector<32x64xf32>
    %cst_58 = arith.constant 0.000000e+00 : f32
    %130 = vector.broadcast %cst_58 : f32 to vector<32x64xf32>
    %131 = arith.maximumf %129, %130 : vector<32x64xf32>
    %132 = arith.truncf %131 : vector<32x64xf32> to vector<32x64xbf16>
    %c0_59 = arith.constant 0 : index
    %c0_60 = arith.constant 0 : index
    %c0_61 = arith.constant 0 : index
    %133 = vector.load %arg6[%c0_59, %c0_60, %c0_61] : memref<1x64x32xbf16, #tpu.memory_space<vmem>>, vector<1x64x32xbf16>
    %134 = vector.shape_cast %133 : vector<1x64x32xbf16> to vector<64x32xbf16>
    %cst_62 = arith.constant dense<0.000000e+00> : vector<32x32xf32>
    %135 = tpu.matmul %132, %134, %cst_62 {dimension_numbers = #tpu.dot_dimension_numbers<[1], [0], [0], [1], [0, 0, 1, 1], [], []>} : vector<32x64xbf16>, vector<64x32xbf16>, vector<32x32xf32> -> vector<32x32xf32>
    %136 = vector.broadcast %16 : vector<1x32xf32> to vector<32x32xf32>
    %137 = arith.addf %135, %136 : vector<32x32xf32>
    %138 = arith.addf %123, %137 : vector<32x32xf32>
    %cst_63 = arith.constant dense<0.000000e+00> : vector<32xf32>
    %139 = vector.multi_reduction <add>, %138, %cst_63 [1] : vector<32x32xf32> to vector<32xf32>
    %140 = vector.shape_cast %139 : vector<32xf32> to vector<32x1xf32>
    %cst_64 = arith.constant 3.200000e+01 : f32
    %141 = vector.broadcast %cst_64 : f32 to vector<32x1xf32>
    %142 = arith.divf %140, %141 : vector<32x1xf32>
    %143 = vector.broadcast %142 : vector<32x1xf32> to vector<32x32xf32>
    %144 = arith.subf %138, %143 : vector<32x32xf32>
    %145 = arith.mulf %144, %144 : vector<32x32xf32>
    %cst_65 = arith.constant dense<0.000000e+00> : vector<32xf32>
    %146 = vector.multi_reduction <add>, %145, %cst_65 [1] : vector<32x32xf32> to vector<32xf32>
    %147 = vector.shape_cast %146 : vector<32xf32> to vector<32x1xf32>
    %cst_66 = arith.constant 3.200000e+01 : f32
    %148 = vector.broadcast %cst_66 : f32 to vector<32x1xf32>
    %149 = arith.divf %147, %148 : vector<32x1xf32>
    %150 = vector.broadcast %142 : vector<32x1xf32> to vector<32x32xf32>
    %151 = arith.subf %138, %150 : vector<32x32xf32>
    %cst_67 = arith.constant 9.99999974E-6 : f32
    %152 = vector.broadcast %cst_67 : f32 to vector<32x1xf32>
    %153 = arith.addf %149, %152 : vector<32x1xf32>
    %154 = math.rsqrt %153 : vector<32x1xf32>
    %155 = vector.broadcast %154 : vector<32x1xf32> to vector<32x32xf32>
    %156 = arith.mulf %151, %155 : vector<32x32xf32>
    %157 = vector.broadcast %22 : vector<1x32xf32> to vector<32x32xf32>
    %158 = arith.mulf %156, %157 : vector<32x32xf32>
    %159 = vector.broadcast %24 : vector<1x32xf32> to vector<32x32xf32>
    %160 = arith.addf %158, %159 : vector<32x32xf32>
    %c0_68 = arith.constant 0 : index
    %c0_69 = arith.constant 0 : index
    %161 = vector.load %arg10[%c0_68, %c0_69] : memref<32x32xf32, #tpu.memory_space<vmem>>, vector<32x32xf32>
    tpu.vector_store %arg10[%c0_68, %c0_69], %160 {strides = array<i32>} : memref<32x32xf32, #tpu.memory_space<vmem>>, vector<32x32xf32>,
    %c1_i32 = arith.constant 1 : i32
    %162 = arith.cmpi eq, %arg1, %c1_i32 : i32
    %163 = arith.extui %162 : i1 to i32
    %c0_i32_70 = arith.constant 0 : i32
    %164 = arith.cmpi ne, %163, %c0_i32_70 : i32
    scf.if %164 {
      %c0_71 = arith.constant 0 : index
      %c0_72 = arith.constant 0 : index
      %165 = vector.load %arg8[%c0_71, %c0_72] : memref<2x32xf32, #tpu.memory_space<vmem>>, vector<1x32xf32>
      %c1_73 = arith.constant 1 : index
      %c0_74 = arith.constant 0 : index
      %166 = vector.load %arg8[%c1_73, %c0_74] : memref<2x32xf32, #tpu.memory_space<vmem>>, vector<1x32xf32>
      %cst_75 = arith.constant dense<0.000000e+00> : vector<32xf32>
      %167 = vector.multi_reduction <add>, %160, %cst_75 [1] : vector<32x32xf32> to vector<32xf32>
      %168 = vector.shape_cast %167 : vector<32xf32> to vector<32x1xf32>
      %cst_76 = arith.constant 3.200000e+01 : f32
      %169 = vector.broadcast %cst_76 : f32 to vector<32x1xf32>
      %170 = arith.divf %168, %169 : vector<32x1xf32>
      %171 = vector.broadcast %170 : vector<32x1xf32> to vector<32x32xf32>
      %172 = arith.subf %160, %171 : vector<32x32xf32>
      %173 = arith.mulf %172, %172 : vector<32x32xf32>
      %cst_77 = arith.constant dense<0.000000e+00> : vector<32xf32>
      %174 = vector.multi_reduction <add>, %173, %cst_77 [1] : vector<32x32xf32> to vector<32xf32>
      %175 = vector.shape_cast %174 : vector<32xf32> to vector<32x1xf32>
      %cst_78 = arith.constant 3.200000e+01 : f32
      %176 = vector.broadcast %cst_78 : f32 to vector<32x1xf32>
      %177 = arith.divf %175, %176 : vector<32x1xf32>
      %178 = vector.broadcast %170 : vector<32x1xf32> to vector<32x32xf32>
      %179 = arith.subf %160, %178 : vector<32x32xf32>
      %cst_79 = arith.constant 9.99999974E-6 : f32
      %180 = vector.broadcast %cst_79 : f32 to vector<32x1xf32>
      %181 = arith.addf %177, %180 : vector<32x1xf32>
      %182 = math.rsqrt %181 : vector<32x1xf32>
      %183 = vector.broadcast %182 : vector<32x1xf32> to vector<32x32xf32>
      %184 = arith.mulf %179, %183 : vector<32x32xf32>
      %185 = vector.broadcast %165 : vector<1x32xf32> to vector<32x32xf32>
      %186 = arith.mulf %184, %185 : vector<32x32xf32>
      %187 = vector.broadcast %166 : vector<1x32xf32> to vector<32x32xf32>
      %188 = arith.addf %186, %187 : vector<32x32xf32>
      %c0_80 = arith.constant 0 : index
      %c0_81 = arith.constant 0 : index
      %189 = vector.load %arg9[%c0_80, %c0_81] : memref<32x32xf32, #tpu.memory_space<vmem>>, vector<32x32xf32>
      tpu.vector_store %arg9[%c0_80, %c0_81], %188 {strides = array<i32>} : memref<32x32xf32, #tpu.memory_space<vmem>>, vector<32x32xf32>,
    } else {
    }
    return
  }
  func.func @transform_0(%arg0: i32, %arg1: i32) -> (i32, i32) {
    %c0_i32 = arith.constant 0 : i32
    %c0_i32_0 = arith.constant 0 : i32
    return %arg0, %c0_i32 : i32, i32
  }
  func.func @transform_1(%arg0: i32, %arg1: i32) -> (i32, i32, i32, i32) {
    %c0_i32 = arith.constant 0 : i32
    %c0_i32_0 = arith.constant 0 : i32
    %c0_i32_1 = arith.constant 0 : i32
    %c0_i32_2 = arith.constant 0 : i32
    return %arg1, %c0_i32, %c0_i32_0, %c0_i32_1 : i32, i32, i32, i32
  }
  func.func @transform_2(%arg0: i32, %arg1: i32) -> (i32, i32, i32) {
    %c0_i32 = arith.constant 0 : i32
    %c0_i32_0 = arith.constant 0 : i32
    %c0_i32_1 = arith.constant 0 : i32
    return %arg1, %c0_i32, %c0_i32_0 : i32, i32, i32
  }
  func.func @transform_3(%arg0: i32, %arg1: i32) -> (i32, i32, i32) {
    %c0_i32 = arith.constant 0 : i32
    %c0_i32_0 = arith.constant 0 : i32
    %c0_i32_1 = arith.constant 0 : i32
    return %arg1, %c0_i32, %c0_i32_0 : i32, i32, i32
  }
  func.func @transform_4(%arg0: i32, %arg1: i32) -> (i32, i32, i32) {
    %c0_i32 = arith.constant 0 : i32
    %c0_i32_0 = arith.constant 0 : i32
    %c0_i32_1 = arith.constant 0 : i32
    return %arg1, %c0_i32, %c0_i32_0 : i32, i32, i32
  }
  func.func @transform_5(%arg0: i32, %arg1: i32) -> (i32, i32, i32) {
    %c0_i32 = arith.constant 0 : i32
    %c0_i32_0 = arith.constant 0 : i32
    %c0_i32_1 = arith.constant 0 : i32
    return %arg1, %c0_i32, %c0_i32_0 : i32, i32, i32
  }
  func.func @transform_6(%arg0: i32, %arg1: i32) -> (i32, i32) {
    %c0_i32 = arith.constant 0 : i32
    %c0_i32_0 = arith.constant 0 : i32
    %c0_i32_1 = arith.constant 0 : i32
    return %c0_i32, %c0_i32_0 : i32, i32
  }
  func.func @transform_7(%arg0: i32, %arg1: i32) -> (i32, i32) {
    %c0_i32 = arith.constant 0 : i32
    %c0_i32_0 = arith.constant 0 : i32
    return %arg0, %c0_i32 : i32, i32
  }
}

</mosaic_0001>

<llo_original>
// kernel: tpu_custom_call.1
$region0: #{tpu_custom_call.1}
  #allocation0 [shape = 'u32[]', space=smem, size = 0x4, offset = 0x4, fixed_abs, tag = 'smem constant byte address 0x4 - core index']
  #allocation1 [shape = 'u32[144,128]{1,0:T(1,128)}', space=vmem, size = 0x12000, scoped, tag = 'internal scratch']
  #allocation2 [shape = 'f32[32,32]{1,0:T(8,128)}', space=vmem, size = 0x4000, scoped, tag = 'scratch operand']
  %s0 = inlined_call_operand.hbm [shape: f32[32,32], index: 0, kind: input, shape index: {}]
  %s1 = inlined_call_operand.vmem [shape: bf16[2,3,32,32], index: 1, kind: input, shape index: {}]
  %s2 = inlined_call_operand.hbm [shape: bf16[2,32,32], index: 2, kind: input, shape index: {}]
  %s3 = inlined_call_operand.hbm [shape: bf16[2,32,64], index: 3, kind: input, shape index: {}]
  %s4 = inlined_call_operand.vmem [shape: bf16[2,64,32], index: 4, kind: input, shape index: {}]
  %s5 = inlined_call_operand.vmem [shape: f32[2,10,64], index: 5, kind: input, shape index: {}]
  %s6 = inlined_call_operand.vmem [shape: f32[2,32], index: 6, kind: input, shape index: {}]
  %s7 = inlined_call_operand.hbm [shape: f32[32,32], index: 7, kind: output, shape index: {}]
  %s8 = sld [smem:[#allocation0]]
  $region81: #{tpu_custom_call.1} parent=0
    _
  %s10 = ssub.s32 1, %s8
  %s11 = scalar_select 0, %s10, %s8
  $region1: #{tpu_custom_call.1} parent=0
    #allocation3 [shape = 'u8[16384]{0}', space=vmem, size = 0x4000, scoped, tag = 'input window, operand 0, single buffered']
    #allocation4 [shape = 's32[2]{0}', space=sflag, size = 0x8, scoped, tag = 'scoped memory for tpu_custom_call.1']
    #allocation5 [shape = 's32[2]{0}', space=sflag, size = 0x8, scoped, tag = 'scoped memory for tpu_custom_call.1']
    #allocation6 [shape = 'u8[16384]{0}', space=vmem, size = 0x4000, scoped, tag = 'input window, operand 2']
    #allocation7 [shape = 's32[2]{0}', space=sflag, size = 0x8, scoped, tag = 'scoped memory for tpu_custom_call.1']
    #allocation8 [shape = 'u8[16384]{0}', space=vmem, size = 0x4000, scoped, tag = 'input window, operand 3']
    #allocation9 [shape = 'u8[16384]{0}', space=vmem, size = 0x4000, scoped, tag = 'output window, operand 0, single buffered']
    %12 = vsyncpa [#allocation4], 0
    %13 = vsyncpa [#allocation7], 0
    %s14 = scalar_lea.sflag [#allocation7], 1
    %15 = vsyncpa %s14, 0
    %16 = vsyncpa [#allocation5], 0
    loop: start=0, step=1, limit=4
    $region2: #{tpu_custom_call.1} parent=1 // loop_pre_header
      _
    $region3: #{tpu_custom_call.1} parent=1 // loop_header
      %s18 = sphi 0, %s22
      %p19 = scmp.ge.s32.totalorder %s18, 4
      %s25 = sphi 0, %s37
      %s26 = sphi 0, %s33
      %s27 = sphi 0, %s25
      %s28 = sphi 0, %s26
      %s29 = sphi 0, %s27
      %s30 = sphi 0, %s28
      %s40 = sphi 0, %s42
      %s43 = sphi 0, %s40
      %s44 = sphi 0, %s43
      %s60 = sphi 0, %s44
      %s66 = sphi 0, %s68
      %s69 = sphi 0, %s66
      %s70 = sphi 0, %s69
      %s86 = sphi 0, %s70
      %s92 = sphi 0, %s94
      %s95 = sphi 0, %s92
      %s96 = sphi 0, %s95
      %s112 = sphi 0, %s96
      %s118 = sphi 0, %s120
      %s121 = sphi 0, %s118
      %s122 = sphi 0, %s121
      %s138 = sphi 0, %s122
      %s144 = sphi 0, %s146
      %s147 = sphi 0, %s144
      %s148 = sphi 0, %s147
      %s164 = sphi 0, %s148
      %s170 = sphi 0, %s172
      %s173 = sphi 0, %s170
      %s174 = sphi 0, %s173
      %s190 = sphi 0, %s174
      %s194 = sphi 0, %s194
      %s196 = sphi 0, %s194
      %s197 = sphi 0, %s196
      %s211 = sphi 0, %s197
      %s217 = sphi 0, %s219
      %s220 = sphi 0, %s217
      %s221 = sphi 0, %s220
      %s237 = sphi 0, %s221
    $region4: #{tpu_custom_call.1} parent=1 // loop_header_branch
      %21 = sbr.rel (%p19) target = $region8
    $region5: #{tpu_custom_call.1} parent=1 // loop_body
      %s23 = ssub.s32 %s18, 1
      %s24 = ssub.s32 %s18, 2
      %s31 = sadd.s32 1, %s26
      %p32 = scmp.ge.s32.totalorder %s31, 2
      %s33 = scalar_select %p32, 0, %s31
      %s34 = sadd.s32 1, %s25
      %s35 = scalar_select %p32, %s34, %s25
      %p36 = scmp.ge.s32.totalorder %s35, 1
      %s37 = scalar_select %p36, 0, %s35
      %s38 = ssub.s32 %s25, %s37
      %p39 = scmp.eq.s32.totalorder %s38, 0
      %s41 = sadd.s32 %s40, 1
      %s42 = scalar_select %p39, %s40, %s41
      %p45 = pneg %p39
      %p46 = scmp.eq.s32.totalorder %s18, 1
      %p47 = por %p45, %p46
      %p48 = scmp.ne.s32.totalorder %s40, %s43
      %p49 = scmp.eq.s32.totalorder %s18, 0
      %p50 = por %p48, %p49
      %p51 = scmp.ne.s32.totalorder %s40, %s43
      %p52 = scmp.eq.s32.totalorder %s23, 1
      %p53 = por %p51, %p52
      %p54 = scmp.ne.s32.totalorder %s43, %s44
      %p55 = scmp.eq.s32.totalorder %s23, 0
      %p56 = por %p54, %p55
      %p57 = scmp.ne.s32.totalorder %s43, %s44
      %p58 = scmp.eq.s32.totalorder %s24, 1
      %p59 = por %p57, %p58
      %p61 = scmp.ne.s32.totalorder %s44, %s60
      %p62 = scmp.eq.s32.totalorder %s24, 0
      %p63 = por %p61, %p62
      %s64 = ssub.s32 %s26, %s33
      %p65 = scmp.eq.s32.totalorder %s64, 0
      %s67 = sadd.s32 %s66, 1
      %s68 = scalar_select %p65, %s66, %s67
      %p71 = pneg %p65
      %p72 = scmp.eq.s32.totalorder %s18, 1
      %p73 = por %p71, %p72
      %p74 = scmp.ne.s32.totalorder %s66, %s69
      %p75 = scmp.eq.s32.totalorder %s18, 0
      %p76 = por %p74, %p75
      %p77 = scmp.ne.s32.totalorder %s66, %s69
      %p78 = scmp.eq.s32.totalorder %s23, 1
      %p79 = por %p77, %p78
      %p80 = scmp.ne.s32.totalorder %s69, %s70
      %p81 = scmp.eq.s32.totalorder %s23, 0
      %p82 = por %p80, %p81
      %p83 = scmp.ne.s32.totalorder %s69, %s70
      %p84 = scmp.eq.s32.totalorder %s24, 1
      %p85 = por %p83, %p84
      %p87 = scmp.ne.s32.totalorder %s70, %s86
      %p88 = scmp.eq.s32.totalorder %s24, 0
      %p89 = por %p87, %p88
      %s90 = ssub.s32 %s26, %s33
      %p91 = scmp.eq.s32.totalorder %s90, 0
      %s93 = sadd.s32 %s92, 1
      %s94 = scalar_select %p91, %s92, %s93
      %p97 = pneg %p91
      %p98 = scmp.eq.s32.totalorder %s18, 1
      %p99 = por %p97, %p98
      %p100 = scmp.ne.s32.totalorder %s92, %s95
      %p101 = scmp.eq.s32.totalorder %s18, 0
      %p102 = por %p100, %p101
      %p103 = scmp.ne.s32.totalorder %s92, %s95
      %p104 = scmp.eq.s32.totalorder %s23, 1
      %p105 = por %p103, %p104
      %p106 = scmp.ne.s32.totalorder %s95, %s96
      %p107 = scmp.eq.s32.totalorder %s23, 0
      %p108 = por %p106, %p107
      %p109 = scmp.ne.s32.totalorder %s95, %s96
      %p110 = scmp.eq.s32.totalorder %s24, 1
      %p111 = por %p109, %p110
      %p113 = scmp.ne.s32.totalorder %s96, %s112
      %p114 = scmp.eq.s32.totalorder %s24, 0
      %p115 = por %p113, %p114
      %s116 = ssub.s32 %s26, %s33
      %p117 = scmp.eq.s32.totalorder %s116, 0
      %s119 = sadd.s32 %s118, 1
      %s120 = scalar_select %p117, %s118, %s119
      %p123 = pneg %p117
      %p124 = scmp.eq.s32.totalorder %s18, 1
      %p125 = por %p123, %p124
      %p126 = scmp.ne.s32.totalorder %s118, %s121
      %p127 = scmp.eq.s32.totalorder %s18, 0
      %p128 = por %p126, %p127
      %p129 = scmp.ne.s32.totalorder %s118, %s121
      %p130 = scmp.eq.s32.totalorder %s23, 1
      %p131 = por %p129, %p130
      %p132 = scmp.ne.s32.totalorder %s121, %s122
      %p133 = scmp.eq.s32.totalorder %s23, 0
      %p134 = por %p132, %p133
      %p135 = scmp.ne.s32.totalorder %s121, %s122
      %p136 = scmp.eq.s32.totalorder %s24, 1
      %p137 = por %p135, %p136
      %p139 = scmp.ne.s32.totalorder %s122, %s138
      %p140 = scmp.eq.s32.totalorder %s24, 0
      %p141 = por %p139, %p140
      %s142 = ssub.s32 %s26, %s33
      %p143 = scmp.eq.s32.totalorder %s142, 0
      %s145 = sadd.s32 %s144, 1
      %s146 = scalar_select %p143, %s144, %s145
      %p149 = pneg %p143
      %p150 = scmp.eq.s32.totalorder %s18, 1
      %p151 = por %p149, %p150
      %p152 = scmp.ne.s32.totalorder %s144, %s147
      %p153 = scmp.eq.s32.totalorder %s18, 0
      %p154 = por %p152, %p153
      %p155 = scmp.ne.s32.totalorder %s144, %s147
      %p156 = scmp.eq.s32.totalorder %s23, 1
      %p157 = por %p155, %p156
      %p158 = scmp.ne.s32.totalorder %s147, %s148
      %p159 = scmp.eq.s32.totalorder %s23, 0
      %p160 = por %p158, %p159
      %p161 = scmp.ne.s32.totalorder %s147, %s148
      %p162 = scmp.eq.s32.totalorder %s24, 1
      %p163 = por %p161, %p162
      %p165 = scmp.ne.s32.totalorder %s148, %s164
      %p166 = scmp.eq.s32.totalorder %s24, 0
      %p167 = por %p165, %p166
      %s168 = ssub.s32 %s26, %s33
      %p169 = scmp.eq.s32.totalorder %s168, 0
      %s171 = sadd.s32 %s170, 1
      %s172 = scalar_select %p169, %s170, %s171
      %p175 = pneg %p169
      %p176 = scmp.eq.s32.totalorder %s18, 1
      %p177 = por %p175, %p176
      %p178 = scmp.ne.s32.totalorder %s170, %s173
      %p179 = scmp.eq.s32.totalorder %s18, 0
      %p180 = por %p178, %p179
      %p181 = scmp.ne.s32.totalorder %s170, %s173
      %p182 = scmp.eq.s32.totalorder %s23, 1
      %p183 = por %p181, %p182
      %p184 = scmp.ne.s32.totalorder %s173, %s174
      %p185 = scmp.eq.s32.totalorder %s23, 0
      %p186 = por %p184, %p185
      %p187 = scmp.ne.s32.totalorder %s173, %s174
      %p188 = scmp.eq.s32.totalorder %s24, 1
      %p189 = por %p187, %p188
      %p191 = scmp.ne.s32.totalorder %s174, %s190
      %p192 = scmp.eq.s32.totalorder %s24, 0
      %p193 = por %p191, %p192
      %s195 = sadd.s32 %s194, 1
      %p198 = scmp.eq.s32.totalorder %s18, 1
      %p199 = scmp.ne.s32.totalorder %s194, %s196
      %p200 = scmp.eq.s32.totalorder %s18, 0
      %p201 = por %p199, %p200
      %p202 = scmp.ne.s32.totalorder %s194, %s196
      %p203 = scmp.eq.s32.totalorder %s23, 1
      %p204 = por %p202, %p203
      %p205 = scmp.ne.s32.totalorder %s196, %s197
      %p206 = scmp.eq.s32.totalorder %s23, 0
      %p207 = por %p205, %p206
      %p208 = scmp.ne.s32.totalorder %s196, %s197
      %p209 = scmp.eq.s32.totalorder %s24, 1
      %p210 = por %p208, %p209
      %p212 = scmp.ne.s32.totalorder %s197, %s211
      %p213 = scmp.eq.s32.totalorder %s24, 0
      %p214 = por %p212, %p213
      %s215 = ssub.s32 %s25, %s37
      %p216 = scmp.eq.s32.totalorder %s215, 0
      %s218 = sadd.s32 %s217, 1
      %s219 = scalar_select %p216, %s217, %s218
      %p222 = pneg %p216
      %p223 = scmp.eq.s32.totalorder %s18, 1
      %p224 = por %p222, %p223
      %p225 = scmp.ne.s32.totalorder %s217, %s220
      %p226 = scmp.eq.s32.totalorder %s18, 0
      %p227 = por %p225, %p226
      %p228 = scmp.ne.s32.totalorder %s217, %s220
      %p229 = scmp.eq.s32.totalorder %s23, 1
      %p230 = por %p228, %p229
      %p231 = scmp.ne.s32.totalorder %s220, %s221
      %p232 = scmp.eq.s32.totalorder %s23, 0
      %p233 = por %p231, %p232
      %p234 = scmp.ne.s32.totalorder %s220, %s221
      %p235 = scmp.eq.s32.totalorder %s24, 1
      %p236 = por %p234, %p235
      %p238 = scmp.ne.s32.totalorder %s221, %s237
      %p239 = scmp.eq.s32.totalorder %s24, 0
      %p240 = por %p238, %p239
      %p241 = scmp.le.s32.totalorder 1, %s18
      %p242 = scmp.lt.s32.totalorder %s18, 3
      %p243 = pnand %p241, %p242
      %p244 = pneg %p243
      // Predicated region
      $region9: #{tpu_custom_call.1} parent=5 // pred_check
        _
      $region10: #{tpu_custom_call.1} parent=5 // pred_check_branch
        %246 = sbr.rel (%p243) target = $region12
      $region11: #{tpu_custom_call.1} parent=5 // pred_region
        %s247 = ssub.s32 %s18, 1
        // Predicated region
        $region13: #{tpu_custom_call.1} parent=11 // pred_check
          %p248 = pneg %p56
        $region14: #{tpu_custom_call.1} parent=11 // pred_check_branch
          %250 = sbr.rel (%p248) target = $region16
        $region15: #{tpu_custom_call.1} parent=11 // pred_region
          %s251 = smul.u32 4, %s27
          %s253 = ssub.s32 512, 512
          %254 = vsyncadd [#allocation4], %s253
          %s255 = smul.addr %s251, 128
          %s256 = scalar_lea.hbm %s0, %s255
          %s257 = sshll.u32 [#allocation3], 4
          %s258 = int_to_ptr.vmem [resolvable:$true] %s257
          %263 = dma.hbm_to_vmem [thread:$0]  %s256, 512, %s258, [#allocation4], 128, 128, 8
        $region16: #{tpu_custom_call.1} parent=11 // pred_fallthru
          _
        // Predicated region
        $region17: #{tpu_custom_call.1} parent=11 // pred_check
          %p264 = pneg %p207
        $region18: #{tpu_custom_call.1} parent=11 // pred_check_branch
          %266 = sbr.rel (%p264) target = $region20
        $region19: #{tpu_custom_call.1} parent=11 // pred_region
          _
        $region20: #{tpu_custom_call.1} parent=11 // pred_fallthru
          _
      $region12: #{tpu_custom_call.1} parent=5 // pred_fallthru
        _
      %p267 = scmp.lt.s32.totalorder %s18, 2
      // Predicated region
      $region21: #{tpu_custom_call.1} parent=5 // pred_check
        %p268 = pneg %p267
      $region22: #{tpu_custom_call.1} parent=5 // pred_check_branch
        %270 = sbr.rel (%p268) target = $region24
      $region23: #{tpu_custom_call.1} parent=5 // pred_region
        // Predicated region
        $region25: #{tpu_custom_call.1} parent=23 // pred_check
          %p271 = pneg %p76
        $region26: #{tpu_custom_call.1} parent=23 // pred_check_branch
          %273 = sbr.rel (%p271) target = $region28
        $region27: #{tpu_custom_call.1} parent=23 // pred_region
          %p274 = scmp.lt.s32.totalorder %s26, 1
          %s275 = scalar_select %p274, %s26, 1
          %s276 = smul.addr %s275, 12
          %s277 = smul.addr %s276, 4
          %s278 = scalar_lea.vmem %s1, %s277
        $region28: #{tpu_custom_call.1} parent=23 // pred_fallthru
          _
        // Predicated region
        $region29: #{tpu_custom_call.1} parent=23 // pred_check
          %p279 = pneg %p102
        $region30: #{tpu_custom_call.1} parent=23 // pred_check_branch
          %281 = sbr.rel (%p279) target = $region32
        $region31: #{tpu_custom_call.1} parent=23 // pred_region
          %s282 = sand.u32 %s18, 1
          %s283 = scalar_lea.sflag [#allocation7], %s282
          %s284 = sand.u32 %s92, 1
          %s285 = smul.addr %s284, 16
          %s286 = scalar_lea.vmem [#allocation6], %s285
          %s288 = ssub.s32 256, 256
          %289 = vsyncadd %s283, %s288
          %s290 = smul.addr %s26, 4
          %s291 = smul.addr %s290, 64
          %s292 = scalar_lea.hbm %s2, %s291
          %s293 = sshll.u32 %s286, 4
          %s294 = int_to_ptr.vmem [resolvable:$true] %s293
          %299 = dma.hbm_to_vmem [thread:$0]  %s292, 256, %s294, %s283, 64, 64, 4
        $region32: #{tpu_custom_call.1} parent=23 // pred_fallthru
          _
        // Predicated region
        $region33: #{tpu_custom_call.1} parent=23 // pred_check
          %p300 = pneg %p128
        $region34: #{tpu_custom_call.1} parent=23 // pred_check_branch
          %302 = sbr.rel (%p300) target = $region36
        $region35: #{tpu_custom_call.1} parent=23 // pred_region
          %s303 = sand.u32 %s18, 1
          %s304 = scalar_lea.sflag [#allocation7], %s303
          %s305 = sand.u32 %s118, 1
          %s306 = smul.addr %s305, 16
          %s307 = scalar_lea.vmem [#allocation8], %s306
          %s309 = ssub.s32 256, 256
          %310 = vsyncadd %s304, %s309
          %s311 = smul.addr %s26, 4
          %s312 = smul.addr %s311, 64
          %s313 = scalar_lea.hbm %s3, %s312
          %s314 = sshll.u32 %s307, 4
          %s315 = int_to_ptr.vmem [resolvable:$true] %s314
          %320 = dma.hbm_to_vmem [thread:$0]  %s313, 256, %s315, %s304, 64, 64, 4
        $region36: #{tpu_custom_call.1} parent=23 // pred_fallthru
          _
        // Predicated region
        $region37: #{tpu_custom_call.1} parent=23 // pred_check
          %p321 = pneg %p154
        $region38: #{tpu_custom_call.1} parent=23 // pred_check_branch
          %323 = sbr.rel (%p321) target = $region40
        $region39: #{tpu_custom_call.1} parent=23 // pred_region
          %p324 = scmp.lt.s32.totalorder %s26, 1
          %s325 = scalar_select %p324, %s26, 1
          %s326 = smul.addr %s325, 8
          %s327 = smul.addr %s326, 4
          %s328 = scalar_lea.vmem %s4, %s327
        $region40: #{tpu_custom_call.1} parent=23 // pred_fallthru
          _
        // Predicated region
        $region41: #{tpu_custom_call.1} parent=23 // pred_check
          %p329 = pneg %p180
        $region42: #{tpu_custom_call.1} parent=23 // pred_check_branch
          %331 = sbr.rel (%p329) target = $region44
        $region43: #{tpu_custom_call.1} parent=23 // pred_region
          %p332 = scmp.lt.s32.totalorder %s26, 1
          %s333 = scalar_select %p332, %s26, 1
          %s334 = smul.addr %s333, 2
          %s335 = smul.addr %s334, 8
          %s336 = scalar_lea.vmem %s5, %s335
        $region44: #{tpu_custom_call.1} parent=23 // pred_fallthru
          _
      $region24: #{tpu_custom_call.1} parent=5 // pred_fallthru
        _
      %p337 = scmp.le.s32.totalorder 1, %s18
      %p338 = scmp.lt.s32.totalorder %s18, 3
      %p339 = pnand %p337, %p338
      %p340 = pneg %p339
      // Predicated region
      $region45: #{tpu_custom_call.1} parent=5 // pred_check
        _
      $region46: #{tpu_custom_call.1} parent=5 // pred_check_branch
        %342 = sbr.rel (%p339) target = $region48
      $region47: #{tpu_custom_call.1} parent=5 // pred_region
        %s343 = ssub.s32 %s18, 1
        // Predicated region
        $region49: #{tpu_custom_call.1} parent=47 // pred_check
          %p344 = pneg %p56
        $region50: #{tpu_custom_call.1} parent=47 // pred_check_branch
          %346 = sbr.rel (%p344) target = $region52
        $region51: #{tpu_custom_call.1} parent=47 // pred_region
          %347 = dma.done [#allocation4], 512
        $region52: #{tpu_custom_call.1} parent=47 // pred_fallthru
          _
        %s348 = sand.u32 %s23, 1
        %s349 = scalar_lea.sflag [#allocation7], %s348
        %s350 = sand.u32 %s95, 1
        %s351 = smul.addr %s350, 16
        %s352 = scalar_lea.vmem [#allocation6], %s351
        // Predicated region
        $region53: #{tpu_custom_call.1} parent=47 // pred_check
          %p353 = pneg %p108
        $region54: #{tpu_custom_call.1} parent=47 // pred_check_branch
          %355 = sbr.rel (%p353) target = $region56
        $region55: #{tpu_custom_call.1} parent=47 // pred_region
          %356 = dma.done %s349, 256
        $region56: #{tpu_custom_call.1} parent=47 // pred_fallthru
          _
        %s357 = sand.u32 %s23, 1
        %s358 = scalar_lea.sflag [#allocation7], %s357
        %s359 = sand.u32 %s121, 1
        %s360 = smul.addr %s359, 16
        %s361 = scalar_lea.vmem [#allocation8], %s360
        // Predicated region
        $region57: #{tpu_custom_call.1} parent=47 // pred_check
          %p362 = pneg %p134
        $region58: #{tpu_custom_call.1} parent=47 // pred_check_branch
          %364 = sbr.rel (%p362) target = $region60
        $region59: #{tpu_custom_call.1} parent=47 // pred_region
          %365 = dma.done %s358, 256
        $region60: #{tpu_custom_call.1} parent=47 // pred_fallthru
          _
        %p366 = pneg %p56
        %p367 = pneg %p53
        %p368 = scmp.lt.s32.totalorder %s28, 1
        %s369 = scalar_select %p368, %s28, 1
        %s370 = smul.addr %s369, 12
        %s371 = smul.addr %s370, 4
        %s372 = scalar_lea.vmem %s1, %s371
        %p373 = pneg %p82
        %p374 = pneg %p79
        %s375 = sand.u32 %s23, 1
        %s376 = scalar_lea.sflag [#allocation7], %s375
        %s377 = sand.u32 %s95, 1
        %s378 = smul.addr %s377, 16
        %s379 = scalar_lea.vmem [#allocation6], %s378
        %p380 = pneg %p108
        %p381 = pneg %p105
        %s382 = sand.u32 %s23, 1
        %s383 = scalar_lea.sflag [#allocation7], %s382
        %s384 = sand.u32 %s121, 1
        %s385 = smul.addr %s384, 16
        %s386 = scalar_lea.vmem [#allocation8], %s385
        %p387 = pneg %p134
        %p388 = pneg %p131
        %p389 = scmp.lt.s32.totalorder %s28, 1
        %s390 = scalar_select %p389, %s28, 1
        %s391 = smul.addr %s390, 8
        %s392 = smul.addr %s391, 4
        %s393 = scalar_lea.vmem %s4, %s392
        %p394 = pneg %p160
        %p395 = pneg %p157
        %p396 = scmp.lt.s32.totalorder %s28, 1
        %s397 = scalar_select %p396, %s28, 1
        %s398 = smul.addr %s397, 2
        %s399 = smul.addr %s398, 8
        %s400 = scalar_lea.vmem %s5, %s399
        %p401 = pneg %p186
        %p402 = pneg %p183
        %p403 = pneg %p207
        %p404 = pneg %p204
        %p405 = pneg %p233
        %p406 = pneg %p230
        %s407 = smul.u32 4, %s27
        %p408 = scmp.lt.s32.totalorder %s28, 1
        %s409 = scalar_select %p408, %s28, 1
        %s410 = smul.addr %s409, 12
        %s411 = smul.addr %s410, 4
        %s412 = scalar_lea.vmem %s1, %s411
        %p413 = scmp.lt.s32.totalorder %s28, 1
        %s414 = scalar_select %p413, %s28, 1
        %s415 = smul.addr %s414, 8
        %s416 = smul.addr %s415, 4
        %s417 = scalar_lea.vmem %s4, %s416
        %p418 = scmp.lt.s32.totalorder %s28, 1
        %s419 = scalar_select %p418, %s28, 1
        %s420 = smul.addr %s419, 2
        %s421 = smul.addr %s420, 8
        %s422 = scalar_lea.vmem %s5, %s421
        %s423 = smul.u32 4, %s27
        %p425 = scmp.eq.s32.totalorder %s28, 0
        // Predicated region
        $region61: #{tpu_custom_call.1} parent=47 // pred_check
          %p426 = pneg %p425
        $region62: #{tpu_custom_call.1} parent=47 // pred_check_branch
          %428 = sbr.rel (%p426) target = $region64
        $region63: #{tpu_custom_call.1} parent=47 // pred_region
          %v429 = vld [vmem:[#allocation3] sm:$0xff]
          %v430 = vld [vmem:[#allocation3 + $0x8] sm:$0xff]
          %v431 = vld [vmem:[#allocation3 + $0x10] sm:$0xff]
          %v432 = vld [vmem:[#allocation3 + $0x18] sm:$0xff]
          %vm433 = vcmask 261120
          %434 = vst.msk [vmem:[#allocation2] sm:$0xff] %vm433, %v429
          %435 = vst.msk [vmem:[#allocation2 + $0x8] sm:$0xff] %vm433, %v430
          %436 = vst.msk [vmem:[#allocation2 + $0x10] sm:$0xff] %vm433, %v431
          %437 = vst.msk [vmem:[#allocation2 + $0x18] sm:$0xff] %vm433, %v432
        $region64: #{tpu_custom_call.1} parent=47 // pred_fallthru
          _
        %v438 = vld [vmem:[#allocation2] sm:$0xff]
        %v439 = vld [vmem:[#allocation2 + $0x8] sm:$0xff]
        %v440 = vld [vmem:[#allocation2 + $0x10] sm:$0xff]
        %v441 = vld [vmem:[#allocation2 + $0x18] sm:$0xff]
        %v442 = vpack.c.bf16 %v439, %v438
        %v443 = vpack.c.bf16 %v441, %v440
        %v444 = vld [vmem:[%s422] sm:$0x1]
        %v445 = vld [vmem:[%s422 + $0x1] sm:$0x1]
        %v446 = vld [vmem:[%s422 + $0x2] sm:$0x1]
        %v447 = vld [vmem:[%s422 + $0x3] sm:$0x1]
        %v448 = vld [vmem:[%s422 + $0x4] sm:$0x1]
        %v449 = vld [vmem:[%s422 + $0x5] sm:$0x1]
        %v450 = vld [vmem:[%s422 + $0x6] sm:$0x1]
        %v451 = vld [vmem:[%s422 + $0x7] sm:$0x1]
        %v452 = vld [vmem:[%s422 + $0x8] sm:$0x1]
        %v453 = vld [vmem:[%s422 + $0x9] sm:$0x1]
        %v454 = vld [vmem:[%s412] sm:$0xf]
        %v455 = vld [vmem:[%s412 + $0x4] sm:$0xf]
        %v456 = vld [vmem:[%s412 + $0x8] sm:$0xf]
        %v457 = vld [vmem:[%s412 + $0xc] sm:$0xf]
        %v458 = vlaneseq
        %v459 = vshrl.u32 %v458, 7
        %v460 = vsub.s32 0, %v459
        %v461 = vrot.slane %v444, %v460
        %v466 = vunpack.c.l.b16 %v454
        %v467 = vunpack.c.l.b16 %v455
        %v468 = vunpack.c.l.b16 %v456
        %v469 = vunpack.c.l.b16 %v457
        %v470 = vpack.c.b16 %v467, %v466
        %v471 = vpack.c.b16 %v469, %v468
        %vm474 = vcmask 261120
        %v476 = vsel %vm474, %v442, 0
        %v479 = vsel %vm474, %v443, 0
        %481 = vmatprep.subr.bf16.mxu0 0
        %482 = vmatpush1.bf16.msra.mxu0 %v470
        %483 = vmatprep.subr.bf16.mxu0 0
        %484 = vmatpush1.bf16.msra.mxu0 %v471
        %485 = vmatprep.subr.bf16.mxu0 0
        %486 = vmatpush1.bf16.msra.mxu0 0
        %487 = vmatprep.subr.bf16.mxu0 0
        %488 = vmatpush1.bf16.msra.mxu0 0
        %489 = vmatprep.subr.bf16.mxu0 0
        %490 = vmatpush1.bf16.msra.mxu0 0
        %491 = vmatprep.subr.bf16.mxu0 0
        %492 = vmatpush1.bf16.msra.mxu0 0
        %493 = vmatprep.subr.bf16.mxu0 0
        %494 = vmatpush1.bf16.msra.mxu0 0
        %495 = vmatprep.subr.bf16.mxu0 0
        %496 = vmatpush1.bf16.msra.mxu0 0
        %497 = vmatprep.subr.bf16.mxu0 0
        %498 = vmatpush1.bf16.msra.mxu0 0
        %499 = vmatprep.subr.bf16.mxu0 0
        %500 = vmatpush1.bf16.msra.mxu0 0
        %501 = vmatprep.subr.bf16.mxu0 0
        %502 = vmatpush1.bf16.msra.mxu0 0
        %503 = vmatprep.subr.bf16.mxu0 0
        %504 = vmatpush1.bf16.msra.mxu0 0
        %505 = vmatprep.subr.bf16.mxu0 0
        %506 = vmatpush1.bf16.msra.mxu0 0
        %507 = vmatprep.subr.bf16.mxu0 0
        %508 = vmatpush1.bf16.msra.mxu0 0
        %509 = vmatprep.subr.bf16.mxu0 0
        %510 = vmatpush1.bf16.msra.mxu0 0
        %511 = vmatprep.subr.bf16.mxu0 0
        %512 = vmatpush1.bf16.msra.mxu0 0
        %513 = vmatprep.mubr.bf16.mxu0 0
        %514 = vmatmul.mubr.bf16.gmra.mrb[0].mxu0 %v476
        %v515 = vpop.f32.mrb[0].mxu0
        %v516 = vadd.f32 %v461, %v515
        %v517 = vpop.f32.mrb[0].mxu0
        %v518 = vpop.f32.mrb[0].mxu0
        %v519 = vadd.f32 %v461, %v518
        %v520 = vpop.f32.mrb[0].mxu0
        %521 = vmatprep.mubr.bf16.mxu0 0
        %522 = vmatmul.mubr.bf16.gmra.mrb[0].mxu0 %v479
        %v523 = vpop.f32.mrb[0].mxu0
        %v524 = vadd.f32 %v461, %v523
        %v525 = vpop.f32.mrb[0].mxu0
        %v526 = vpop.f32.mrb[0].mxu0
        %v527 = vadd.f32 %v461, %v526
        %v528 = vpop.f32.mrb[0].mxu0
        %529 = vdwg.mxu0
        %s530 = scalar_lea.vmem %s412, 16
        %v531 = vld [vmem:[%s530] sm:$0xf]
        %v532 = vld [vmem:[%s530 + $0x4] sm:$0xf]
        %v533 = vld [vmem:[%s530 + $0x8] sm:$0xf]
        %v534 = vld [vmem:[%s530 + $0xc] sm:$0xf]
        %v535 = vlaneseq
        %v536 = vshrl.u32 %v535, 7
        %v537 = vsub.s32 0, %v536
        %v538 = vrot.slane %v445, %v537
        %v543 = vunpack.c.l.b16 %v531
        %v544 = vunpack.c.l.b16 %v532
        %v545 = vunpack.c.l.b16 %v533
        %v546 = vunpack.c.l.b16 %v534
        %v547 = vpack.c.b16 %v544, %v543
        %v548 = vpack.c.b16 %v546, %v545
        %551 = vmatprep.subr.bf16.mxu0 0
        %552 = vmatpush1.bf16.msra.mxu0 %v547
        %553 = vmatprep.subr.bf16.mxu0 0
        %554 = vmatpush1.bf16.msra.mxu0 %v548
        %555 = vmatprep.subr.bf16.mxu0 0
        %556 = vmatpush1.bf16.msra.mxu0 0
        %557 = vmatprep.subr.bf16.mxu0 0
        %558 = vmatpush1.bf16.msra.mxu0 0
        %559 = vmatprep.subr.bf16.mxu0 0
        %560 = vmatpush1.bf16.msra.mxu0 0
        %561 = vmatprep.subr.bf16.mxu0 0
        %562 = vmatpush1.bf16.msra.mxu0 0
        %563 = vmatprep.subr.bf16.mxu0 0
        %564 = vmatpush1.bf16.msra.mxu0 0
        %565 = vmatprep.subr.bf16.mxu0 0
        %566 = vmatpush1.bf16.msra.mxu0 0
        %567 = vmatprep.subr.bf16.mxu0 0
        %568 = vmatpush1.bf16.msra.mxu0 0
        %569 = vmatprep.subr.bf16.mxu0 0
        %570 = vmatpush1.bf16.msra.mxu0 0
        %571 = vmatprep.subr.bf16.mxu0 0
        %572 = vmatpush1.bf16.msra.mxu0 0
        %573 = vmatprep.subr.bf16.mxu0 0
        %574 = vmatpush1.bf16.msra.mxu0 0
        %575 = vmatprep.subr.bf16.mxu0 0
        %576 = vmatpush1.bf16.msra.mxu0 0
        %577 = vmatprep.subr.bf16.mxu0 0
        %578 = vmatpush1.bf16.msra.mxu0 0
        %579 = vmatprep.subr.bf16.mxu0 0
        %580 = vmatpush1.bf16.msra.mxu0 0
        %581 = vmatprep.subr.bf16.mxu0 0
        %582 = vmatpush1.bf16.msra.mxu0 0
        %583 = vmatprep.mubr.bf16.mxu0 0
        %584 = vmatmul.mubr.bf16.gmra.mrb[0].mxu0 %v476
        %v585 = vpop.f32.mrb[0].mxu0
        %v586 = vadd.f32 %v538, %v585
        %v587 = vpop.f32.mrb[0].mxu0
        %v588 = vpop.f32.mrb[0].mxu0
        %v589 = vadd.f32 %v538, %v588
        %v590 = vpop.f32.mrb[0].mxu0
        %591 = vmatprep.mubr.bf16.mxu0 0
        %592 = vmatmul.mubr.bf16.gmra.mrb[0].mxu0 %v479
        %v593 = vpop.f32.mrb[0].mxu0
        %v594 = vadd.f32 %v538, %v593
        %v595 = vpop.f32.mrb[0].mxu0
        %v596 = vpop.f32.mrb[0].mxu0
        %v597 = vadd.f32 %v538, %v596
        %v598 = vpop.f32.mrb[0].mxu0
        %599 = vdwg.mxu0
        %s600 = scalar_lea.vmem %s412, 32
        %v601 = vld [vmem:[%s600] sm:$0xf]
        %v602 = vld [vmem:[%s600 + $0x4] sm:$0xf]
        %v603 = vld [vmem:[%s600 + $0x8] sm:$0xf]
        %v604 = vld [vmem:[%s600 + $0xc] sm:$0xf]
        %v605 = vlaneseq
        %v606 = vshrl.u32 %v605, 7
        %v607 = vsub.s32 0, %v606
        %v608 = vrot.slane %v446, %v607
        %v613 = vunpack.c.l.b16 %v601
        %v614 = vunpack.c.l.b16 %v602
        %v615 = vunpack.c.l.b16 %v603
        %v616 = vunpack.c.l.b16 %v604
        %v617 = vpack.c.b16 %v614, %v613
        %v618 = vpack.c.b16 %v616, %v615
        %621 = vmatprep.subr.bf16.mxu0 0
        %622 = vmatpush1.bf16.msra.mxu0 %v617
        %623 = vmatprep.subr.bf16.mxu0 0
        %624 = vmatpush1.bf16.msra.mxu0 %v618
        %625 = vmatprep.subr.bf16.mxu0 0
        %626 = vmatpush1.bf16.msra.mxu0 0
        %627 = vmatprep.subr.bf16.mxu0 0
        %628 = vmatpush1.bf16.msra.mxu0 0
        %629 = vmatprep.subr.bf16.mxu0 0
        %630 = vmatpush1.bf16.msra.mxu0 0
        %631 = vmatprep.subr.bf16.mxu0 0
        %632 = vmatpush1.bf16.msra.mxu0 0
        %633 = vmatprep.subr.bf16.mxu0 0
        %634 = vmatpush1.bf16.msra.mxu0 0
        %635 = vmatprep.subr.bf16.mxu0 0
        %636 = vmatpush1.bf16.msra.mxu0 0
        %637 = vmatprep.subr.bf16.mxu0 0
        %638 = vmatpush1.bf16.msra.mxu0 0
        %639 = vmatprep.subr.bf16.mxu0 0
        %640 = vmatpush1.bf16.msra.mxu0 0
        %641 = vmatprep.subr.bf16.mxu0 0
        %642 = vmatpush1.bf16.msra.mxu0 0
        %643 = vmatprep.subr.bf16.mxu0 0
        %644 = vmatpush1.bf16.msra.mxu0 0
        %645 = vmatprep.subr.bf16.mxu0 0
        %646 = vmatpush1.bf16.msra.mxu0 0
        %647 = vmatprep.subr.bf16.mxu0 0
        %648 = vmatpush1.bf16.msra.mxu0 0
        %649 = vmatprep.subr.bf16.mxu0 0
        %650 = vmatpush1.bf16.msra.mxu0 0
        %651 = vmatprep.subr.bf16.mxu0 0
        %652 = vmatpush1.bf16.msra.mxu0 0
        %653 = vmatprep.mubr.bf16.mxu0 0
        %654 = vmatmul.mubr.bf16.gmra.mrb[0].mxu0 %v476
        %v655 = vpop.f32.mrb[0].mxu0
        %v656 = vadd.f32 %v608, %v655
        %v657 = vpop.f32.mrb[0].mxu0
        %v658 = vpop.f32.mrb[0].mxu0
        %v659 = vadd.f32 %v608, %v658
        %v660 = vpop.f32.mrb[0].mxu0
        %661 = vmatprep.mubr.bf16.mxu0 0
        %662 = vmatmul.mubr.bf16.gmra.mrb[0].mxu0 %v479
        %v663 = vpop.f32.mrb[0].mxu0
        %v664 = vadd.f32 %v608, %v663
        %v665 = vpop.f32.mrb[0].mxu0
        %v666 = vpop.f32.mrb[0].mxu0
        %v667 = vadd.f32 %v608, %v666
        %v668 = vpop.f32.mrb[0].mxu0
        %669 = vdwg.mxu0
        %672 = vrot.lane.b32.xlu0 %v516, 120
        %v673 = vpop.permute.xlu0 %672
        %674 = vrot.lane.b32.xlu0 %v519, 120
        %v675 = vpop.permute.xlu0 %674
        %678 = vrot.lane.b32.xlu0 %v516, 112
        %v679 = vpop.permute.xlu0 %678
        %680 = vrot.lane.b32.xlu0 %v519, 112
        %v681 = vpop.permute.xlu0 %680
        %684 = vrot.lane.b32.xlu0 %v516, 104
        %v685 = vpop.permute.xlu0 %684
        %686 = vrot.lane.b32.xlu0 %v519, 104
        %v687 = vpop.permute.xlu0 %686
        %v690 = vcombine.low %v516, %v679
        %v691 = vcombine.high %v516, %v679
        %v693 = vunpack.c.l.s4 1983009808
        %v694 = vunpack.c.0.s8 %v693
        %v695 = vlaneseq
        %v696 = vshrl.u32 %v695, 7
        %v697 = vsub.s32 %v694, %v696
        %v698 = vrot.slane %v690, %v697
        %v700 = vunpack.c.l.s4 1983009808
        %v701 = vunpack.c.0.s8 %v700
        %v702 = vlaneseq
        %v703 = vshrl.u32 %v702, 7
        %v704 = vsub.s32 %v701, %v703
        %v705 = vrot.slane %v691, %v704
        %v706 = vcombine.low %v673, %v685
        %v707 = vcombine.high %v673, %v685
        %v709 = vunpack.c.l.s4 1983009808
        %v710 = vunpack.c.0.s8 %v709
        %v711 = vlaneseq
        %v712 = vshrl.u32 %v711, 7
        %v713 = vsub.s32 %v710, %v712
        %v714 = vrot.slane %v706, %v713
        %v716 = vunpack.c.l.s4 1983009808
        %v717 = vunpack.c.0.s8 %v716
        %v718 = vlaneseq
        %v719 = vshrl.u32 %v718, 7
        %v720 = vsub.s32 %v717, %v719
        %v721 = vrot.slane %v707, %v720
        %v722 = vcombine.low %v698, %v714
        %v723 = vcombine.high %v698, %v714
        %v725 = vunpack.c.l.s4 1934713408
        %v726 = vunpack.c.0.s8 %v725
        %v727 = vlaneseq
        %v728 = vshrl.u32 %v727, 7
        %v729 = vsub.s32 %v726, %v728
        %v730 = vrot.slane %v722, %v729
        %v732 = vunpack.c.l.s4 1934713408
        %v733 = vunpack.c.0.s8 %v732
        %v734 = vlaneseq
        %v735 = vshrl.u32 %v734, 7
        %v736 = vsub.s32 %v733, %v735
        %v737 = vrot.slane %v723, %v736
        %v738 = vcombine.low %v705, %v721
        %v739 = vcombine.high %v705, %v721
        %v741 = vunpack.c.l.s4 1934713408
        %v742 = vunpack.c.0.s8 %v741
        %v743 = vlaneseq
        %v744 = vshrl.u32 %v743, 7
        %v745 = vsub.s32 %v742, %v744
        %v746 = vrot.slane %v738, %v745
        %v748 = vunpack.c.l.s4 1934713408
        %v749 = vunpack.c.0.s8 %v748
        %v750 = vlaneseq
        %v751 = vshrl.u32 %v750, 7
        %v752 = vsub.s32 %v749, %v751
        %v753 = vrot.slane %v739, %v752
        %v754 = vcombine.high %v730, 0.0
        %v755 = vcombine.high %v737, 0.0
        %v756 = vcombine.high %v746, 0.0
        %v757 = vcombine.high %v753, 0.0
        %v758 = vcombine.low %v519, %v681
        %v759 = vcombine.high %v519, %v681
        %v761 = vunpack.c.l.s4 1983009808
        %v762 = vunpack.c.0.s8 %v761
        %v763 = vlaneseq
        %v764 = vshrl.u32 %v763, 7
        %v765 = vsub.s32 %v762, %v764
        %v766 = vrot.slane %v758, %v765
        %v768 = vunpack.c.l.s4 1983009808
        %v769 = vunpack.c.0.s8 %v768
        %v770 = vlaneseq
        %v771 = vshrl.u32 %v770, 7
        %v772 = vsub.s32 %v769, %v771
        %v773 = vrot.slane %v759, %v772
        %v774 = vcombine.low %v675, %v687
        %v775 = vcombine.high %v675, %v687
        %v777 = vunpack.c.l.s4 1983009808
        %v778 = vunpack.c.0.s8 %v777
        %v779 = vlaneseq
        %v780 = vshrl.u32 %v779, 7
        %v781 = vsub.s32 %v778, %v780
        %v782 = vrot.slane %v774, %v781
        %v784 = vunpack.c.l.s4 1983009808
        %v785 = vunpack.c.0.s8 %v784
        %v786 = vlaneseq
        %v787 = vshrl.u32 %v786, 7
        %v788 = vsub.s32 %v785, %v787
        %v789 = vrot.slane %v775, %v788
        %v790 = vcombine.low %v766, %v782
        %v791 = vcombine.high %v766, %v782
        %v793 = vunpack.c.l.s4 1934713408
        %v794 = vunpack.c.0.s8 %v793
        %v795 = vlaneseq
        %v796 = vshrl.u32 %v795, 7
        %v797 = vsub.s32 %v794, %v796
        %v798 = vrot.slane %v790, %v797
        %v800 = vunpack.c.l.s4 1934713408
        %v801 = vunpack.c.0.s8 %v800
        %v802 = vlaneseq
        %v803 = vshrl.u32 %v802, 7
        %v804 = vsub.s32 %v801, %v803
        %v805 = vrot.slane %v791, %v804
        %v806 = vcombine.low %v773, %v789
        %v807 = vcombine.high %v773, %v789
        %v809 = vunpack.c.l.s4 1934713408
        %v810 = vunpack.c.0.s8 %v809
        %v811 = vlaneseq
        %v812 = vshrl.u32 %v811, 7
        %v813 = vsub.s32 %v810, %v812
        %v814 = vrot.slane %v806, %v813
        %v816 = vunpack.c.l.s4 1934713408
        %v817 = vunpack.c.0.s8 %v816
        %v818 = vlaneseq
        %v819 = vshrl.u32 %v818, 7
        %v820 = vsub.s32 %v817, %v819
        %v821 = vrot.slane %v807, %v820
        %v822 = vcombine.high %v798, 0.0
        %v823 = vcombine.high %v805, 0.0
        %v824 = vcombine.high %v814, 0.0
        %v825 = vcombine.high %v821, 0.0
        %v826 = vcombine.low %v730, %v737
        %v828 = vunpack.c.l.s4 1983009808
        %v829 = vunpack.c.0.s8 %v828
        %v830 = vlaneseq
        %v831 = vshrl.u32 %v830, 7
        %v832 = vsub.s32 %v829, %v831
        %v833 = vrot.slane %v826, %v832
        %v834 = vcombine.low %v754, %v755
        %v836 = vunpack.c.l.s4 1983009808
        %v837 = vunpack.c.0.s8 %v836
        %v838 = vlaneseq
        %v839 = vshrl.u32 %v838, 7
        %v840 = vsub.s32 %v837, %v839
        %v841 = vrot.slane %v834, %v840
        %v842 = vcombine.low %v746, %v753
        %v844 = vunpack.c.l.s4 1983009808
        %v845 = vunpack.c.0.s8 %v844
        %v846 = vlaneseq
        %v847 = vshrl.u32 %v846, 7
        %v848 = vsub.s32 %v845, %v847
        %v849 = vrot.slane %v842, %v848
        %v850 = vcombine.low %v756, %v757
        %v852 = vunpack.c.l.s4 1983009808
        %v853 = vunpack.c.0.s8 %v852
        %v854 = vlaneseq
        %v855 = vshrl.u32 %v854, 7
        %v856 = vsub.s32 %v853, %v855
        %v857 = vrot.slane %v850, %v856
        %v858 = vcombine.low %v833, %v841
        %v859 = vcombine.high %v833, %v841
        %v861 = vunpack.c.l.s4 1934713408
        %v862 = vunpack.c.0.s8 %v861
        %v863 = vlaneseq
        %v864 = vshrl.u32 %v863, 7
        %v865 = vsub.s32 %v862, %v864
        %v866 = vrot.slane %v858, %v865
        %v868 = vunpack.c.l.s4 1934713408
        %v869 = vunpack.c.0.s8 %v868
        %v870 = vlaneseq
        %v871 = vshrl.u32 %v870, 7
        %v872 = vsub.s32 %v869, %v871
        %v873 = vrot.slane %v859, %v872
        %v874 = vcombine.low %v849, %v857
        %v875 = vcombine.high %v849, %v857
        %v877 = vunpack.c.l.s4 1934713408
        %v878 = vunpack.c.0.s8 %v877
        %v879 = vlaneseq
        %v880 = vshrl.u32 %v879, 7
        %v881 = vsub.s32 %v878, %v880
        %v882 = vrot.slane %v874, %v881
        %v884 = vunpack.c.l.s4 1934713408
        %v885 = vunpack.c.0.s8 %v884
        %v886 = vlaneseq
        %v887 = vshrl.u32 %v886, 7
        %v888 = vsub.s32 %v885, %v887
        %v889 = vrot.slane %v875, %v888
        %v890 = vcombine.low %v866, %v882
        %v891 = vcombine.high %v866, %v882
        %v892 = vcombine.low %v873, %v889
        %v893 = vcombine.high %v873, %v889
        %v894 = vcombine.low %v798, %v805
        %v896 = vunpack.c.l.s4 1983009808
        %v897 = vunpack.c.0.s8 %v896
        %v898 = vlaneseq
        %v899 = vshrl.u32 %v898, 7
        %v900 = vsub.s32 %v897, %v899
        %v901 = vrot.slane %v894, %v900
        %v902 = vcombine.low %v822, %v823
        %v904 = vunpack.c.l.s4 1983009808
        %v905 = vunpack.c.0.s8 %v904
        %v906 = vlaneseq
        %v907 = vshrl.u32 %v906, 7
        %v908 = vsub.s32 %v905, %v907
        %v909 = vrot.slane %v902, %v908
        %v910 = vcombine.low %v814, %v821
        %v912 = vunpack.c.l.s4 1983009808
        %v913 = vunpack.c.0.s8 %v912
        %v914 = vlaneseq
        %v915 = vshrl.u32 %v914, 7
        %v916 = vsub.s32 %v913, %v915
        %v917 = vrot.slane %v910, %v916
        %v918 = vcombine.low %v824, %v825
        %v920 = vunpack.c.l.s4 1983009808
        %v921 = vunpack.c.0.s8 %v920
        %v922 = vlaneseq
        %v923 = vshrl.u32 %v922, 7
        %v924 = vsub.s32 %v921, %v923
        %v925 = vrot.slane %v918, %v924
        %v926 = vcombine.low %v901, %v909
        %v927 = vcombine.high %v901, %v909
        %v929 = vunpack.c.l.s4 1934713408
        %v930 = vunpack.c.0.s8 %v929
        %v931 = vlaneseq
        %v932 = vshrl.u32 %v931, 7
        %v933 = vsub.s32 %v930, %v932
        %v934 = vrot.slane %v926, %v933
        %v936 = vunpack.c.l.s4 1934713408
        %v937 = vunpack.c.0.s8 %v936
        %v938 = vlaneseq
        %v939 = vshrl.u32 %v938, 7
        %v940 = vsub.s32 %v937, %v939
        %v941 = vrot.slane %v927, %v940
        %v942 = vcombine.low %v917, %v925
        %v943 = vcombine.high %v917, %v925
        %v945 = vunpack.c.l.s4 1934713408
        %v946 = vunpack.c.0.s8 %v945
        %v947 = vlaneseq
        %v948 = vshrl.u32 %v947, 7
        %v949 = vsub.s32 %v946, %v948
        %v950 = vrot.slane %v942, %v949
        %v952 = vunpack.c.l.s4 1934713408
        %v953 = vunpack.c.0.s8 %v952
        %v954 = vlaneseq
        %v955 = vshrl.u32 %v954, 7
        %v956 = vsub.s32 %v953, %v955
        %v957 = vrot.slane %v943, %v956
        %v958 = vcombine.low %v934, %v950
        %v959 = vcombine.high %v934, %v950
        %v960 = vcombine.low %v941, %v957
        %v961 = vcombine.high %v941, %v957
        %964 = vrot.lane.b32.xlu0 %v586, 120
        %v965 = vpop.permute.xlu0 %964
        %966 = vrot.lane.b32.xlu0 %v589, 120
        %v967 = vpop.permute.xlu0 %966
        %970 = vrot.lane.b32.xlu0 %v586, 112
        %v971 = vpop.permute.xlu0 %970
        %972 = vrot.lane.b32.xlu0 %v589, 112
        %v973 = vpop.permute.xlu0 %972
        %976 = vrot.lane.b32.xlu0 %v586, 104
        %v977 = vpop.permute.xlu0 %976
        %978 = vrot.lane.b32.xlu0 %v589, 104
        %v979 = vpop.permute.xlu0 %978
        %v982 = vcombine.low %v586, %v971
        %v983 = vcombine.high %v586, %v971
        %v985 = vunpack.c.l.s4 1983009808
        %v986 = vunpack.c.0.s8 %v985
        %v987 = vlaneseq
        %v988 = vshrl.u32 %v987, 7
        %v989 = vsub.s32 %v986, %v988
        %v990 = vrot.slane %v982, %v989
        %v992 = vunpack.c.l.s4 1983009808
        %v993 = vunpack.c.0.s8 %v992
        %v994 = vlaneseq
        %v995 = vshrl.u32 %v994, 7
        %v996 = vsub.s32 %v993, %v995
        %v997 = vrot.slane %v983, %v996
        %v998 = vcombine.low %v965, %v977
        %v999 = vcombine.high %v965, %v977
        %v1001 = vunpack.c.l.s4 1983009808
        %v1002 = vunpack.c.0.s8 %v1001
        %v1003 = vlaneseq
        %v1004 = vshrl.u32 %v1003, 7
        %v1005 = vsub.s32 %v1002, %v1004
        %v1006 = vrot.slane %v998, %v1005
        %v1008 = vunpack.c.l.s4 1983009808
        %v1009 = vunpack.c.0.s8 %v1008
        %v1010 = vlaneseq
        %v1011 = vshrl.u32 %v1010, 7
        %v1012 = vsub.s32 %v1009, %v1011
        %v1013 = vrot.slane %v999, %v1012
        %v1014 = vcombine.low %v990, %v1006
        %v1015 = vcombine.high %v990, %v1006
        %v1017 = vunpack.c.l.s4 1934713408
        %v1018 = vunpack.c.0.s8 %v1017
        %v1019 = vlaneseq
        %v1020 = vshrl.u32 %v1019, 7
        %v1021 = vsub.s32 %v1018, %v1020
        %v1022 = vrot.slane %v1014, %v1021
        %v1024 = vunpack.c.l.s4 1934713408
        %v1025 = vunpack.c.0.s8 %v1024
        %v1026 = vlaneseq
        %v1027 = vshrl.u32 %v1026, 7
        %v1028 = vsub.s32 %v1025, %v1027
        %v1029 = vrot.slane %v1015, %v1028
        %v1030 = vcombine.low %v997, %v1013
        %v1031 = vcombine.high %v997, %v1013
        %v1033 = vunpack.c.l.s4 1934713408
        %v1034 = vunpack.c.0.s8 %v1033
        %v1035 = vlaneseq
        %v1036 = vshrl.u32 %v1035, 7
        %v1037 = vsub.s32 %v1034, %v1036
        %v1038 = vrot.slane %v1030, %v1037
        %v1040 = vunpack.c.l.s4 1934713408
        %v1041 = vunpack.c.0.s8 %v1040
        %v1042 = vlaneseq
        %v1043 = vshrl.u32 %v1042, 7
        %v1044 = vsub.s32 %v1041, %v1043
        %v1045 = vrot.slane %v1031, %v1044
        %v1046 = vcombine.high %v1022, 0.0
        %v1047 = vcombine.high %v1029, 0.0
        %v1048 = vcombine.high %v1038, 0.0
        %v1049 = vcombine.high %v1045, 0.0
        %v1050 = vcombine.low %v589, %v973
        %v1051 = vcombine.high %v589, %v973
        %v1053 = vunpack.c.l.s4 1983009808
        %v1054 = vunpack.c.0.s8 %v1053
        %v1055 = vlaneseq
        %v1056 = vshrl.u32 %v1055, 7
        %v1057 = vsub.s32 %v1054, %v1056
        %v1058 = vrot.slane %v1050, %v1057
        %v1060 = vunpack.c.l.s4 1983009808
        %v1061 = vunpack.c.0.s8 %v1060
        %v1062 = vlaneseq
        %v1063 = vshrl.u32 %v1062, 7
        %v1064 = vsub.s32 %v1061, %v1063
        %v1065 = vrot.slane %v1051, %v1064
        %v1066 = vcombine.low %v967, %v979
        %v1067 = vcombine.high %v967, %v979
        %v1069 = vunpack.c.l.s4 1983009808
        %v1070 = vunpack.c.0.s8 %v1069
        %v1071 = vlaneseq
        %v1072 = vshrl.u32 %v1071, 7
        %v1073 = vsub.s32 %v1070, %v1072
        %v1074 = vrot.slane %v1066, %v1073
        %v1076 = vunpack.c.l.s4 1983009808
        %v1077 = vunpack.c.0.s8 %v1076
        %v1078 = vlaneseq
        %v1079 = vshrl.u32 %v1078, 7
        %v1080 = vsub.s32 %v1077, %v1079
        %v1081 = vrot.slane %v1067, %v1080
        %v1082 = vcombine.low %v1058, %v1074
        %v1083 = vcombine.high %v1058, %v1074
        %v1085 = vunpack.c.l.s4 1934713408
        %v1086 = vunpack.c.0.s8 %v1085
        %v1087 = vlaneseq
        %v1088 = vshrl.u32 %v1087, 7
        %v1089 = vsub.s32 %v1086, %v1088
        %v1090 = vrot.slane %v1082, %v1089
        %v1092 = vunpack.c.l.s4 1934713408
        %v1093 = vunpack.c.0.s8 %v1092
        %v1094 = vlaneseq
        %v1095 = vshrl.u32 %v1094, 7
        %v1096 = vsub.s32 %v1093, %v1095
        %v1097 = vrot.slane %v1083, %v1096
        %v1098 = vcombine.low %v1065, %v1081
        %v1099 = vcombine.high %v1065, %v1081
        %v1101 = vunpack.c.l.s4 1934713408
        %v1102 = vunpack.c.0.s8 %v1101
        %v1103 = vlaneseq
        %v1104 = vshrl.u32 %v1103, 7
        %v1105 = vsub.s32 %v1102, %v1104
        %v1106 = vrot.slane %v1098, %v1105
        %v1108 = vunpack.c.l.s4 1934713408
        %v1109 = vunpack.c.0.s8 %v1108
        %v1110 = vlaneseq
        %v1111 = vshrl.u32 %v1110, 7
        %v1112 = vsub.s32 %v1109, %v1111
        %v1113 = vrot.slane %v1099, %v1112
        %v1114 = vcombine.high %v1090, 0.0
        %v1115 = vcombine.high %v1097, 0.0
        %v1116 = vcombine.high %v1106, 0.0
        %v1117 = vcombine.high %v1113, 0.0
        %v1118 = vcombine.low %v1022, %v1029
        %v1120 = vunpack.c.l.s4 1983009808
        %v1121 = vunpack.c.0.s8 %v1120
        %v1122 = vlaneseq
        %v1123 = vshrl.u32 %v1122, 7
        %v1124 = vsub.s32 %v1121, %v1123
        %v1125 = vrot.slane %v1118, %v1124
        %v1126 = vcombine.low %v1046, %v1047
        %v1128 = vunpack.c.l.s4 1983009808
        %v1129 = vunpack.c.0.s8 %v1128
        %v1130 = vlaneseq
        %v1131 = vshrl.u32 %v1130, 7
        %v1132 = vsub.s32 %v1129, %v1131
        %v1133 = vrot.slane %v1126, %v1132
        %v1134 = vcombine.low %v1038, %v1045
        %v1136 = vunpack.c.l.s4 1983009808
        %v1137 = vunpack.c.0.s8 %v1136
        %v1138 = vlaneseq
        %v1139 = vshrl.u32 %v1138, 7
        %v1140 = vsub.s32 %v1137, %v1139
        %v1141 = vrot.slane %v1134, %v1140
        %v1142 = vcombine.low %v1048, %v1049
        %v1144 = vunpack.c.l.s4 1983009808
        %v1145 = vunpack.c.0.s8 %v1144
        %v1146 = vlaneseq
        %v1147 = vshrl.u32 %v1146, 7
        %v1148 = vsub.s32 %v1145, %v1147
        %v1149 = vrot.slane %v1142, %v1148
        %v1150 = vcombine.low %v1125, %v1133
        %v1151 = vcombine.high %v1125, %v1133
        %v1153 = vunpack.c.l.s4 1934713408
        %v1154 = vunpack.c.0.s8 %v1153
        %v1155 = vlaneseq
        %v1156 = vshrl.u32 %v1155, 7
        %v1157 = vsub.s32 %v1154, %v1156
        %v1158 = vrot.slane %v1150, %v1157
        %v1160 = vunpack.c.l.s4 1934713408
        %v1161 = vunpack.c.0.s8 %v1160
        %v1162 = vlaneseq
        %v1163 = vshrl.u32 %v1162, 7
        %v1164 = vsub.s32 %v1161, %v1163
        %v1165 = vrot.slane %v1151, %v1164
        %v1166 = vcombine.low %v1141, %v1149
        %v1167 = vcombine.high %v1141, %v1149
        %v1169 = vunpack.c.l.s4 1934713408
        %v1170 = vunpack.c.0.s8 %v1169
        %v1171 = vlaneseq
        %v1172 = vshrl.u32 %v1171, 7
        %v1173 = vsub.s32 %v1170, %v1172
        %v1174 = vrot.slane %v1166, %v1173
        %v1176 = vunpack.c.l.s4 1934713408
        %v1177 = vunpack.c.0.s8 %v1176
        %v1178 = vlaneseq
        %v1179 = vshrl.u32 %v1178, 7
        %v1180 = vsub.s32 %v1177, %v1179
        %v1181 = vrot.slane %v1167, %v1180
        %v1182 = vcombine.low %v1158, %v1174
        %v1183 = vcombine.high %v1158, %v1174
        %v1184 = vcombine.low %v1165, %v1181
        %v1185 = vcombine.high %v1165, %v1181
        %v1186 = vcombine.low %v1090, %v1097
        %v1188 = vunpack.c.l.s4 1983009808
        %v1189 = vunpack.c.0.s8 %v1188
        %v1190 = vlaneseq
        %v1191 = vshrl.u32 %v1190, 7
        %v1192 = vsub.s32 %v1189, %v1191
        %v1193 = vrot.slane %v1186, %v1192
        %v1194 = vcombine.low %v1114, %v1115
        %v1196 = vunpack.c.l.s4 1983009808
        %v1197 = vunpack.c.0.s8 %v1196
        %v1198 = vlaneseq
        %v1199 = vshrl.u32 %v1198, 7
        %v1200 = vsub.s32 %v1197, %v1199
        %v1201 = vrot.slane %v1194, %v1200
        %v1202 = vcombine.low %v1106, %v1113
        %v1204 = vunpack.c.l.s4 1983009808
        %v1205 = vunpack.c.0.s8 %v1204
        %v1206 = vlaneseq
        %v1207 = vshrl.u32 %v1206, 7
        %v1208 = vsub.s32 %v1205, %v1207
        %v1209 = vrot.slane %v1202, %v1208
        %v1210 = vcombine.low %v1116, %v1117
        %v1212 = vunpack.c.l.s4 1983009808
        %v1213 = vunpack.c.0.s8 %v1212
        %v1214 = vlaneseq
        %v1215 = vshrl.u32 %v1214, 7
        %v1216 = vsub.s32 %v1213, %v1215
        %v1217 = vrot.slane %v1210, %v1216
        %v1218 = vcombine.low %v1193, %v1201
        %v1219 = vcombine.high %v1193, %v1201
        %v1221 = vunpack.c.l.s4 1934713408
        %v1222 = vunpack.c.0.s8 %v1221
        %v1223 = vlaneseq
        %v1224 = vshrl.u32 %v1223, 7
        %v1225 = vsub.s32 %v1222, %v1224
        %v1226 = vrot.slane %v1218, %v1225
        %v1228 = vunpack.c.l.s4 1934713408
        %v1229 = vunpack.c.0.s8 %v1228
        %v1230 = vlaneseq
        %v1231 = vshrl.u32 %v1230, 7
        %v1232 = vsub.s32 %v1229, %v1231
        %v1233 = vrot.slane %v1219, %v1232
        %v1234 = vcombine.low %v1209, %v1217
        %v1235 = vcombine.high %v1209, %v1217
        %v1237 = vunpack.c.l.s4 1934713408
        %v1238 = vunpack.c.0.s8 %v1237
        %v1239 = vlaneseq
        %v1240 = vshrl.u32 %v1239, 7
        %v1241 = vsub.s32 %v1238, %v1240
        %v1242 = vrot.slane %v1234, %v1241
        %v1244 = vunpack.c.l.s4 1934713408
        %v1245 = vunpack.c.0.s8 %v1244
        %v1246 = vlaneseq
        %v1247 = vshrl.u32 %v1246, 7
        %v1248 = vsub.s32 %v1245, %v1247
        %v1249 = vrot.slane %v1235, %v1248
        %v1250 = vcombine.low %v1226, %v1242
        %v1251 = vcombine.high %v1226, %v1242
        %v1252 = vcombine.low %v1233, %v1249
        %v1253 = vcombine.high %v1233, %v1249
        %1256 = vrot.lane.b32.xlu0 %v656, 120
        %v1257 = vpop.permute.xlu0 %1256
        %1258 = vrot.lane.b32.xlu0 %v659, 120
        %v1259 = vpop.permute.xlu0 %1258
        %1262 = vrot.lane.b32.xlu0 %v656, 112
        %v1263 = vpop.permute.xlu0 %1262
        %1264 = vrot.lane.b32.xlu0 %v659, 112
        %v1265 = vpop.permute.xlu0 %1264
        %1268 = vrot.lane.b32.xlu0 %v656, 104
        %v1269 = vpop.permute.xlu0 %1268
        %1270 = vrot.lane.b32.xlu0 %v659, 104
        %v1271 = vpop.permute.xlu0 %1270
        %v1274 = vcombine.low %v656, %v1263
        %v1275 = vcombine.high %v656, %v1263
        %v1277 = vunpack.c.l.s4 1983009808
        %v1278 = vunpack.c.0.s8 %v1277
        %v1279 = vlaneseq
        %v1280 = vshrl.u32 %v1279, 7
        %v1281 = vsub.s32 %v1278, %v1280
        %v1282 = vrot.slane %v1274, %v1281
        %v1284 = vunpack.c.l.s4 1983009808
        %v1285 = vunpack.c.0.s8 %v1284
        %v1286 = vlaneseq
        %v1287 = vshrl.u32 %v1286, 7
        %v1288 = vsub.s32 %v1285, %v1287
        %v1289 = vrot.slane %v1275, %v1288
        %v1290 = vcombine.low %v1257, %v1269
        %v1291 = vcombine.high %v1257, %v1269
        %v1293 = vunpack.c.l.s4 1983009808
        %v1294 = vunpack.c.0.s8 %v1293
        %v1295 = vlaneseq
        %v1296 = vshrl.u32 %v1295, 7
        %v1297 = vsub.s32 %v1294, %v1296
        %v1298 = vrot.slane %v1290, %v1297
        %v1300 = vunpack.c.l.s4 1983009808
        %v1301 = vunpack.c.0.s8 %v1300
        %v1302 = vlaneseq
        %v1303 = vshrl.u32 %v1302, 7
        %v1304 = vsub.s32 %v1301, %v1303
        %v1305 = vrot.slane %v1291, %v1304
        %v1306 = vcombine.low %v1282, %v1298
        %v1307 = vcombine.high %v1282, %v1298
        %v1309 = vunpack.c.l.s4 1934713408
        %v1310 = vunpack.c.0.s8 %v1309
        %v1311 = vlaneseq
        %v1312 = vshrl.u32 %v1311, 7
        %v1313 = vsub.s32 %v1310, %v1312
        %v1314 = vrot.slane %v1306, %v1313
        %v1316 = vunpack.c.l.s4 1934713408
        %v1317 = vunpack.c.0.s8 %v1316
        %v1318 = vlaneseq
        %v1319 = vshrl.u32 %v1318, 7
        %v1320 = vsub.s32 %v1317, %v1319
        %v1321 = vrot.slane %v1307, %v1320
        %v1322 = vcombine.low %v1289, %v1305
        %v1323 = vcombine.high %v1289, %v1305
        %v1325 = vunpack.c.l.s4 1934713408
        %v1326 = vunpack.c.0.s8 %v1325
        %v1327 = vlaneseq
        %v1328 = vshrl.u32 %v1327, 7
        %v1329 = vsub.s32 %v1326, %v1328
        %v1330 = vrot.slane %v1322, %v1329
        %v1332 = vunpack.c.l.s4 1934713408
        %v1333 = vunpack.c.0.s8 %v1332
        %v1334 = vlaneseq
        %v1335 = vshrl.u32 %v1334, 7
        %v1336 = vsub.s32 %v1333, %v1335
        %v1337 = vrot.slane %v1323, %v1336
        %v1338 = vcombine.high %v1314, 0.0
        %v1339 = vcombine.high %v1321, 0.0
        %v1340 = vcombine.high %v1330, 0.0
        %v1341 = vcombine.high %v1337, 0.0
        %v1342 = vcombine.low %v659, %v1265
        %v1343 = vcombine.high %v659, %v1265
        %v1345 = vunpack.c.l.s4 1983009808
        %v1346 = vunpack.c.0.s8 %v1345
        %v1347 = vlaneseq
        %v1348 = vshrl.u32 %v1347, 7
        %v1349 = vsub.s32 %v1346, %v1348
        %v1350 = vrot.slane %v1342, %v1349
        %v1352 = vunpack.c.l.s4 1983009808
        %v1353 = vunpack.c.0.s8 %v1352
        %v1354 = vlaneseq
        %v1355 = vshrl.u32 %v1354, 7
        %v1356 = vsub.s32 %v1353, %v1355
        %v1357 = vrot.slane %v1343, %v1356
        %v1358 = vcombine.low %v1259, %v1271
        %v1359 = vcombine.high %v1259, %v1271
        %v1361 = vunpack.c.l.s4 1983009808
        %v1362 = vunpack.c.0.s8 %v1361
        %v1363 = vlaneseq
        %v1364 = vshrl.u32 %v1363, 7
        %v1365 = vsub.s32 %v1362, %v1364
        %v1366 = vrot.slane %v1358, %v1365
        %v1368 = vunpack.c.l.s4 1983009808
        %v1369 = vunpack.c.0.s8 %v1368
        %v1370 = vlaneseq
        %v1371 = vshrl.u32 %v1370, 7
        %v1372 = vsub.s32 %v1369, %v1371
        %v1373 = vrot.slane %v1359, %v1372
        %v1374 = vcombine.low %v1350, %v1366
        %v1375 = vcombine.high %v1350, %v1366
        %v1377 = vunpack.c.l.s4 1934713408
        %v1378 = vunpack.c.0.s8 %v1377
        %v1379 = vlaneseq
        %v1380 = vshrl.u32 %v1379, 7
        %v1381 = vsub.s32 %v1378, %v1380
        %v1382 = vrot.slane %v1374, %v1381
        %v1384 = vunpack.c.l.s4 1934713408
        %v1385 = vunpack.c.0.s8 %v1384
        %v1386 = vlaneseq
        %v1387 = vshrl.u32 %v1386, 7
        %v1388 = vsub.s32 %v1385, %v1387
        %v1389 = vrot.slane %v1375, %v1388
        %v1390 = vcombine.low %v1357, %v1373
        %v1391 = vcombine.high %v1357, %v1373
        %v1393 = vunpack.c.l.s4 1934713408
        %v1394 = vunpack.c.0.s8 %v1393
        %v1395 = vlaneseq
        %v1396 = vshrl.u32 %v1395, 7
        %v1397 = vsub.s32 %v1394, %v1396
        %v1398 = vrot.slane %v1390, %v1397
        %v1400 = vunpack.c.l.s4 1934713408
        %v1401 = vunpack.c.0.s8 %v1400
        %v1402 = vlaneseq
        %v1403 = vshrl.u32 %v1402, 7
        %v1404 = vsub.s32 %v1401, %v1403
        %v1405 = vrot.slane %v1391, %v1404
        %v1406 = vcombine.high %v1382, 0.0
        %v1407 = vcombine.high %v1389, 0.0
        %v1408 = vcombine.high %v1398, 0.0
        %v1409 = vcombine.high %v1405, 0.0
        %v1410 = vcombine.low %v1314, %v1321
        %v1412 = vunpack.c.l.s4 1983009808
        %v1413 = vunpack.c.0.s8 %v1412
        %v1414 = vlaneseq
        %v1415 = vshrl.u32 %v1414, 7
        %v1416 = vsub.s32 %v1413, %v1415
        %v1417 = vrot.slane %v1410, %v1416
        %v1418 = vcombine.low %v1338, %v1339
        %v1420 = vunpack.c.l.s4 1983009808
        %v1421 = vunpack.c.0.s8 %v1420
        %v1422 = vlaneseq
        %v1423 = vshrl.u32 %v1422, 7
        %v1424 = vsub.s32 %v1421, %v1423
        %v1425 = vrot.slane %v1418, %v1424
        %v1426 = vcombine.low %v1330, %v1337
        %v1428 = vunpack.c.l.s4 1983009808
        %v1429 = vunpack.c.0.s8 %v1428
        %v1430 = vlaneseq
        %v1431 = vshrl.u32 %v1430, 7
        %v1432 = vsub.s32 %v1429, %v1431
        %v1433 = vrot.slane %v1426, %v1432
        %v1434 = vcombine.low %v1340, %v1341
        %v1436 = vunpack.c.l.s4 1983009808
        %v1437 = vunpack.c.0.s8 %v1436
        %v1438 = vlaneseq
        %v1439 = vshrl.u32 %v1438, 7
        %v1440 = vsub.s32 %v1437, %v1439
        %v1441 = vrot.slane %v1434, %v1440
        %v1442 = vcombine.low %v1417, %v1425
        %v1443 = vcombine.high %v1417, %v1425
        %v1445 = vunpack.c.l.s4 1934713408
        %v1446 = vunpack.c.0.s8 %v1445
        %v1447 = vlaneseq
        %v1448 = vshrl.u32 %v1447, 7
        %v1449 = vsub.s32 %v1446, %v1448
        %v1450 = vrot.slane %v1442, %v1449
        %v1452 = vunpack.c.l.s4 1934713408
        %v1453 = vunpack.c.0.s8 %v1452
        %v1454 = vlaneseq
        %v1455 = vshrl.u32 %v1454, 7
        %v1456 = vsub.s32 %v1453, %v1455
        %v1457 = vrot.slane %v1443, %v1456
        %v1458 = vcombine.low %v1433, %v1441
        %v1459 = vcombine.high %v1433, %v1441
        %v1461 = vunpack.c.l.s4 1934713408
        %v1462 = vunpack.c.0.s8 %v1461
        %v1463 = vlaneseq
        %v1464 = vshrl.u32 %v1463, 7
        %v1465 = vsub.s32 %v1462, %v1464
        %v1466 = vrot.slane %v1458, %v1465
        %v1468 = vunpack.c.l.s4 1934713408
        %v1469 = vunpack.c.0.s8 %v1468
        %v1470 = vlaneseq
        %v1471 = vshrl.u32 %v1470, 7
        %v1472 = vsub.s32 %v1469, %v1471
        %v1473 = vrot.slane %v1459, %v1472
        %v1474 = vcombine.low %v1450, %v1466
        %v1475 = vcombine.high %v1450, %v1466
        %v1476 = vcombine.low %v1457, %v1473
        %v1477 = vcombine.high %v1457, %v1473
        %v1478 = vcombine.low %v1382, %v1389
        %v1480 = vunpack.c.l.s4 1983009808
        %v1481 = vunpack.c.0.s8 %v1480
        %v1482 = vlaneseq
        %v1483 = vshrl.u32 %v1482, 7
        %v1484 = vsub.s32 %v1481, %v1483
        %v1485 = vrot.slane %v1478, %v1484
        %v1486 = vcombine.low %v1406, %v1407
        %v1488 = vunpack.c.l.s4 1983009808
        %v1489 = vunpack.c.0.s8 %v1488
        %v1490 = vlaneseq
        %v1491 = vshrl.u32 %v1490, 7
        %v1492 = vsub.s32 %v1489, %v1491
        %v1493 = vrot.slane %v1486, %v1492
        %v1494 = vcombine.low %v1398, %v1405
        %v1496 = vunpack.c.l.s4 1983009808
        %v1497 = vunpack.c.0.s8 %v1496
        %v1498 = vlaneseq
        %v1499 = vshrl.u32 %v1498, 7
        %v1500 = vsub.s32 %v1497, %v1499
        %v1501 = vrot.slane %v1494, %v1500
        %v1502 = vcombine.low %v1408, %v1409
        %v1504 = vunpack.c.l.s4 1983009808
        %v1505 = vunpack.c.0.s8 %v1504
        %v1506 = vlaneseq
        %v1507 = vshrl.u32 %v1506, 7
        %v1508 = vsub.s32 %v1505, %v1507
        %v1509 = vrot.slane %v1502, %v1508
        %v1510 = vcombine.low %v1485, %v1493
        %v1511 = vcombine.high %v1485, %v1493
        %v1513 = vunpack.c.l.s4 1934713408
        %v1514 = vunpack.c.0.s8 %v1513
        %v1515 = vlaneseq
        %v1516 = vshrl.u32 %v1515, 7
        %v1517 = vsub.s32 %v1514, %v1516
        %v1518 = vrot.slane %v1510, %v1517
        %v1520 = vunpack.c.l.s4 1934713408
        %v1521 = vunpack.c.0.s8 %v1520
        %v1522 = vlaneseq
        %v1523 = vshrl.u32 %v1522, 7
        %v1524 = vsub.s32 %v1521, %v1523
        %v1525 = vrot.slane %v1511, %v1524
        %v1526 = vcombine.low %v1501, %v1509
        %v1527 = vcombine.high %v1501, %v1509
        %v1529 = vunpack.c.l.s4 1934713408
        %v1530 = vunpack.c.0.s8 %v1529
        %v1531 = vlaneseq
        %v1532 = vshrl.u32 %v1531, 7
        %v1533 = vsub.s32 %v1530, %v1532
        %v1534 = vrot.slane %v1526, %v1533
        %v1536 = vunpack.c.l.s4 1934713408
        %v1537 = vunpack.c.0.s8 %v1536
        %v1538 = vlaneseq
        %v1539 = vshrl.u32 %v1538, 7
        %v1540 = vsub.s32 %v1537, %v1539
        %v1541 = vrot.slane %v1527, %v1540
        %v1542 = vcombine.low %v1518, %v1534
        %v1543 = vcombine.high %v1518, %v1534
        %v1544 = vcombine.low %v1525, %v1541
        %v1545 = vcombine.high %v1525, %v1541
        %v1546 = vpack.c.bf16 %v958, %v890
        %v1547 = vpack.c.bf16 %v959, %v891
        %v1548 = vpack.c.bf16 %v960, %v892
        %v1549 = vpack.c.bf16 %v961, %v893
        %v1550 = vpack.c.bf16 %v1250, %v1182
        %v1551 = vpack.c.bf16 %v1251, %v1183
        %v1552 = vpack.c.bf16 %v1252, %v1184
        %v1553 = vpack.c.bf16 %v1253, %v1185
        %vm1554 = vcmask 64512
        %v1556 = vsel %vm1554, %v1546, 0
        %v1559 = vsel %vm1554, %v1550, 0
        %1561 = vmatprep.subr.bf16.mxu0 0
        %1562 = vmatpush1.bf16.xpose.msra.mxu0 %v1559
        %1563 = vmatprep.subr.bf16.mxu0 0
        %1564 = vmatpush1.bf16.xpose.msra.mxu0 0
        %1565 = vmatprep.subr.bf16.mxu0 0
        %1566 = vmatpush1.bf16.xpose.msra.mxu0 0
        %1567 = vmatprep.subr.bf16.mxu0 0
        %1568 = vmatpush1.bf16.xpose.msra.mxu0 0
        %1569 = vmatprep.subr.bf16.mxu0 0
        %1570 = vmatpush1.bf16.xpose.msra.mxu0 0
        %1571 = vmatprep.subr.bf16.mxu0 0
        %1572 = vmatpush1.bf16.xpose.msra.mxu0 0
        %1573 = vmatprep.subr.bf16.mxu0 0
        %1574 = vmatpush1.bf16.xpose.msra.mxu0 0
        %1575 = vmatprep.subr.bf16.mxu0 0
        %1576 = vmatpush1.bf16.xpose.msra.mxu0 0
        %1577 = vmatprep.subr.bf16.mxu0 0
        %1578 = vmatpush1.bf16.xpose.msra.mxu0 0
        %1579 = vmatprep.subr.bf16.mxu0 0
        %1580 = vmatpush1.bf16.xpose.msra.mxu0 0
        %1581 = vmatprep.subr.bf16.mxu0 0
        %1582 = vmatpush1.bf16.xpose.msra.mxu0 0
        %1583 = vmatprep.subr.bf16.mxu0 0
        %1584 = vmatpush1.bf16.xpose.msra.mxu0 0
        %1585 = vmatprep.subr.bf16.mxu0 0
        %1586 = vmatpush1.bf16.xpose.msra.mxu0 0
        %1587 = vmatprep.subr.bf16.mxu0 0
        %1588 = vmatpush1.bf16.xpose.msra.mxu0 0
        %1589 = vmatprep.subr.bf16.mxu0 0
        %1590 = vmatpush1.bf16.xpose.msra.mxu0 0
        %1591 = vmatprep.subr.bf16.mxu0 0
        %1592 = vmatpush1.bf16.xpose.msra.mxu0 0
        %1593 = vmatprep.mubr.bf16.mxu0 0
        %1594 = vmatmul.mubr.bf16.gmra.mrb[0].mxu0 %v1556
        %v1595 = vpop.f32.mrb[0].mxu0
        %v1596 = vadd.f32 0.0, %v1595
        %v1597 = vpop.f32.mrb[0].mxu0
        %v1598 = vpop.f32.mrb[0].mxu0
        %v1599 = vadd.f32 0.0, %v1598
        %v1600 = vpop.f32.mrb[0].mxu0
        %1601 = vdwg.mxu0
        %v1603 = vsel %vm1554, %v1547, 0
        %v1606 = vsel %vm1554, %v1551, 0
        %1608 = vmatprep.subr.bf16.mxu0 0
        %1609 = vmatpush1.bf16.xpose.msra.mxu0 %v1606
        %1610 = vmatprep.subr.bf16.mxu0 0
        %1611 = vmatpush1.bf16.xpose.msra.mxu0 0
        %1612 = vmatprep.subr.bf16.mxu0 0
        %1613 = vmatpush1.bf16.xpose.msra.mxu0 0
        %1614 = vmatprep.subr.bf16.mxu0 0
        %1615 = vmatpush1.bf16.xpose.msra.mxu0 0
        %1616 = vmatprep.subr.bf16.mxu0 0
        %1617 = vmatpush1.bf16.xpose.msra.mxu0 0
        %1618 = vmatprep.subr.bf16.mxu0 0
        %1619 = vmatpush1.bf16.xpose.msra.mxu0 0
        %1620 = vmatprep.subr.bf16.mxu0 0
        %1621 = vmatpush1.bf16.xpose.msra.mxu0 0
        %1622 = vmatprep.subr.bf16.mxu0 0
        %1623 = vmatpush1.bf16.xpose.msra.mxu0 0
        %1624 = vmatprep.subr.bf16.mxu0 0
        %1625 = vmatpush1.bf16.xpose.msra.mxu0 0
        %1626 = vmatprep.subr.bf16.mxu0 0
        %1627 = vmatpush1.bf16.xpose.msra.mxu0 0
        %1628 = vmatprep.subr.bf16.mxu0 0
        %1629 = vmatpush1.bf16.xpose.msra.mxu0 0
        %1630 = vmatprep.subr.bf16.mxu0 0
        %1631 = vmatpush1.bf16.xpose.msra.mxu0 0
        %1632 = vmatprep.subr.bf16.mxu0 0
        %1633 = vmatpush1.bf16.xpose.msra.mxu0 0
        %1634 = vmatprep.subr.bf16.mxu0 0
        %1635 = vmatpush1.bf16.xpose.msra.mxu0 0
        %1636 = vmatprep.subr.bf16.mxu0 0
        %1637 = vmatpush1.bf16.xpose.msra.mxu0 0
        %1638 = vmatprep.subr.bf16.mxu0 0
        %1639 = vmatpush1.bf16.xpose.msra.mxu0 0
        %1640 = vmatprep.mubr.bf16.mxu0 0
        %1641 = vmatmul.mubr.bf16.gmra.mrb[0].mxu0 %v1603
        %v1642 = vpop.f32.mrb[0].mxu0
        %v1643 = vadd.f32 0.0, %v1642
        %v1644 = vpop.f32.mrb[0].mxu0
        %v1645 = vpop.f32.mrb[0].mxu0
        %v1646 = vadd.f32 0.0, %v1645
        %v1647 = vpop.f32.mrb[0].mxu0
        %1648 = vdwg.mxu0
        %v1650 = vsel %vm1554, %v1548, 0
        %v1653 = vsel %vm1554, %v1552, 0
        %1655 = vmatprep.subr.bf16.mxu0 0
        %1656 = vmatpush1.bf16.xpose.msra.mxu0 %v1653
        %1657 = vmatprep.subr.bf16.mxu0 0
        %1658 = vmatpush1.bf16.xpose.msra.mxu0 0
        %1659 = vmatprep.subr.bf16.mxu0 0
        %1660 = vmatpush1.bf16.xpose.msra.mxu0 0
        %1661 = vmatprep.subr.bf16.mxu0 0
        %1662 = vmatpush1.bf16.xpose.msra.mxu0 0
        %1663 = vmatprep.subr.bf16.mxu0 0
        %1664 = vmatpush1.bf16.xpose.msra.mxu0 0
        %1665 = vmatprep.subr.bf16.mxu0 0
        %1666 = vmatpush1.bf16.xpose.msra.mxu0 0
        %1667 = vmatprep.subr.bf16.mxu0 0
        %1668 = vmatpush1.bf16.xpose.msra.mxu0 0
        %1669 = vmatprep.subr.bf16.mxu0 0
        %1670 = vmatpush1.bf16.xpose.msra.mxu0 0
        %1671 = vmatprep.subr.bf16.mxu0 0
        %1672 = vmatpush1.bf16.xpose.msra.mxu0 0
        %1673 = vmatprep.subr.bf16.mxu0 0
        %1674 = vmatpush1.bf16.xpose.msra.mxu0 0
        %1675 = vmatprep.subr.bf16.mxu0 0
        %1676 = vmatpush1.bf16.xpose.msra.mxu0 0
        %1677 = vmatprep.subr.bf16.mxu0 0
        %1678 = vmatpush1.bf16.xpose.msra.mxu0 0
        %1679 = vmatprep.subr.bf16.mxu0 0
        %1680 = vmatpush1.bf16.xpose.msra.mxu0 0
        %1681 = vmatprep.subr.bf16.mxu0 0
        %1682 = vmatpush1.bf16.xpose.msra.mxu0 0
        %1683 = vmatprep.subr.bf16.mxu0 0
        %1684 = vmatpush1.bf16.xpose.msra.mxu0 0
        %1685 = vmatprep.subr.bf16.mxu0 0
        %1686 = vmatpush1.bf16.xpose.msra.mxu0 0
        %1687 = vmatprep.mubr.bf16.mxu0 0
        %1688 = vmatmul.mubr.bf16.gmra.mrb[0].mxu0 %v1650
        %v1689 = vpop.f32.mrb[0].mxu0
        %v1690 = vadd.f32 0.0, %v1689
        %v1691 = vpop.f32.mrb[0].mxu0
        %v1692 = vpop.f32.mrb[0].mxu0
        %v1693 = vadd.f32 0.0, %v1692
        %v1694 = vpop.f32.mrb[0].mxu0
        %1695 = vdwg.mxu0
        %v1697 = vsel %vm1554, %v1549, 0
        %v1700 = vsel %vm1554, %v1553, 0
        %1702 = vmatprep.subr.bf16.mxu0 0
        %1703 = vmatpush1.bf16.xpose.msra.mxu0 %v1700
        %1704 = vmatprep.subr.bf16.mxu0 0
        %1705 = vmatpush1.bf16.xpose.msra.mxu0 0
        %1706 = vmatprep.subr.bf16.mxu0 0
        %1707 = vmatpush1.bf16.xpose.msra.mxu0 0
        %1708 = vmatprep.subr.bf16.mxu0 0
        %1709 = vmatpush1.bf16.xpose.msra.mxu0 0
        %1710 = vmatprep.subr.bf16.mxu0 0
        %1711 = vmatpush1.bf16.xpose.msra.mxu0 0
        %1712 = vmatprep.subr.bf16.mxu0 0
        %1713 = vmatpush1.bf16.xpose.msra.mxu0 0
        %1714 = vmatprep.subr.bf16.mxu0 0
        %1715 = vmatpush1.bf16.xpose.msra.mxu0 0
        %1716 = vmatprep.subr.bf16.mxu0 0
        %1717 = vmatpush1.bf16.xpose.msra.mxu0 0
        %1718 = vmatprep.subr.bf16.mxu0 0
        %1719 = vmatpush1.bf16.xpose.msra.mxu0 0
        %1720 = vmatprep.subr.bf16.mxu0 0
        %1721 = vmatpush1.bf16.xpose.msra.mxu0 0
        %1722 = vmatprep.subr.bf16.mxu0 0
        %1723 = vmatpush1.bf16.xpose.msra.mxu0 0
        %1724 = vmatprep.subr.bf16.mxu0 0
        %1725 = vmatpush1.bf16.xpose.msra.mxu0 0
        %1726 = vmatprep.subr.bf16.mxu0 0
        %1727 = vmatpush1.bf16.xpose.msra.mxu0 0
        %1728 = vmatprep.subr.bf16.mxu0 0
        %1729 = vmatpush1.bf16.xpose.msra.mxu0 0
        %1730 = vmatprep.subr.bf16.mxu0 0
        %1731 = vmatpush1.bf16.xpose.msra.mxu0 0
        %1732 = vmatprep.subr.bf16.mxu0 0
        %1733 = vmatpush1.bf16.xpose.msra.mxu0 0
        %1734 = vmatprep.mubr.bf16.mxu0 0
        %1735 = vmatmul.mubr.bf16.gmra.mrb[0].mxu0 %v1697
        %v1736 = vpop.f32.mrb[0].mxu0
        %v1737 = vadd.f32 0.0, %v1736
        %v1738 = vpop.f32.mrb[0].mxu0
        %v1739 = vpop.f32.mrb[0].mxu0
        %v1740 = vadd.f32 0.0, %v1739
        %v1741 = vpop.f32.mrb[0].mxu0
        %1742 = vdwg.mxu0
        %vm1743 = vcmask 130048
        %v1744 = vsel %vm1743, %v1596, -inf
        %1745 = vmax.xlane.f32.xlu0 %v1744
        %v1746 = vpop.xlane.xlu0 %1745
        %v1747 = vsel %vm1743, %v1599, -inf
        %1748 = vmax.xlane.f32.xlu0 %v1747
        %v1749 = vpop.xlane.xlu0 %1748
        %v1750 = vsel %vm1743, %v1643, -inf
        %1751 = vmax.xlane.f32.xlu0 %v1750
        %v1752 = vpop.xlane.xlu0 %1751
        %v1753 = vsel %vm1743, %v1646, -inf
        %1754 = vmax.xlane.f32.xlu0 %v1753
        %v1755 = vpop.xlane.xlu0 %1754
        %v1756 = vsel %vm1743, %v1690, -inf
        %1757 = vmax.xlane.f32.xlu0 %v1756
        %v1758 = vpop.xlane.xlu0 %1757
        %v1759 = vsel %vm1743, %v1693, -inf
        %1760 = vmax.xlane.f32.xlu0 %v1759
        %v1761 = vpop.xlane.xlu0 %1760
        %v1762 = vsel %vm1743, %v1737, -inf
        %1763 = vmax.xlane.f32.xlu0 %v1762
        %v1764 = vpop.xlane.xlu0 %1763
        %v1765 = vsel %vm1743, %v1740, -inf
        %1766 = vmax.xlane.f32.xlu0 %v1765
        %v1767 = vpop.xlane.xlu0 %1766
        %v1768 = vsub.f32 %v1596, %v1746
        %v1769 = vsub.f32 %v1599, %v1749
        %v1770 = vsub.f32 %v1643, %v1752
        %v1771 = vsub.f32 %v1646, %v1755
        %v1772 = vsub.f32 %v1690, %v1758
        %v1773 = vsub.f32 %v1693, %v1761
        %v1774 = vsub.f32 %v1737, %v1764
        %v1775 = vsub.f32 %v1740, %v1767
        %v1776 = vmul.f32 %v1768, 1.442695
        %v1777 = vpow.pop %v1776
        %v1778 = vmul.f32 %v1769, 1.442695
        %v1779 = vpow.pop %v1778
        %v1780 = vmul.f32 %v1770, 1.442695
        %v1781 = vpow.pop %v1780
        %v1782 = vmul.f32 %v1771, 1.442695
        %v1783 = vpow.pop %v1782
        %v1784 = vmul.f32 %v1772, 1.442695
        %v1785 = vpow.pop %v1784
        %v1786 = vmul.f32 %v1773, 1.442695
        %v1787 = vpow.pop %v1786
        %v1788 = vmul.f32 %v1774, 1.442695
        %v1789 = vpow.pop %v1788
        %v1790 = vmul.f32 %v1775, 1.442695
        %v1791 = vpow.pop %v1790
        %v1792 = vsel %vm1743, %v1777, 0.0
        %1793 = vadd.xlane.f32.xlu0 %v1792
        %v1794 = vpop.xlane.xlu0 %1793
        %v1795 = vsel %vm1743, %v1779, 0.0
        %1796 = vadd.xlane.f32.xlu0 %v1795
        %v1797 = vpop.xlane.xlu0 %1796
        %v1798 = vsel %vm1743, %v1781, 0.0
        %1799 = vadd.xlane.f32.xlu0 %v1798
        %v1800 = vpop.xlane.xlu0 %1799
        %v1801 = vsel %vm1743, %v1783, 0.0
        %1802 = vadd.xlane.f32.xlu0 %v1801
        %v1803 = vpop.xlane.xlu0 %1802
        %v1804 = vsel %vm1743, %v1785, 0.0
        %1805 = vadd.xlane.f32.xlu0 %v1804
        %v1806 = vpop.xlane.xlu0 %1805
        %v1807 = vsel %vm1743, %v1787, 0.0
        %1808 = vadd.xlane.f32.xlu0 %v1807
        %v1809 = vpop.xlane.xlu0 %1808
        %v1810 = vsel %vm1743, %v1789, 0.0
        %1811 = vadd.xlane.f32.xlu0 %v1810
        %v1812 = vpop.xlane.xlu0 %1811
        %v1813 = vsel %vm1743, %v1791, 0.0
        %1814 = vadd.xlane.f32.xlu0 %v1813
        %v1815 = vpop.xlane.xlu0 %1814
        %v1816 = vrcp.pop %v1794
        %v1817 = vrcp.pop %v1797
        %v1818 = vrcp.pop %v1800
        %v1819 = vrcp.pop %v1803
        %v1820 = vrcp.pop %v1806
        %v1821 = vrcp.pop %v1809
        %v1822 = vrcp.pop %v1812
        %v1823 = vrcp.pop %v1815
        %v1824 = vmul.f32 %v1777, %v1816
        %v1825 = vmul.f32 %v1779, %v1817
        %v1826 = vmul.f32 %v1781, %v1818
        %v1827 = vmul.f32 %v1783, %v1819
        %v1828 = vmul.f32 %v1785, %v1820
        %v1829 = vmul.f32 %v1787, %v1821
        %v1830 = vmul.f32 %v1789, %v1822
        %v1831 = vmul.f32 %v1791, %v1823
        %v1832 = vpack.c.bf16 %v1825, %v1824
        %v1833 = vpack.c.bf16 %v1827, %v1826
        %v1834 = vpack.c.bf16 %v1829, %v1828
        %v1835 = vpack.c.bf16 %v1831, %v1830
        %v1836 = vpack.c.bf16 %v1542, %v1474
        %v1837 = vpack.c.bf16 %v1543, %v1475
        %v1838 = vpack.c.bf16 %v1544, %v1476
        %v1839 = vpack.c.bf16 %v1545, %v1477
        %1840 = vxpose.xlu0.c.b16.start [1/8] %v1836, 128
        %1841 = vxpose.xlu0.c.b16.cont [2/8] 0, 128
        %1842 = vxpose.xlu0.c.b16.cont [3/8] 0, 128
        %1843 = vxpose.xlu0.c.b16.cont [4/8] 0, 128
        %1844 = vxpose.xlu0.c.b16.cont [5/8] 0, 128
        %1845 = vxpose.xlu0.c.b16.cont [6/8] 0, 128
        %1846 = vxpose.xlu0.c.b16.cont [7/8] 0, 128
        %1847 = vxpose.xlu0.c.b16.end [8/8] 0, 128
        %v1848 = vpop.trf.xlu0
        %v1849 = vpop.trf.xlu0
        %v1850 = vpop.trf.xlu0
        %v1851 = vpop.trf.xlu0
        %v1852 = vpop.trf.xlu0
        %v1853 = vpop.trf.xlu0
        %v1854 = vpop.trf.xlu0
        %v1855 = vpop.trf.xlu0
        %v1857 = vsel %vm1743, %v1848, 0
        %v1860 = vsel %vm1743, %v1832, 0
        %1862 = vmatprep.subr.bf16.mxu0 0
        %1863 = vmatpush1.bf16.xpose.msra.mxu0 %v1860
        %1864 = vmatprep.subr.bf16.mxu0 0
        %1865 = vmatpush1.bf16.xpose.msra.mxu0 0
        %1866 = vmatprep.subr.bf16.mxu0 0
        %1867 = vmatpush1.bf16.xpose.msra.mxu0 0
        %1868 = vmatprep.subr.bf16.mxu0 0
        %1869 = vmatpush1.bf16.xpose.msra.mxu0 0
        %1870 = vmatprep.subr.bf16.mxu0 0
        %1871 = vmatpush1.bf16.xpose.msra.mxu0 0
        %1872 = vmatprep.subr.bf16.mxu0 0
        %1873 = vmatpush1.bf16.xpose.msra.mxu0 0
        %1874 = vmatprep.subr.bf16.mxu0 0
        %1875 = vmatpush1.bf16.xpose.msra.mxu0 0
        %1876 = vmatprep.subr.bf16.mxu0 0
        %1877 = vmatpush1.bf16.xpose.msra.mxu0 0
        %1878 = vmatprep.subr.bf16.mxu0 0
        %1879 = vmatpush1.bf16.xpose.msra.mxu0 0
        %1880 = vmatprep.subr.bf16.mxu0 0
        %1881 = vmatpush1.bf16.xpose.msra.mxu0 0
        %1882 = vmatprep.subr.bf16.mxu0 0
        %1883 = vmatpush1.bf16.xpose.msra.mxu0 0
        %1884 = vmatprep.subr.bf16.mxu0 0
        %1885 = vmatpush1.bf16.xpose.msra.mxu0 0
        %1886 = vmatprep.subr.bf16.mxu0 0
        %1887 = vmatpush1.bf16.xpose.msra.mxu0 0
        %1888 = vmatprep.subr.bf16.mxu0 0
        %1889 = vmatpush1.bf16.xpose.msra.mxu0 0
        %1890 = vmatprep.subr.bf16.mxu0 0
        %1891 = vmatpush1.bf16.xpose.msra.mxu0 0
        %1892 = vmatprep.subr.bf16.mxu0 0
        %1893 = vmatpush1.bf16.xpose.msra.mxu0 0
        %1894 = vmatprep.mubr.bf16.mxu0 0
        %1895 = vmatmul.mubr.bf16.gmra.mrb[0].mxu0 %v1857
        %v1896 = vpop.f32.mrb[0].mxu0
        %v1897 = vadd.f32 0.0, %v1896
        %v1898 = vpop.f32.mrb[0].mxu0
        %v1899 = vpop.f32.mrb[0].mxu0
        %v1900 = vpop.f32.mrb[0].mxu0
        %1901 = vdwg.mxu0
        %1902 = vxpose.xlu0.c.b16.start [1/8] %v1837, 128
        %1903 = vxpose.xlu0.c.b16.cont [2/8] 0, 128
        %1904 = vxpose.xlu0.c.b16.cont [3/8] 0, 128
        %1905 = vxpose.xlu0.c.b16.cont [4/8] 0, 128
        %1906 = vxpose.xlu0.c.b16.cont [5/8] 0, 128
        %1907 = vxpose.xlu0.c.b16.cont [6/8] 0, 128
        %1908 = vxpose.xlu0.c.b16.cont [7/8] 0, 128
        %1909 = vxpose.xlu0.c.b16.end [8/8] 0, 128
        %v1910 = vpop.trf.xlu0
        %v1911 = vpop.trf.xlu0
        %v1912 = vpop.trf.xlu0
        %v1913 = vpop.trf.xlu0
        %v1914 = vpop.trf.xlu0
        %v1915 = vpop.trf.xlu0
        %v1916 = vpop.trf.xlu0
        %v1917 = vpop.trf.xlu0
        %v1919 = vsel %vm1743, %v1910, 0
        %v1922 = vsel %vm1743, %v1833, 0
        %1924 = vmatprep.subr.bf16.mxu0 0
        %1925 = vmatpush1.bf16.xpose.msra.mxu0 %v1922
        %1926 = vmatprep.subr.bf16.mxu0 0
        %1927 = vmatpush1.bf16.xpose.msra.mxu0 0
        %1928 = vmatprep.subr.bf16.mxu0 0
        %1929 = vmatpush1.bf16.xpose.msra.mxu0 0
        %1930 = vmatprep.subr.bf16.mxu0 0
        %1931 = vmatpush1.bf16.xpose.msra.mxu0 0
        %1932 = vmatprep.subr.bf16.mxu0 0
        %1933 = vmatpush1.bf16.xpose.msra.mxu0 0
        %1934 = vmatprep.subr.bf16.mxu0 0
        %1935 = vmatpush1.bf16.xpose.msra.mxu0 0
        %1936 = vmatprep.subr.bf16.mxu0 0
        %1937 = vmatpush1.bf16.xpose.msra.mxu0 0
        %1938 = vmatprep.subr.bf16.mxu0 0
        %1939 = vmatpush1.bf16.xpose.msra.mxu0 0
        %1940 = vmatprep.subr.bf16.mxu0 0
        %1941 = vmatpush1.bf16.xpose.msra.mxu0 0
        %1942 = vmatprep.subr.bf16.mxu0 0
        %1943 = vmatpush1.bf16.xpose.msra.mxu0 0
        %1944 = vmatprep.subr.bf16.mxu0 0
        %1945 = vmatpush1.bf16.xpose.msra.mxu0 0
        %1946 = vmatprep.subr.bf16.mxu0 0
        %1947 = vmatpush1.bf16.xpose.msra.mxu0 0
        %1948 = vmatprep.subr.bf16.mxu0 0
        %1949 = vmatpush1.bf16.xpose.msra.mxu0 0
        %1950 = vmatprep.subr.bf16.mxu0 0
        %1951 = vmatpush1.bf16.xpose.msra.mxu0 0
        %1952 = vmatprep.subr.bf16.mxu0 0
        %1953 = vmatpush1.bf16.xpose.msra.mxu0 0
        %1954 = vmatprep.subr.bf16.mxu0 0
        %1955 = vmatpush1.bf16.xpose.msra.mxu0 0
        %1956 = vmatprep.mubr.bf16.mxu0 0
        %1957 = vmatmul.mubr.bf16.gmra.mrb[0].mxu0 %v1919
        %v1958 = vpop.f32.mrb[0].mxu0
        %v1959 = vadd.f32 0.0, %v1958
        %v1960 = vpop.f32.mrb[0].mxu0
        %v1961 = vpop.f32.mrb[0].mxu0
        %v1962 = vpop.f32.mrb[0].mxu0
        %1963 = vdwg.mxu0
        %1964 = vxpose.xlu0.c.b16.start [1/8] %v1838, 128
        %1965 = vxpose.xlu0.c.b16.cont [2/8] 0, 128
        %1966 = vxpose.xlu0.c.b16.cont [3/8] 0, 128
        %1967 = vxpose.xlu0.c.b16.cont [4/8] 0, 128
        %1968 = vxpose.xlu0.c.b16.cont [5/8] 0, 128
        %1969 = vxpose.xlu0.c.b16.cont [6/8] 0, 128
        %1970 = vxpose.xlu0.c.b16.cont [7/8] 0, 128
        %1971 = vxpose.xlu0.c.b16.end [8/8] 0, 128
        %v1972 = vpop.trf.xlu0
        %v1973 = vpop.trf.xlu0
        %v1974 = vpop.trf.xlu0
        %v1975 = vpop.trf.xlu0
        %v1976 = vpop.trf.xlu0
        %v1977 = vpop.trf.xlu0
        %v1978 = vpop.trf.xlu0
        %v1979 = vpop.trf.xlu0
        %v1981 = vsel %vm1743, %v1972, 0
        %v1984 = vsel %vm1743, %v1834, 0
        %1986 = vmatprep.subr.bf16.mxu0 0
        %1987 = vmatpush1.bf16.xpose.msra.mxu0 %v1984
        %1988 = vmatprep.subr.bf16.mxu0 0
        %1989 = vmatpush1.bf16.xpose.msra.mxu0 0
        %1990 = vmatprep.subr.bf16.mxu0 0
        %1991 = vmatpush1.bf16.xpose.msra.mxu0 0
        %1992 = vmatprep.subr.bf16.mxu0 0
        %1993 = vmatpush1.bf16.xpose.msra.mxu0 0
        %1994 = vmatprep.subr.bf16.mxu0 0
        %1995 = vmatpush1.bf16.xpose.msra.mxu0 0
        %1996 = vmatprep.subr.bf16.mxu0 0
        %1997 = vmatpush1.bf16.xpose.msra.mxu0 0
        %1998 = vmatprep.subr.bf16.mxu0 0
        %1999 = vmatpush1.bf16.xpose.msra.mxu0 0
        %2000 = vmatprep.subr.bf16.mxu0 0
        %2001 = vmatpush1.bf16.xpose.msra.mxu0 0
        %2002 = vmatprep.subr.bf16.mxu0 0
        %2003 = vmatpush1.bf16.xpose.msra.mxu0 0
        %2004 = vmatprep.subr.bf16.mxu0 0
        %2005 = vmatpush1.bf16.xpose.msra.mxu0 0
        %2006 = vmatprep.subr.bf16.mxu0 0
        %2007 = vmatpush1.bf16.xpose.msra.mxu0 0
        %2008 = vmatprep.subr.bf16.mxu0 0
        %2009 = vmatpush1.bf16.xpose.msra.mxu0 0
        %2010 = vmatprep.subr.bf16.mxu0 0
        %2011 = vmatpush1.bf16.xpose.msra.mxu0 0
        %2012 = vmatprep.subr.bf16.mxu0 0
        %2013 = vmatpush1.bf16.xpose.msra.mxu0 0
        %2014 = vmatprep.subr.bf16.mxu0 0
        %2015 = vmatpush1.bf16.xpose.msra.mxu0 0
        %2016 = vmatprep.subr.bf16.mxu0 0
        %2017 = vmatpush1.bf16.xpose.msra.mxu0 0
        %2018 = vmatprep.mubr.bf16.mxu0 0
        %2019 = vmatmul.mubr.bf16.gmra.mrb[0].mxu0 %v1981
        %v2020 = vpop.f32.mrb[0].mxu0
        %v2021 = vadd.f32 0.0, %v2020
        %v2022 = vpop.f32.mrb[0].mxu0
        %v2023 = vpop.f32.mrb[0].mxu0
        %v2024 = vpop.f32.mrb[0].mxu0
        %2025 = vdwg.mxu0
        %2026 = vxpose.xlu0.c.b16.start [1/8] %v1839, 128
        %2027 = vxpose.xlu0.c.b16.cont [2/8] 0, 128
        %2028 = vxpose.xlu0.c.b16.cont [3/8] 0, 128
        %2029 = vxpose.xlu0.c.b16.cont [4/8] 0, 128
        %2030 = vxpose.xlu0.c.b16.cont [5/8] 0, 128
        %2031 = vxpose.xlu0.c.b16.cont [6/8] 0, 128
        %2032 = vxpose.xlu0.c.b16.cont [7/8] 0, 128
        %2033 = vxpose.xlu0.c.b16.end [8/8] 0, 128
        %v2034 = vpop.trf.xlu0
        %v2035 = vpop.trf.xlu0
        %v2036 = vpop.trf.xlu0
        %v2037 = vpop.trf.xlu0
        %v2038 = vpop.trf.xlu0
        %v2039 = vpop.trf.xlu0
        %v2040 = vpop.trf.xlu0
        %v2041 = vpop.trf.xlu0
        %v2043 = vsel %vm1743, %v2034, 0
        %v2046 = vsel %vm1743, %v1835, 0
        %2048 = vmatprep.subr.bf16.mxu0 0
        %2049 = vmatpush1.bf16.xpose.msra.mxu0 %v2046
        %2050 = vmatprep.subr.bf16.mxu0 0
        %2051 = vmatpush1.bf16.xpose.msra.mxu0 0
        %2052 = vmatprep.subr.bf16.mxu0 0
        %2053 = vmatpush1.bf16.xpose.msra.mxu0 0
        %2054 = vmatprep.subr.bf16.mxu0 0
        %2055 = vmatpush1.bf16.xpose.msra.mxu0 0
        %2056 = vmatprep.subr.bf16.mxu0 0
        %2057 = vmatpush1.bf16.xpose.msra.mxu0 0
        %2058 = vmatprep.subr.bf16.mxu0 0
        %2059 = vmatpush1.bf16.xpose.msra.mxu0 0
        %2060 = vmatprep.subr.bf16.mxu0 0
        %2061 = vmatpush1.bf16.xpose.msra.mxu0 0
        %2062 = vmatprep.subr.bf16.mxu0 0
        %2063 = vmatpush1.bf16.xpose.msra.mxu0 0
        %2064 = vmatprep.subr.bf16.mxu0 0
        %2065 = vmatpush1.bf16.xpose.msra.mxu0 0
        %2066 = vmatprep.subr.bf16.mxu0 0
        %2067 = vmatpush1.bf16.xpose.msra.mxu0 0
        %2068 = vmatprep.subr.bf16.mxu0 0
        %2069 = vmatpush1.bf16.xpose.msra.mxu0 0
        %2070 = vmatprep.subr.bf16.mxu0 0
        %2071 = vmatpush1.bf16.xpose.msra.mxu0 0
        %2072 = vmatprep.subr.bf16.mxu0 0
        %2073 = vmatpush1.bf16.xpose.msra.mxu0 0
        %2074 = vmatprep.subr.bf16.mxu0 0
        %2075 = vmatpush1.bf16.xpose.msra.mxu0 0
        %2076 = vmatprep.subr.bf16.mxu0 0
        %2077 = vmatpush1.bf16.xpose.msra.mxu0 0
        %2078 = vmatprep.subr.bf16.mxu0 0
        %2079 = vmatpush1.bf16.xpose.msra.mxu0 0
        %2080 = vmatprep.mubr.bf16.mxu0 0
        %2081 = vmatmul.mubr.bf16.gmra.mrb[0].mxu0 %v2043
        %v2082 = vpop.f32.mrb[0].mxu0
        %v2083 = vadd.f32 0.0, %v2082
        %v2084 = vpop.f32.mrb[0].mxu0
        %v2085 = vpop.f32.mrb[0].mxu0
        %v2086 = vpop.f32.mrb[0].mxu0
        %2087 = vdwg.mxu0
        %2088 = vxpose.xlu0.b32.start [1/16] %v1897, 128
        %2089 = vxpose.xlu0.b32.cont [2/16] 0.0, 128
        %2090 = vxpose.xlu0.b32.cont [3/16] 0.0, 128
        %2091 = vxpose.xlu0.b32.cont [4/16] 0.0, 128
        %2092 = vxpose.xlu0.b32.cont [5/16] 0.0, 128
        %2093 = vxpose.xlu0.b32.cont [6/16] 0.0, 128
        %2094 = vxpose.xlu0.b32.cont [7/16] 0.0, 128
        %2095 = vxpose.xlu0.b32.cont [8/16] 0.0, 128
        %2096 = vxpose.xlu0.b32.cont [9/16] 0.0, 128
        %2097 = vxpose.xlu0.b32.cont [10/16] 0.0, 128
        %2098 = vxpose.xlu0.b32.cont [11/16] 0.0, 128
        %2099 = vxpose.xlu0.b32.cont [12/16] 0.0, 128
        %2100 = vxpose.xlu0.b32.cont [13/16] 0.0, 128
        %2101 = vxpose.xlu0.b32.cont [14/16] 0.0, 128
        %2102 = vxpose.xlu0.b32.cont [15/16] 0.0, 128
        %2103 = vxpose.xlu0.b32.end [16/16] 0.0, 128
        %v2104 = vpop.trf.xlu0
        %v2105 = vpop.trf.xlu0
        %v2106 = vpop.trf.xlu0
        %v2107 = vpop.trf.xlu0
        %v2108 = vpop.trf.xlu0
        %v2109 = vpop.trf.xlu0
        %v2110 = vpop.trf.xlu0
        %v2111 = vpop.trf.xlu0
        %v2112 = vpop.trf.xlu0
        %v2113 = vpop.trf.xlu0
        %v2114 = vpop.trf.xlu0
        %v2115 = vpop.trf.xlu0
        %v2116 = vpop.trf.xlu0
        %v2117 = vpop.trf.xlu0
        %v2118 = vpop.trf.xlu0
        %v2119 = vpop.trf.xlu0
        %2120 = vxpose.xlu0.b32.start [1/16] %v1959, 128
        %2121 = vxpose.xlu0.b32.cont [2/16] 0.0, 128
        %2122 = vxpose.xlu0.b32.cont [3/16] 0.0, 128
        %2123 = vxpose.xlu0.b32.cont [4/16] 0.0, 128
        %2124 = vxpose.xlu0.b32.cont [5/16] 0.0, 128
        %2125 = vxpose.xlu0.b32.cont [6/16] 0.0, 128
        %2126 = vxpose.xlu0.b32.cont [7/16] 0.0, 128
        %2127 = vxpose.xlu0.b32.cont [8/16] 0.0, 128
        %2128 = vxpose.xlu0.b32.cont [9/16] 0.0, 128
        %2129 = vxpose.xlu0.b32.cont [10/16] 0.0, 128
        %2130 = vxpose.xlu0.b32.cont [11/16] 0.0, 128
        %2131 = vxpose.xlu0.b32.cont [12/16] 0.0, 128
        %2132 = vxpose.xlu0.b32.cont [13/16] 0.0, 128
        %2133 = vxpose.xlu0.b32.cont [14/16] 0.0, 128
        %2134 = vxpose.xlu0.b32.cont [15/16] 0.0, 128
        %2135 = vxpose.xlu0.b32.end [16/16] 0.0, 128
        %v2136 = vpop.trf.xlu0
        %v2137 = vpop.trf.xlu0
        %v2138 = vpop.trf.xlu0
        %v2139 = vpop.trf.xlu0
        %v2140 = vpop.trf.xlu0
        %v2141 = vpop.trf.xlu0
        %v2142 = vpop.trf.xlu0
        %v2143 = vpop.trf.xlu0
        %v2144 = vpop.trf.xlu0
        %v2145 = vpop.trf.xlu0
        %v2146 = vpop.trf.xlu0
        %v2147 = vpop.trf.xlu0
        %v2148 = vpop.trf.xlu0
        %v2149 = vpop.trf.xlu0
        %v2150 = vpop.trf.xlu0
        %v2151 = vpop.trf.xlu0
        %2152 = vxpose.xlu0.b32.start [1/16] %v2021, 128
        %2153 = vxpose.xlu0.b32.cont [2/16] 0.0, 128
        %2154 = vxpose.xlu0.b32.cont [3/16] 0.0, 128
        %2155 = vxpose.xlu0.b32.cont [4/16] 0.0, 128
        %2156 = vxpose.xlu0.b32.cont [5/16] 0.0, 128
        %2157 = vxpose.xlu0.b32.cont [6/16] 0.0, 128
        %2158 = vxpose.xlu0.b32.cont [7/16] 0.0, 128
        %2159 = vxpose.xlu0.b32.cont [8/16] 0.0, 128
        %2160 = vxpose.xlu0.b32.cont [9/16] 0.0, 128
        %2161 = vxpose.xlu0.b32.cont [10/16] 0.0, 128
        %2162 = vxpose.xlu0.b32.cont [11/16] 0.0, 128
        %2163 = vxpose.xlu0.b32.cont [12/16] 0.0, 128
        %2164 = vxpose.xlu0.b32.cont [13/16] 0.0, 128
        %2165 = vxpose.xlu0.b32.cont [14/16] 0.0, 128
        %2166 = vxpose.xlu0.b32.cont [15/16] 0.0, 128
        %2167 = vxpose.xlu0.b32.end [16/16] 0.0, 128
        %v2168 = vpop.trf.xlu0
        %v2169 = vpop.trf.xlu0
        %v2170 = vpop.trf.xlu0
        %v2171 = vpop.trf.xlu0
        %v2172 = vpop.trf.xlu0
        %v2173 = vpop.trf.xlu0
        %v2174 = vpop.trf.xlu0
        %v2175 = vpop.trf.xlu0
        %v2176 = vpop.trf.xlu0
        %v2177 = vpop.trf.xlu0
        %v2178 = vpop.trf.xlu0
        %v2179 = vpop.trf.xlu0
        %v2180 = vpop.trf.xlu0
        %v2181 = vpop.trf.xlu0
        %v2182 = vpop.trf.xlu0
        %v2183 = vpop.trf.xlu0
        %2184 = vxpose.xlu0.b32.start [1/16] %v2083, 128
        %2185 = vxpose.xlu0.b32.cont [2/16] 0.0, 128
        %2186 = vxpose.xlu0.b32.cont [3/16] 0.0, 128
        %2187 = vxpose.xlu0.b32.cont [4/16] 0.0, 128
        %2188 = vxpose.xlu0.b32.cont [5/16] 0.0, 128
        %2189 = vxpose.xlu0.b32.cont [6/16] 0.0, 128
        %2190 = vxpose.xlu0.b32.cont [7/16] 0.0, 128
        %2191 = vxpose.xlu0.b32.cont [8/16] 0.0, 128
        %2192 = vxpose.xlu0.b32.cont [9/16] 0.0, 128
        %2193 = vxpose.xlu0.b32.cont [10/16] 0.0, 128
        %2194 = vxpose.xlu0.b32.cont [11/16] 0.0, 128
        %2195 = vxpose.xlu0.b32.cont [12/16] 0.0, 128
        %2196 = vxpose.xlu0.b32.cont [13/16] 0.0, 128
        %2197 = vxpose.xlu0.b32.cont [14/16] 0.0, 128
        %2198 = vxpose.xlu0.b32.cont [15/16] 0.0, 128
        %2199 = vxpose.xlu0.b32.end [16/16] 0.0, 128
        %v2200 = vpop.trf.xlu0
        %v2201 = vpop.trf.xlu0
        %v2202 = vpop.trf.xlu0
        %v2203 = vpop.trf.xlu0
        %v2204 = vpop.trf.xlu0
        %v2205 = vpop.trf.xlu0
        %v2206 = vpop.trf.xlu0
        %v2207 = vpop.trf.xlu0
        %v2208 = vpop.trf.xlu0
        %v2209 = vpop.trf.xlu0
        %v2210 = vpop.trf.xlu0
        %v2211 = vpop.trf.xlu0
        %v2212 = vpop.trf.xlu0
        %v2213 = vpop.trf.xlu0
        %v2214 = vpop.trf.xlu0
        %v2215 = vpop.trf.xlu0
        %v2216 = vcombine.low %v2104, %v2168
        %v2217 = vcombine.high %v2104, %v2168
        %v2219 = vunpack.c.l.s4 1983009808
        %v2220 = vunpack.c.0.s8 %v2219
        %v2221 = vlaneseq
        %v2222 = vshrl.u32 %v2221, 7
        %v2223 = vsub.s32 %v2220, %v2222
        %v2224 = vrot.slane %v2216, %v2223
        %v2226 = vunpack.c.l.s4 1983009808
        %v2227 = vunpack.c.0.s8 %v2226
        %v2228 = vlaneseq
        %v2229 = vshrl.u32 %v2228, 7
        %v2230 = vsub.s32 %v2227, %v2229
        %v2231 = vrot.slane %v2217, %v2230
        %v2232 = vcombine.low %v2136, %v2200
        %v2233 = vcombine.high %v2136, %v2200
        %v2235 = vunpack.c.l.s4 1983009808
        %v2236 = vunpack.c.0.s8 %v2235
        %v2237 = vlaneseq
        %v2238 = vshrl.u32 %v2237, 7
        %v2239 = vsub.s32 %v2236, %v2238
        %v2240 = vrot.slane %v2232, %v2239
        %v2242 = vunpack.c.l.s4 1983009808
        %v2243 = vunpack.c.0.s8 %v2242
        %v2244 = vlaneseq
        %v2245 = vshrl.u32 %v2244, 7
        %v2246 = vsub.s32 %v2243, %v2245
        %v2247 = vrot.slane %v2233, %v2246
        %v2248 = vcombine.low %v2224, %v2240
        %v2249 = vcombine.high %v2224, %v2240
        %v2251 = vunpack.c.l.s4 1934713408
        %v2252 = vunpack.c.0.s8 %v2251
        %v2253 = vlaneseq
        %v2254 = vshrl.u32 %v2253, 7
        %v2255 = vsub.s32 %v2252, %v2254
        %v2256 = vrot.slane %v2248, %v2255
        %v2258 = vunpack.c.l.s4 1934713408
        %v2259 = vunpack.c.0.s8 %v2258
        %v2260 = vlaneseq
        %v2261 = vshrl.u32 %v2260, 7
        %v2262 = vsub.s32 %v2259, %v2261
        %v2263 = vrot.slane %v2249, %v2262
        %v2264 = vcombine.low %v2231, %v2247
        %v2265 = vcombine.high %v2231, %v2247
        %v2267 = vunpack.c.l.s4 1934713408
        %v2268 = vunpack.c.0.s8 %v2267
        %v2269 = vlaneseq
        %v2270 = vshrl.u32 %v2269, 7
        %v2271 = vsub.s32 %v2268, %v2270
        %v2272 = vrot.slane %v2264, %v2271
        %v2274 = vunpack.c.l.s4 1934713408
        %v2275 = vunpack.c.0.s8 %v2274
        %v2276 = vlaneseq
        %v2277 = vshrl.u32 %v2276, 7
        %v2278 = vsub.s32 %v2275, %v2277
        %v2279 = vrot.slane %v2265, %v2278
        %v2280 = vcombine.high %v2256, 0.0
        %v2281 = vcombine.high %v2263, 0.0
        %v2282 = vcombine.high %v2272, 0.0
        %v2283 = vcombine.high %v2279, 0.0
        %v2284 = vcombine.low %v2105, %v2169
        %v2285 = vcombine.high %v2105, %v2169
        %v2287 = vunpack.c.l.s4 1983009808
        %v2288 = vunpack.c.0.s8 %v2287
        %v2289 = vlaneseq
        %v2290 = vshrl.u32 %v2289, 7
        %v2291 = vsub.s32 %v2288, %v2290
        %v2292 = vrot.slane %v2284, %v2291
        %v2294 = vunpack.c.l.s4 1983009808
        %v2295 = vunpack.c.0.s8 %v2294
        %v2296 = vlaneseq
        %v2297 = vshrl.u32 %v2296, 7
        %v2298 = vsub.s32 %v2295, %v2297
        %v2299 = vrot.slane %v2285, %v2298
        %v2300 = vcombine.low %v2137, %v2201
        %v2301 = vcombine.high %v2137, %v2201
        %v2303 = vunpack.c.l.s4 1983009808
        %v2304 = vunpack.c.0.s8 %v2303
        %v2305 = vlaneseq
        %v2306 = vshrl.u32 %v2305, 7
        %v2307 = vsub.s32 %v2304, %v2306
        %v2308 = vrot.slane %v2300, %v2307
        %v2310 = vunpack.c.l.s4 1983009808
        %v2311 = vunpack.c.0.s8 %v2310
        %v2312 = vlaneseq
        %v2313 = vshrl.u32 %v2312, 7
        %v2314 = vsub.s32 %v2311, %v2313
        %v2315 = vrot.slane %v2301, %v2314
        %v2316 = vcombine.low %v2292, %v2308
        %v2317 = vcombine.high %v2292, %v2308
        %v2319 = vunpack.c.l.s4 1934713408
        %v2320 = vunpack.c.0.s8 %v2319
        %v2321 = vlaneseq
        %v2322 = vshrl.u32 %v2321, 7
        %v2323 = vsub.s32 %v2320, %v2322
        %v2324 = vrot.slane %v2316, %v2323
        %v2326 = vunpack.c.l.s4 1934713408
        %v2327 = vunpack.c.0.s8 %v2326
        %v2328 = vlaneseq
        %v2329 = vshrl.u32 %v2328, 7
        %v2330 = vsub.s32 %v2327, %v2329
        %v2331 = vrot.slane %v2317, %v2330
        %v2332 = vcombine.low %v2299, %v2315
        %v2333 = vcombine.high %v2299, %v2315
        %v2335 = vunpack.c.l.s4 1934713408
        %v2336 = vunpack.c.0.s8 %v2335
        %v2337 = vlaneseq
        %v2338 = vshrl.u32 %v2337, 7
        %v2339 = vsub.s32 %v2336, %v2338
        %v2340 = vrot.slane %v2332, %v2339
        %v2342 = vunpack.c.l.s4 1934713408
        %v2343 = vunpack.c.0.s8 %v2342
        %v2344 = vlaneseq
        %v2345 = vshrl.u32 %v2344, 7
        %v2346 = vsub.s32 %v2343, %v2345
        %v2347 = vrot.slane %v2333, %v2346
        %v2348 = vcombine.high %v2324, 0.0
        %v2349 = vcombine.high %v2331, 0.0
        %v2350 = vcombine.high %v2340, 0.0
        %v2351 = vcombine.high %v2347, 0.0
        %v2352 = vcombine.low %v2256, %v2263
        %v2354 = vunpack.c.l.s4 1983009808
        %v2355 = vunpack.c.0.s8 %v2354
        %v2356 = vlaneseq
        %v2357 = vshrl.u32 %v2356, 7
        %v2358 = vsub.s32 %v2355, %v2357
        %v2359 = vrot.slane %v2352, %v2358
        %v2360 = vcombine.low %v2280, %v2281
        %v2362 = vunpack.c.l.s4 1983009808
        %v2363 = vunpack.c.0.s8 %v2362
        %v2364 = vlaneseq
        %v2365 = vshrl.u32 %v2364, 7
        %v2366 = vsub.s32 %v2363, %v2365
        %v2367 = vrot.slane %v2360, %v2366
        %v2368 = vcombine.low %v2272, %v2279
        %v2370 = vunpack.c.l.s4 1983009808
        %v2371 = vunpack.c.0.s8 %v2370
        %v2372 = vlaneseq
        %v2373 = vshrl.u32 %v2372, 7
        %v2374 = vsub.s32 %v2371, %v2373
        %v2375 = vrot.slane %v2368, %v2374
        %v2376 = vcombine.low %v2282, %v2283
        %v2378 = vunpack.c.l.s4 1983009808
        %v2379 = vunpack.c.0.s8 %v2378
        %v2380 = vlaneseq
        %v2381 = vshrl.u32 %v2380, 7
        %v2382 = vsub.s32 %v2379, %v2381
        %v2383 = vrot.slane %v2376, %v2382
        %v2384 = vcombine.low %v2359, %v2367
        %v2385 = vcombine.high %v2359, %v2367
        %v2387 = vunpack.c.l.s4 1934713408
        %v2388 = vunpack.c.0.s8 %v2387
        %v2389 = vlaneseq
        %v2390 = vshrl.u32 %v2389, 7
        %v2391 = vsub.s32 %v2388, %v2390
        %v2392 = vrot.slane %v2384, %v2391
        %v2394 = vunpack.c.l.s4 1934713408
        %v2395 = vunpack.c.0.s8 %v2394
        %v2396 = vlaneseq
        %v2397 = vshrl.u32 %v2396, 7
        %v2398 = vsub.s32 %v2395, %v2397
        %v2399 = vrot.slane %v2385, %v2398
        %v2400 = vcombine.low %v2375, %v2383
        %v2401 = vcombine.high %v2375, %v2383
        %v2403 = vunpack.c.l.s4 1934713408
        %v2404 = vunpack.c.0.s8 %v2403
        %v2405 = vlaneseq
        %v2406 = vshrl.u32 %v2405, 7
        %v2407 = vsub.s32 %v2404, %v2406
        %v2408 = vrot.slane %v2400, %v2407
        %v2410 = vunpack.c.l.s4 1934713408
        %v2411 = vunpack.c.0.s8 %v2410
        %v2412 = vlaneseq
        %v2413 = vshrl.u32 %v2412, 7
        %v2414 = vsub.s32 %v2411, %v2413
        %v2415 = vrot.slane %v2401, %v2414
        %v2416 = vcombine.low %v2392, %v2408
        %v2417 = vcombine.high %v2392, %v2408
        %v2418 = vcombine.low %v2399, %v2415
        %v2419 = vcombine.high %v2399, %v2415
        %v2420 = vcombine.low %v2324, %v2331
        %v2422 = vunpack.c.l.s4 1983009808
        %v2423 = vunpack.c.0.s8 %v2422
        %v2424 = vlaneseq
        %v2425 = vshrl.u32 %v2424, 7
        %v2426 = vsub.s32 %v2423, %v2425
        %v2427 = vrot.slane %v2420, %v2426
        %v2428 = vcombine.low %v2348, %v2349
        %v2430 = vunpack.c.l.s4 1983009808
        %v2431 = vunpack.c.0.s8 %v2430
        %v2432 = vlaneseq
        %v2433 = vshrl.u32 %v2432, 7
        %v2434 = vsub.s32 %v2431, %v2433
        %v2435 = vrot.slane %v2428, %v2434
        %v2436 = vcombine.low %v2340, %v2347
        %v2438 = vunpack.c.l.s4 1983009808
        %v2439 = vunpack.c.0.s8 %v2438
        %v2440 = vlaneseq
        %v2441 = vshrl.u32 %v2440, 7
        %v2442 = vsub.s32 %v2439, %v2441
        %v2443 = vrot.slane %v2436, %v2442
        %v2444 = vcombine.low %v2350, %v2351
        %v2446 = vunpack.c.l.s4 1983009808
        %v2447 = vunpack.c.0.s8 %v2446
        %v2448 = vlaneseq
        %v2449 = vshrl.u32 %v2448, 7
        %v2450 = vsub.s32 %v2447, %v2449
        %v2451 = vrot.slane %v2444, %v2450
        %v2452 = vcombine.low %v2427, %v2435
        %v2453 = vcombine.high %v2427, %v2435
        %v2455 = vunpack.c.l.s4 1934713408
        %v2456 = vunpack.c.0.s8 %v2455
        %v2457 = vlaneseq
        %v2458 = vshrl.u32 %v2457, 7
        %v2459 = vsub.s32 %v2456, %v2458
        %v2460 = vrot.slane %v2452, %v2459
        %v2462 = vunpack.c.l.s4 1934713408
        %v2463 = vunpack.c.0.s8 %v2462
        %v2464 = vlaneseq
        %v2465 = vshrl.u32 %v2464, 7
        %v2466 = vsub.s32 %v2463, %v2465
        %v2467 = vrot.slane %v2453, %v2466
        %v2468 = vcombine.low %v2443, %v2451
        %v2469 = vcombine.high %v2443, %v2451
        %v2471 = vunpack.c.l.s4 1934713408
        %v2472 = vunpack.c.0.s8 %v2471
        %v2473 = vlaneseq
        %v2474 = vshrl.u32 %v2473, 7
        %v2475 = vsub.s32 %v2472, %v2474
        %v2476 = vrot.slane %v2468, %v2475
        %v2478 = vunpack.c.l.s4 1934713408
        %v2479 = vunpack.c.0.s8 %v2478
        %v2480 = vlaneseq
        %v2481 = vshrl.u32 %v2480, 7
        %v2482 = vsub.s32 %v2479, %v2481
        %v2483 = vrot.slane %v2469, %v2482
        %v2484 = vcombine.low %v2460, %v2476
        %v2485 = vcombine.high %v2460, %v2476
        %v2486 = vcombine.low %v2467, %v2483
        %v2487 = vcombine.high %v2467, %v2483
        %2490 = vrot.lane.b32.xlu0 %v2417, 8
        %v2491 = vpop.permute.xlu0 %2490
        %2492 = vrot.lane.b32.xlu0 %v2485, 8
        %v2493 = vpop.permute.xlu0 %2492
        %2498 = vrot.lane.b32.xlu0 %v2418, 16
        %v2499 = vpop.permute.xlu0 %2498
        %2500 = vrot.lane.b32.xlu0 %v2486, 16
        %v2501 = vpop.permute.xlu0 %2500
        %2506 = vrot.lane.b32.xlu0 %v2419, 24
        %v2507 = vpop.permute.xlu0 %2506
        %2508 = vrot.lane.b32.xlu0 %v2487, 24
        %v2509 = vpop.permute.xlu0 %2508
        %v2512 = vsel %vm1554, %v2416, %v2491
        %v2513 = vsel %vm1554, %v2484, %v2493
        %v2514 = vsel %vm1743, %v2512, %v2499
        %v2515 = vsel %vm1743, %v2513, %v2501
        %vm2516 = vcmask 195584
        %v2517 = vsel %vm2516, %v2514, %v2507
        %v2518 = vsel %vm2516, %v2515, %v2509
        %2521 = vrot.lane.b32.xlu0 %v524, 120
        %v2522 = vpop.permute.xlu0 %2521
        %2523 = vrot.lane.b32.xlu0 %v527, 120
        %v2524 = vpop.permute.xlu0 %2523
        %2527 = vrot.lane.b32.xlu0 %v524, 112
        %v2528 = vpop.permute.xlu0 %2527
        %2529 = vrot.lane.b32.xlu0 %v527, 112
        %v2530 = vpop.permute.xlu0 %2529
        %2533 = vrot.lane.b32.xlu0 %v524, 104
        %v2534 = vpop.permute.xlu0 %2533
        %2535 = vrot.lane.b32.xlu0 %v527, 104
        %v2536 = vpop.permute.xlu0 %2535
        %v2539 = vcombine.low %v524, %v2528
        %v2540 = vcombine.high %v524, %v2528
        %v2542 = vunpack.c.l.s4 1983009808
        %v2543 = vunpack.c.0.s8 %v2542
        %v2544 = vlaneseq
        %v2545 = vshrl.u32 %v2544, 7
        %v2546 = vsub.s32 %v2543, %v2545
        %v2547 = vrot.slane %v2539, %v2546
        %v2549 = vunpack.c.l.s4 1983009808
        %v2550 = vunpack.c.0.s8 %v2549
        %v2551 = vlaneseq
        %v2552 = vshrl.u32 %v2551, 7
        %v2553 = vsub.s32 %v2550, %v2552
        %v2554 = vrot.slane %v2540, %v2553
        %v2555 = vcombine.low %v2522, %v2534
        %v2556 = vcombine.high %v2522, %v2534
        %v2558 = vunpack.c.l.s4 1983009808
        %v2559 = vunpack.c.0.s8 %v2558
        %v2560 = vlaneseq
        %v2561 = vshrl.u32 %v2560, 7
        %v2562 = vsub.s32 %v2559, %v2561
        %v2563 = vrot.slane %v2555, %v2562
        %v2565 = vunpack.c.l.s4 1983009808
        %v2566 = vunpack.c.0.s8 %v2565
        %v2567 = vlaneseq
        %v2568 = vshrl.u32 %v2567, 7
        %v2569 = vsub.s32 %v2566, %v2568
        %v2570 = vrot.slane %v2556, %v2569
        %v2571 = vcombine.low %v2547, %v2563
        %v2572 = vcombine.high %v2547, %v2563
        %v2574 = vunpack.c.l.s4 1934713408
        %v2575 = vunpack.c.0.s8 %v2574
        %v2576 = vlaneseq
        %v2577 = vshrl.u32 %v2576, 7
        %v2578 = vsub.s32 %v2575, %v2577
        %v2579 = vrot.slane %v2571, %v2578
        %v2581 = vunpack.c.l.s4 1934713408
        %v2582 = vunpack.c.0.s8 %v2581
        %v2583 = vlaneseq
        %v2584 = vshrl.u32 %v2583, 7
        %v2585 = vsub.s32 %v2582, %v2584
        %v2586 = vrot.slane %v2572, %v2585
        %v2587 = vcombine.low %v2554, %v2570
        %v2588 = vcombine.high %v2554, %v2570
        %v2590 = vunpack.c.l.s4 1934713408
        %v2591 = vunpack.c.0.s8 %v2590
        %v2592 = vlaneseq
        %v2593 = vshrl.u32 %v2592, 7
        %v2594 = vsub.s32 %v2591, %v2593
        %v2595 = vrot.slane %v2587, %v2594
        %v2597 = vunpack.c.l.s4 1934713408
        %v2598 = vunpack.c.0.s8 %v2597
        %v2599 = vlaneseq
        %v2600 = vshrl.u32 %v2599, 7
        %v2601 = vsub.s32 %v2598, %v2600
        %v2602 = vrot.slane %v2588, %v2601
        %v2603 = vcombine.high %v2579, 0.0
        %v2604 = vcombine.high %v2586, 0.0
        %v2605 = vcombine.high %v2595, 0.0
        %v2606 = vcombine.high %v2602, 0.0
        %v2607 = vcombine.low %v527, %v2530
        %v2608 = vcombine.high %v527, %v2530
        %v2610 = vunpack.c.l.s4 1983009808
        %v2611 = vunpack.c.0.s8 %v2610
        %v2612 = vlaneseq
        %v2613 = vshrl.u32 %v2612, 7
        %v2614 = vsub.s32 %v2611, %v2613
        %v2615 = vrot.slane %v2607, %v2614
        %v2617 = vunpack.c.l.s4 1983009808
        %v2618 = vunpack.c.0.s8 %v2617
        %v2619 = vlaneseq
        %v2620 = vshrl.u32 %v2619, 7
        %v2621 = vsub.s32 %v2618, %v2620
        %v2622 = vrot.slane %v2608, %v2621
        %v2623 = vcombine.low %v2524, %v2536
        %v2624 = vcombine.high %v2524, %v2536
        %v2626 = vunpack.c.l.s4 1983009808
        %v2627 = vunpack.c.0.s8 %v2626
        %v2628 = vlaneseq
        %v2629 = vshrl.u32 %v2628, 7
        %v2630 = vsub.s32 %v2627, %v2629
        %v2631 = vrot.slane %v2623, %v2630
        %v2633 = vunpack.c.l.s4 1983009808
        %v2634 = vunpack.c.0.s8 %v2633
        %v2635 = vlaneseq
        %v2636 = vshrl.u32 %v2635, 7
        %v2637 = vsub.s32 %v2634, %v2636
        %v2638 = vrot.slane %v2624, %v2637
        %v2639 = vcombine.low %v2615, %v2631
        %v2640 = vcombine.high %v2615, %v2631
        %v2642 = vunpack.c.l.s4 1934713408
        %v2643 = vunpack.c.0.s8 %v2642
        %v2644 = vlaneseq
        %v2645 = vshrl.u32 %v2644, 7
        %v2646 = vsub.s32 %v2643, %v2645
        %v2647 = vrot.slane %v2639, %v2646
        %v2649 = vunpack.c.l.s4 1934713408
        %v2650 = vunpack.c.0.s8 %v2649
        %v2651 = vlaneseq
        %v2652 = vshrl.u32 %v2651, 7
        %v2653 = vsub.s32 %v2650, %v2652
        %v2654 = vrot.slane %v2640, %v2653
        %v2655 = vcombine.low %v2622, %v2638
        %v2656 = vcombine.high %v2622, %v2638
        %v2658 = vunpack.c.l.s4 1934713408
        %v2659 = vunpack.c.0.s8 %v2658
        %v2660 = vlaneseq
        %v2661 = vshrl.u32 %v2660, 7
        %v2662 = vsub.s32 %v2659, %v2661
        %v2663 = vrot.slane %v2655, %v2662
        %v2665 = vunpack.c.l.s4 1934713408
        %v2666 = vunpack.c.0.s8 %v2665
        %v2667 = vlaneseq
        %v2668 = vshrl.u32 %v2667, 7
        %v2669 = vsub.s32 %v2666, %v2668
        %v2670 = vrot.slane %v2656, %v2669
        %v2671 = vcombine.high %v2647, 0.0
        %v2672 = vcombine.high %v2654, 0.0
        %v2673 = vcombine.high %v2663, 0.0
        %v2674 = vcombine.high %v2670, 0.0
        %v2675 = vcombine.low %v2579, %v2586
        %v2677 = vunpack.c.l.s4 1983009808
        %v2678 = vunpack.c.0.s8 %v2677
        %v2679 = vlaneseq
        %v2680 = vshrl.u32 %v2679, 7
        %v2681 = vsub.s32 %v2678, %v2680
        %v2682 = vrot.slane %v2675, %v2681
        %v2683 = vcombine.low %v2603, %v2604
        %v2685 = vunpack.c.l.s4 1983009808
        %v2686 = vunpack.c.0.s8 %v2685
        %v2687 = vlaneseq
        %v2688 = vshrl.u32 %v2687, 7
        %v2689 = vsub.s32 %v2686, %v2688
        %v2690 = vrot.slane %v2683, %v2689
        %v2691 = vcombine.low %v2595, %v2602
        %v2693 = vunpack.c.l.s4 1983009808
        %v2694 = vunpack.c.0.s8 %v2693
        %v2695 = vlaneseq
        %v2696 = vshrl.u32 %v2695, 7
        %v2697 = vsub.s32 %v2694, %v2696
        %v2698 = vrot.slane %v2691, %v2697
        %v2699 = vcombine.low %v2605, %v2606
        %v2701 = vunpack.c.l.s4 1983009808
        %v2702 = vunpack.c.0.s8 %v2701
        %v2703 = vlaneseq
        %v2704 = vshrl.u32 %v2703, 7
        %v2705 = vsub.s32 %v2702, %v2704
        %v2706 = vrot.slane %v2699, %v2705
        %v2707 = vcombine.low %v2682, %v2690
        %v2708 = vcombine.high %v2682, %v2690
        %v2710 = vunpack.c.l.s4 1934713408
        %v2711 = vunpack.c.0.s8 %v2710
        %v2712 = vlaneseq
        %v2713 = vshrl.u32 %v2712, 7
        %v2714 = vsub.s32 %v2711, %v2713
        %v2715 = vrot.slane %v2707, %v2714
        %v2717 = vunpack.c.l.s4 1934713408
        %v2718 = vunpack.c.0.s8 %v2717
        %v2719 = vlaneseq
        %v2720 = vshrl.u32 %v2719, 7
        %v2721 = vsub.s32 %v2718, %v2720
        %v2722 = vrot.slane %v2708, %v2721
        %v2723 = vcombine.low %v2698, %v2706
        %v2724 = vcombine.high %v2698, %v2706
        %v2726 = vunpack.c.l.s4 1934713408
        %v2727 = vunpack.c.0.s8 %v2726
        %v2728 = vlaneseq
        %v2729 = vshrl.u32 %v2728, 7
        %v2730 = vsub.s32 %v2727, %v2729
        %v2731 = vrot.slane %v2723, %v2730
        %v2733 = vunpack.c.l.s4 1934713408
        %v2734 = vunpack.c.0.s8 %v2733
        %v2735 = vlaneseq
        %v2736 = vshrl.u32 %v2735, 7
        %v2737 = vsub.s32 %v2734, %v2736
        %v2738 = vrot.slane %v2724, %v2737
        %v2739 = vcombine.low %v2715, %v2731
        %v2740 = vcombine.high %v2715, %v2731
        %v2741 = vcombine.low %v2722, %v2738
        %v2742 = vcombine.high %v2722, %v2738
        %v2743 = vcombine.low %v2647, %v2654
        %v2745 = vunpack.c.l.s4 1983009808
        %v2746 = vunpack.c.0.s8 %v2745
        %v2747 = vlaneseq
        %v2748 = vshrl.u32 %v2747, 7
        %v2749 = vsub.s32 %v2746, %v2748
        %v2750 = vrot.slane %v2743, %v2749
        %v2751 = vcombine.low %v2671, %v2672
        %v2753 = vunpack.c.l.s4 1983009808
        %v2754 = vunpack.c.0.s8 %v2753
        %v2755 = vlaneseq
        %v2756 = vshrl.u32 %v2755, 7
        %v2757 = vsub.s32 %v2754, %v2756
        %v2758 = vrot.slane %v2751, %v2757
        %v2759 = vcombine.low %v2663, %v2670
        %v2761 = vunpack.c.l.s4 1983009808
        %v2762 = vunpack.c.0.s8 %v2761
        %v2763 = vlaneseq
        %v2764 = vshrl.u32 %v2763, 7
        %v2765 = vsub.s32 %v2762, %v2764
        %v2766 = vrot.slane %v2759, %v2765
        %v2767 = vcombine.low %v2673, %v2674
        %v2769 = vunpack.c.l.s4 1983009808
        %v2770 = vunpack.c.0.s8 %v2769
        %v2771 = vlaneseq
        %v2772 = vshrl.u32 %v2771, 7
        %v2773 = vsub.s32 %v2770, %v2772
        %v2774 = vrot.slane %v2767, %v2773
        %v2775 = vcombine.low %v2750, %v2758
        %v2776 = vcombine.high %v2750, %v2758
        %v2778 = vunpack.c.l.s4 1934713408
        %v2779 = vunpack.c.0.s8 %v2778
        %v2780 = vlaneseq
        %v2781 = vshrl.u32 %v2780, 7
        %v2782 = vsub.s32 %v2779, %v2781
        %v2783 = vrot.slane %v2775, %v2782
        %v2785 = vunpack.c.l.s4 1934713408
        %v2786 = vunpack.c.0.s8 %v2785
        %v2787 = vlaneseq
        %v2788 = vshrl.u32 %v2787, 7
        %v2789 = vsub.s32 %v2786, %v2788
        %v2790 = vrot.slane %v2776, %v2789
        %v2791 = vcombine.low %v2766, %v2774
        %v2792 = vcombine.high %v2766, %v2774
        %v2794 = vunpack.c.l.s4 1934713408
        %v2795 = vunpack.c.0.s8 %v2794
        %v2796 = vlaneseq
        %v2797 = vshrl.u32 %v2796, 7
        %v2798 = vsub.s32 %v2795, %v2797
        %v2799 = vrot.slane %v2791, %v2798
        %v2801 = vunpack.c.l.s4 1934713408
        %v2802 = vunpack.c.0.s8 %v2801
        %v2803 = vlaneseq
        %v2804 = vshrl.u32 %v2803, 7
        %v2805 = vsub.s32 %v2802, %v2804
        %v2806 = vrot.slane %v2792, %v2805
        %v2807 = vcombine.low %v2783, %v2799
        %v2808 = vcombine.high %v2783, %v2799
        %v2809 = vcombine.low %v2790, %v2806
        %v2810 = vcombine.high %v2790, %v2806
        %2813 = vrot.lane.b32.xlu0 %v594, 120
        %v2814 = vpop.permute.xlu0 %2813
        %2815 = vrot.lane.b32.xlu0 %v597, 120
        %v2816 = vpop.permute.xlu0 %2815
        %2819 = vrot.lane.b32.xlu0 %v594, 112
        %v2820 = vpop.permute.xlu0 %2819
        %2821 = vrot.lane.b32.xlu0 %v597, 112
        %v2822 = vpop.permute.xlu0 %2821
        %2825 = vrot.lane.b32.xlu0 %v594, 104
        %v2826 = vpop.permute.xlu0 %2825
        %2827 = vrot.lane.b32.xlu0 %v597, 104
        %v2828 = vpop.permute.xlu0 %2827
        %v2831 = vcombine.low %v594, %v2820
        %v2832 = vcombine.high %v594, %v2820
        %v2834 = vunpack.c.l.s4 1983009808
        %v2835 = vunpack.c.0.s8 %v2834
        %v2836 = vlaneseq
        %v2837 = vshrl.u32 %v2836, 7
        %v2838 = vsub.s32 %v2835, %v2837
        %v2839 = vrot.slane %v2831, %v2838
        %v2841 = vunpack.c.l.s4 1983009808
        %v2842 = vunpack.c.0.s8 %v2841
        %v2843 = vlaneseq
        %v2844 = vshrl.u32 %v2843, 7
        %v2845 = vsub.s32 %v2842, %v2844
        %v2846 = vrot.slane %v2832, %v2845
        %v2847 = vcombine.low %v2814, %v2826
        %v2848 = vcombine.high %v2814, %v2826
        %v2850 = vunpack.c.l.s4 1983009808
        %v2851 = vunpack.c.0.s8 %v2850
        %v2852 = vlaneseq
        %v2853 = vshrl.u32 %v2852, 7
        %v2854 = vsub.s32 %v2851, %v2853
        %v2855 = vrot.slane %v2847, %v2854
        %v2857 = vunpack.c.l.s4 1983009808
        %v2858 = vunpack.c.0.s8 %v2857
        %v2859 = vlaneseq
        %v2860 = vshrl.u32 %v2859, 7
        %v2861 = vsub.s32 %v2858, %v2860
        %v2862 = vrot.slane %v2848, %v2861
        %v2863 = vcombine.low %v2839, %v2855
        %v2864 = vcombine.high %v2839, %v2855
        %v2866 = vunpack.c.l.s4 1934713408
        %v2867 = vunpack.c.0.s8 %v2866
        %v2868 = vlaneseq
        %v2869 = vshrl.u32 %v2868, 7
        %v2870 = vsub.s32 %v2867, %v2869
        %v2871 = vrot.slane %v2863, %v2870
        %v2873 = vunpack.c.l.s4 1934713408
        %v2874 = vunpack.c.0.s8 %v2873
        %v2875 = vlaneseq
        %v2876 = vshrl.u32 %v2875, 7
        %v2877 = vsub.s32 %v2874, %v2876
        %v2878 = vrot.slane %v2864, %v2877
        %v2879 = vcombine.low %v2846, %v2862
        %v2880 = vcombine.high %v2846, %v2862
        %v2882 = vunpack.c.l.s4 1934713408
        %v2883 = vunpack.c.0.s8 %v2882
        %v2884 = vlaneseq
        %v2885 = vshrl.u32 %v2884, 7
        %v2886 = vsub.s32 %v2883, %v2885
        %v2887 = vrot.slane %v2879, %v2886
        %v2889 = vunpack.c.l.s4 1934713408
        %v2890 = vunpack.c.0.s8 %v2889
        %v2891 = vlaneseq
        %v2892 = vshrl.u32 %v2891, 7
        %v2893 = vsub.s32 %v2890, %v2892
        %v2894 = vrot.slane %v2880, %v2893
        %v2895 = vcombine.high %v2871, 0.0
        %v2896 = vcombine.high %v2878, 0.0
        %v2897 = vcombine.high %v2887, 0.0
        %v2898 = vcombine.high %v2894, 0.0
        %v2899 = vcombine.low %v597, %v2822
        %v2900 = vcombine.high %v597, %v2822
        %v2902 = vunpack.c.l.s4 1983009808
        %v2903 = vunpack.c.0.s8 %v2902
        %v2904 = vlaneseq
        %v2905 = vshrl.u32 %v2904, 7
        %v2906 = vsub.s32 %v2903, %v2905
        %v2907 = vrot.slane %v2899, %v2906
        %v2909 = vunpack.c.l.s4 1983009808
        %v2910 = vunpack.c.0.s8 %v2909
        %v2911 = vlaneseq
        %v2912 = vshrl.u32 %v2911, 7
        %v2913 = vsub.s32 %v2910, %v2912
        %v2914 = vrot.slane %v2900, %v2913
        %v2915 = vcombine.low %v2816, %v2828
        %v2916 = vcombine.high %v2816, %v2828
        %v2918 = vunpack.c.l.s4 1983009808
        %v2919 = vunpack.c.0.s8 %v2918
        %v2920 = vlaneseq
        %v2921 = vshrl.u32 %v2920, 7
        %v2922 = vsub.s32 %v2919, %v2921
        %v2923 = vrot.slane %v2915, %v2922
        %v2925 = vunpack.c.l.s4 1983009808
        %v2926 = vunpack.c.0.s8 %v2925
        %v2927 = vlaneseq
        %v2928 = vshrl.u32 %v2927, 7
        %v2929 = vsub.s32 %v2926, %v2928
        %v2930 = vrot.slane %v2916, %v2929
        %v2931 = vcombine.low %v2907, %v2923
        %v2932 = vcombine.high %v2907, %v2923
        %v2934 = vunpack.c.l.s4 1934713408
        %v2935 = vunpack.c.0.s8 %v2934
        %v2936 = vlaneseq
        %v2937 = vshrl.u32 %v2936, 7
        %v2938 = vsub.s32 %v2935, %v2937
        %v2939 = vrot.slane %v2931, %v2938
        %v2941 = vunpack.c.l.s4 1934713408
        %v2942 = vunpack.c.0.s8 %v2941
        %v2943 = vlaneseq
        %v2944 = vshrl.u32 %v2943, 7
        %v2945 = vsub.s32 %v2942, %v2944
        %v2946 = vrot.slane %v2932, %v2945
        %v2947 = vcombine.low %v2914, %v2930
        %v2948 = vcombine.high %v2914, %v2930
        %v2950 = vunpack.c.l.s4 1934713408
        %v2951 = vunpack.c.0.s8 %v2950
        %v2952 = vlaneseq
        %v2953 = vshrl.u32 %v2952, 7
        %v2954 = vsub.s32 %v2951, %v2953
        %v2955 = vrot.slane %v2947, %v2954
        %v2957 = vunpack.c.l.s4 1934713408
        %v2958 = vunpack.c.0.s8 %v2957
        %v2959 = vlaneseq
        %v2960 = vshrl.u32 %v2959, 7
        %v2961 = vsub.s32 %v2958, %v2960
        %v2962 = vrot.slane %v2948, %v2961
        %v2963 = vcombine.high %v2939, 0.0
        %v2964 = vcombine.high %v2946, 0.0
        %v2965 = vcombine.high %v2955, 0.0
        %v2966 = vcombine.high %v2962, 0.0
        %v2967 = vcombine.low %v2871, %v2878
        %v2969 = vunpack.c.l.s4 1983009808
        %v2970 = vunpack.c.0.s8 %v2969
        %v2971 = vlaneseq
        %v2972 = vshrl.u32 %v2971, 7
        %v2973 = vsub.s32 %v2970, %v2972
        %v2974 = vrot.slane %v2967, %v2973
        %v2975 = vcombine.low %v2895, %v2896
        %v2977 = vunpack.c.l.s4 1983009808
        %v2978 = vunpack.c.0.s8 %v2977
        %v2979 = vlaneseq
        %v2980 = vshrl.u32 %v2979, 7
        %v2981 = vsub.s32 %v2978, %v2980
        %v2982 = vrot.slane %v2975, %v2981
        %v2983 = vcombine.low %v2887, %v2894
        %v2985 = vunpack.c.l.s4 1983009808
        %v2986 = vunpack.c.0.s8 %v2985
        %v2987 = vlaneseq
        %v2988 = vshrl.u32 %v2987, 7
        %v2989 = vsub.s32 %v2986, %v2988
        %v2990 = vrot.slane %v2983, %v2989
        %v2991 = vcombine.low %v2897, %v2898
        %v2993 = vunpack.c.l.s4 1983009808
        %v2994 = vunpack.c.0.s8 %v2993
        %v2995 = vlaneseq
        %v2996 = vshrl.u32 %v2995, 7
        %v2997 = vsub.s32 %v2994, %v2996
        %v2998 = vrot.slane %v2991, %v2997
        %v2999 = vcombine.low %v2974, %v2982
        %v3000 = vcombine.high %v2974, %v2982
        %v3002 = vunpack.c.l.s4 1934713408
        %v3003 = vunpack.c.0.s8 %v3002
        %v3004 = vlaneseq
        %v3005 = vshrl.u32 %v3004, 7
        %v3006 = vsub.s32 %v3003, %v3005
        %v3007 = vrot.slane %v2999, %v3006
        %v3009 = vunpack.c.l.s4 1934713408
        %v3010 = vunpack.c.0.s8 %v3009
        %v3011 = vlaneseq
        %v3012 = vshrl.u32 %v3011, 7
        %v3013 = vsub.s32 %v3010, %v3012
        %v3014 = vrot.slane %v3000, %v3013
        %v3015 = vcombine.low %v2990, %v2998
        %v3016 = vcombine.high %v2990, %v2998
        %v3018 = vunpack.c.l.s4 1934713408
        %v3019 = vunpack.c.0.s8 %v3018
        %v3020 = vlaneseq
        %v3021 = vshrl.u32 %v3020, 7
        %v3022 = vsub.s32 %v3019, %v3021
        %v3023 = vrot.slane %v3015, %v3022
        %v3025 = vunpack.c.l.s4 1934713408
        %v3026 = vunpack.c.0.s8 %v3025
        %v3027 = vlaneseq
        %v3028 = vshrl.u32 %v3027, 7
        %v3029 = vsub.s32 %v3026, %v3028
        %v3030 = vrot.slane %v3016, %v3029
        %v3031 = vcombine.low %v3007, %v3023
        %v3032 = vcombine.high %v3007, %v3023
        %v3033 = vcombine.low %v3014, %v3030
        %v3034 = vcombine.high %v3014, %v3030
        %v3035 = vcombine.low %v2939, %v2946
        %v3037 = vunpack.c.l.s4 1983009808
        %v3038 = vunpack.c.0.s8 %v3037
        %v3039 = vlaneseq
        %v3040 = vshrl.u32 %v3039, 7
        %v3041 = vsub.s32 %v3038, %v3040
        %v3042 = vrot.slane %v3035, %v3041
        %v3043 = vcombine.low %v2963, %v2964
        %v3045 = vunpack.c.l.s4 1983009808
        %v3046 = vunpack.c.0.s8 %v3045
        %v3047 = vlaneseq
        %v3048 = vshrl.u32 %v3047, 7
        %v3049 = vsub.s32 %v3046, %v3048
        %v3050 = vrot.slane %v3043, %v3049
        %v3051 = vcombine.low %v2955, %v2962
        %v3053 = vunpack.c.l.s4 1983009808
        %v3054 = vunpack.c.0.s8 %v3053
        %v3055 = vlaneseq
        %v3056 = vshrl.u32 %v3055, 7
        %v3057 = vsub.s32 %v3054, %v3056
        %v3058 = vrot.slane %v3051, %v3057
        %v3059 = vcombine.low %v2965, %v2966
        %v3061 = vunpack.c.l.s4 1983009808
        %v3062 = vunpack.c.0.s8 %v3061
        %v3063 = vlaneseq
        %v3064 = vshrl.u32 %v3063, 7
        %v3065 = vsub.s32 %v3062, %v3064
        %v3066 = vrot.slane %v3059, %v3065
        %v3067 = vcombine.low %v3042, %v3050
        %v3068 = vcombine.high %v3042, %v3050
        %v3070 = vunpack.c.l.s4 1934713408
        %v3071 = vunpack.c.0.s8 %v3070
        %v3072 = vlaneseq
        %v3073 = vshrl.u32 %v3072, 7
        %v3074 = vsub.s32 %v3071, %v3073
        %v3075 = vrot.slane %v3067, %v3074
        %v3077 = vunpack.c.l.s4 1934713408
        %v3078 = vunpack.c.0.s8 %v3077
        %v3079 = vlaneseq
        %v3080 = vshrl.u32 %v3079, 7
        %v3081 = vsub.s32 %v3078, %v3080
        %v3082 = vrot.slane %v3068, %v3081
        %v3083 = vcombine.low %v3058, %v3066
        %v3084 = vcombine.high %v3058, %v3066
        %v3086 = vunpack.c.l.s4 1934713408
        %v3087 = vunpack.c.0.s8 %v3086
        %v3088 = vlaneseq
        %v3089 = vshrl.u32 %v3088, 7
        %v3090 = vsub.s32 %v3087, %v3089
        %v3091 = vrot.slane %v3083, %v3090
        %v3093 = vunpack.c.l.s4 1934713408
        %v3094 = vunpack.c.0.s8 %v3093
        %v3095 = vlaneseq
        %v3096 = vshrl.u32 %v3095, 7
        %v3097 = vsub.s32 %v3094, %v3096
        %v3098 = vrot.slane %v3084, %v3097
        %v3099 = vcombine.low %v3075, %v3091
        %v3100 = vcombine.high %v3075, %v3091
        %v3101 = vcombine.low %v3082, %v3098
        %v3102 = vcombine.high %v3082, %v3098
        %3105 = vrot.lane.b32.xlu0 %v664, 120
        %v3106 = vpop.permute.xlu0 %3105
        %3107 = vrot.lane.b32.xlu0 %v667, 120
        %v3108 = vpop.permute.xlu0 %3107
        %3111 = vrot.lane.b32.xlu0 %v664, 112
        %v3112 = vpop.permute.xlu0 %3111
        %3113 = vrot.lane.b32.xlu0 %v667, 112
        %v3114 = vpop.permute.xlu0 %3113
        %3117 = vrot.lane.b32.xlu0 %v664, 104
        %v3118 = vpop.permute.xlu0 %3117
        %3119 = vrot.lane.b32.xlu0 %v667, 104
        %v3120 = vpop.permute.xlu0 %3119
        %v3123 = vcombine.low %v664, %v3112
        %v3124 = vcombine.high %v664, %v3112
        %v3126 = vunpack.c.l.s4 1983009808
        %v3127 = vunpack.c.0.s8 %v3126
        %v3128 = vlaneseq
        %v3129 = vshrl.u32 %v3128, 7
        %v3130 = vsub.s32 %v3127, %v3129
        %v3131 = vrot.slane %v3123, %v3130
        %v3133 = vunpack.c.l.s4 1983009808
        %v3134 = vunpack.c.0.s8 %v3133
        %v3135 = vlaneseq
        %v3136 = vshrl.u32 %v3135, 7
        %v3137 = vsub.s32 %v3134, %v3136
        %v3138 = vrot.slane %v3124, %v3137
        %v3139 = vcombine.low %v3106, %v3118
        %v3140 = vcombine.high %v3106, %v3118
        %v3142 = vunpack.c.l.s4 1983009808
        %v3143 = vunpack.c.0.s8 %v3142
        %v3144 = vlaneseq
        %v3145 = vshrl.u32 %v3144, 7
        %v3146 = vsub.s32 %v3143, %v3145
        %v3147 = vrot.slane %v3139, %v3146
        %v3149 = vunpack.c.l.s4 1983009808
        %v3150 = vunpack.c.0.s8 %v3149
        %v3151 = vlaneseq
        %v3152 = vshrl.u32 %v3151, 7
        %v3153 = vsub.s32 %v3150, %v3152
        %v3154 = vrot.slane %v3140, %v3153
        %v3155 = vcombine.low %v3131, %v3147
        %v3156 = vcombine.high %v3131, %v3147
        %v3158 = vunpack.c.l.s4 1934713408
        %v3159 = vunpack.c.0.s8 %v3158
        %v3160 = vlaneseq
        %v3161 = vshrl.u32 %v3160, 7
        %v3162 = vsub.s32 %v3159, %v3161
        %v3163 = vrot.slane %v3155, %v3162
        %v3165 = vunpack.c.l.s4 1934713408
        %v3166 = vunpack.c.0.s8 %v3165
        %v3167 = vlaneseq
        %v3168 = vshrl.u32 %v3167, 7
        %v3169 = vsub.s32 %v3166, %v3168
        %v3170 = vrot.slane %v3156, %v3169
        %v3171 = vcombine.low %v3138, %v3154
        %v3172 = vcombine.high %v3138, %v3154
        %v3174 = vunpack.c.l.s4 1934713408
        %v3175 = vunpack.c.0.s8 %v3174
        %v3176 = vlaneseq
        %v3177 = vshrl.u32 %v3176, 7
        %v3178 = vsub.s32 %v3175, %v3177
        %v3179 = vrot.slane %v3171, %v3178
        %v3181 = vunpack.c.l.s4 1934713408
        %v3182 = vunpack.c.0.s8 %v3181
        %v3183 = vlaneseq
        %v3184 = vshrl.u32 %v3183, 7
        %v3185 = vsub.s32 %v3182, %v3184
        %v3186 = vrot.slane %v3172, %v3185
        %v3187 = vcombine.high %v3163, 0.0
        %v3188 = vcombine.high %v3170, 0.0
        %v3189 = vcombine.high %v3179, 0.0
        %v3190 = vcombine.high %v3186, 0.0
        %v3191 = vcombine.low %v667, %v3114
        %v3192 = vcombine.high %v667, %v3114
        %v3194 = vunpack.c.l.s4 1983009808
        %v3195 = vunpack.c.0.s8 %v3194
        %v3196 = vlaneseq
        %v3197 = vshrl.u32 %v3196, 7
        %v3198 = vsub.s32 %v3195, %v3197
        %v3199 = vrot.slane %v3191, %v3198
        %v3201 = vunpack.c.l.s4 1983009808
        %v3202 = vunpack.c.0.s8 %v3201
        %v3203 = vlaneseq
        %v3204 = vshrl.u32 %v3203, 7
        %v3205 = vsub.s32 %v3202, %v3204
        %v3206 = vrot.slane %v3192, %v3205
        %v3207 = vcombine.low %v3108, %v3120
        %v3208 = vcombine.high %v3108, %v3120
        %v3210 = vunpack.c.l.s4 1983009808
        %v3211 = vunpack.c.0.s8 %v3210
        %v3212 = vlaneseq
        %v3213 = vshrl.u32 %v3212, 7
        %v3214 = vsub.s32 %v3211, %v3213
        %v3215 = vrot.slane %v3207, %v3214
        %v3217 = vunpack.c.l.s4 1983009808
        %v3218 = vunpack.c.0.s8 %v3217
        %v3219 = vlaneseq
        %v3220 = vshrl.u32 %v3219, 7
        %v3221 = vsub.s32 %v3218, %v3220
        %v3222 = vrot.slane %v3208, %v3221
        %v3223 = vcombine.low %v3199, %v3215
        %v3224 = vcombine.high %v3199, %v3215
        %v3226 = vunpack.c.l.s4 1934713408
        %v3227 = vunpack.c.0.s8 %v3226
        %v3228 = vlaneseq
        %v3229 = vshrl.u32 %v3228, 7
        %v3230 = vsub.s32 %v3227, %v3229
        %v3231 = vrot.slane %v3223, %v3230
        %v3233 = vunpack.c.l.s4 1934713408
        %v3234 = vunpack.c.0.s8 %v3233
        %v3235 = vlaneseq
        %v3236 = vshrl.u32 %v3235, 7
        %v3237 = vsub.s32 %v3234, %v3236
        %v3238 = vrot.slane %v3224, %v3237
        %v3239 = vcombine.low %v3206, %v3222
        %v3240 = vcombine.high %v3206, %v3222
        %v3242 = vunpack.c.l.s4 1934713408
        %v3243 = vunpack.c.0.s8 %v3242
        %v3244 = vlaneseq
        %v3245 = vshrl.u32 %v3244, 7
        %v3246 = vsub.s32 %v3243, %v3245
        %v3247 = vrot.slane %v3239, %v3246
        %v3249 = vunpack.c.l.s4 1934713408
        %v3250 = vunpack.c.0.s8 %v3249
        %v3251 = vlaneseq
        %v3252 = vshrl.u32 %v3251, 7
        %v3253 = vsub.s32 %v3250, %v3252
        %v3254 = vrot.slane %v3240, %v3253
        %v3255 = vcombine.high %v3231, 0.0
        %v3256 = vcombine.high %v3238, 0.0
        %v3257 = vcombine.high %v3247, 0.0
        %v3258 = vcombine.high %v3254, 0.0
        %v3259 = vcombine.low %v3163, %v3170
        %v3261 = vunpack.c.l.s4 1983009808
        %v3262 = vunpack.c.0.s8 %v3261
        %v3263 = vlaneseq
        %v3264 = vshrl.u32 %v3263, 7
        %v3265 = vsub.s32 %v3262, %v3264
        %v3266 = vrot.slane %v3259, %v3265
        %v3267 = vcombine.low %v3187, %v3188
        %v3269 = vunpack.c.l.s4 1983009808
        %v3270 = vunpack.c.0.s8 %v3269
        %v3271 = vlaneseq
        %v3272 = vshrl.u32 %v3271, 7
        %v3273 = vsub.s32 %v3270, %v3272
        %v3274 = vrot.slane %v3267, %v3273
        %v3275 = vcombine.low %v3179, %v3186
        %v3277 = vunpack.c.l.s4 1983009808
        %v3278 = vunpack.c.0.s8 %v3277
        %v3279 = vlaneseq
        %v3280 = vshrl.u32 %v3279, 7
        %v3281 = vsub.s32 %v3278, %v3280
        %v3282 = vrot.slane %v3275, %v3281
        %v3283 = vcombine.low %v3189, %v3190
        %v3285 = vunpack.c.l.s4 1983009808
        %v3286 = vunpack.c.0.s8 %v3285
        %v3287 = vlaneseq
        %v3288 = vshrl.u32 %v3287, 7
        %v3289 = vsub.s32 %v3286, %v3288
        %v3290 = vrot.slane %v3283, %v3289
        %v3291 = vcombine.low %v3266, %v3274
        %v3292 = vcombine.high %v3266, %v3274
        %v3294 = vunpack.c.l.s4 1934713408
        %v3295 = vunpack.c.0.s8 %v3294
        %v3296 = vlaneseq
        %v3297 = vshrl.u32 %v3296, 7
        %v3298 = vsub.s32 %v3295, %v3297
        %v3299 = vrot.slane %v3291, %v3298
        %v3301 = vunpack.c.l.s4 1934713408
        %v3302 = vunpack.c.0.s8 %v3301
        %v3303 = vlaneseq
        %v3304 = vshrl.u32 %v3303, 7
        %v3305 = vsub.s32 %v3302, %v3304
        %v3306 = vrot.slane %v3292, %v3305
        %v3307 = vcombine.low %v3282, %v3290
        %v3308 = vcombine.high %v3282, %v3290
        %v3310 = vunpack.c.l.s4 1934713408
        %v3311 = vunpack.c.0.s8 %v3310
        %v3312 = vlaneseq
        %v3313 = vshrl.u32 %v3312, 7
        %v3314 = vsub.s32 %v3311, %v3313
        %v3315 = vrot.slane %v3307, %v3314
        %v3317 = vunpack.c.l.s4 1934713408
        %v3318 = vunpack.c.0.s8 %v3317
        %v3319 = vlaneseq
        %v3320 = vshrl.u32 %v3319, 7
        %v3321 = vsub.s32 %v3318, %v3320
        %v3322 = vrot.slane %v3308, %v3321
        %v3323 = vcombine.low %v3299, %v3315
        %v3324 = vcombine.high %v3299, %v3315
        %v3325 = vcombine.low %v3306, %v3322
        %v3326 = vcombine.high %v3306, %v3322
        %v3327 = vcombine.low %v3231, %v3238
        %v3329 = vunpack.c.l.s4 1983009808
        %v3330 = vunpack.c.0.s8 %v3329
        %v3331 = vlaneseq
        %v3332 = vshrl.u32 %v3331, 7
        %v3333 = vsub.s32 %v3330, %v3332
        %v3334 = vrot.slane %v3327, %v3333
        %v3335 = vcombine.low %v3255, %v3256
        %v3337 = vunpack.c.l.s4 1983009808
        %v3338 = vunpack.c.0.s8 %v3337
        %v3339 = vlaneseq
        %v3340 = vshrl.u32 %v3339, 7
        %v3341 = vsub.s32 %v3338, %v3340
        %v3342 = vrot.slane %v3335, %v3341
        %v3343 = vcombine.low %v3247, %v3254
        %v3345 = vunpack.c.l.s4 1983009808
        %v3346 = vunpack.c.0.s8 %v3345
        %v3347 = vlaneseq
        %v3348 = vshrl.u32 %v3347, 7
        %v3349 = vsub.s32 %v3346, %v3348
        %v3350 = vrot.slane %v3343, %v3349
        %v3351 = vcombine.low %v3257, %v3258
        %v3353 = vunpack.c.l.s4 1983009808
        %v3354 = vunpack.c.0.s8 %v3353
        %v3355 = vlaneseq
        %v3356 = vshrl.u32 %v3355, 7
        %v3357 = vsub.s32 %v3354, %v3356
        %v3358 = vrot.slane %v3351, %v3357
        %v3359 = vcombine.low %v3334, %v3342
        %v3360 = vcombine.high %v3334, %v3342
        %v3362 = vunpack.c.l.s4 1934713408
        %v3363 = vunpack.c.0.s8 %v3362
        %v3364 = vlaneseq
        %v3365 = vshrl.u32 %v3364, 7
        %v3366 = vsub.s32 %v3363, %v3365
        %v3367 = vrot.slane %v3359, %v3366
        %v3369 = vunpack.c.l.s4 1934713408
        %v3370 = vunpack.c.0.s8 %v3369
        %v3371 = vlaneseq
        %v3372 = vshrl.u32 %v3371, 7
        %v3373 = vsub.s32 %v3370, %v3372
        %v3374 = vrot.slane %v3360, %v3373
        %v3375 = vcombine.low %v3350, %v3358
        %v3376 = vcombine.high %v3350, %v3358
        %v3378 = vunpack.c.l.s4 1934713408
        %v3379 = vunpack.c.0.s8 %v3378
        %v3380 = vlaneseq
        %v3381 = vshrl.u32 %v3380, 7
        %v3382 = vsub.s32 %v3379, %v3381
        %v3383 = vrot.slane %v3375, %v3382
        %v3385 = vunpack.c.l.s4 1934713408
        %v3386 = vunpack.c.0.s8 %v3385
        %v3387 = vlaneseq
        %v3388 = vshrl.u32 %v3387, 7
        %v3389 = vsub.s32 %v3386, %v3388
        %v3390 = vrot.slane %v3376, %v3389
        %v3391 = vcombine.low %v3367, %v3383
        %v3392 = vcombine.high %v3367, %v3383
        %v3393 = vcombine.low %v3374, %v3390
        %v3394 = vcombine.high %v3374, %v3390
        %v3395 = vpack.c.bf16 %v2807, %v2739
        %v3396 = vpack.c.bf16 %v2808, %v2740
        %v3397 = vpack.c.bf16 %v2809, %v2741
        %v3398 = vpack.c.bf16 %v2810, %v2742
        %v3399 = vpack.c.bf16 %v3099, %v3031
        %v3400 = vpack.c.bf16 %v3100, %v3032
        %v3401 = vpack.c.bf16 %v3101, %v3033
        %v3402 = vpack.c.bf16 %v3102, %v3034
        %v3404 = vsel %vm1554, %v3395, 0
        %v3407 = vsel %vm1554, %v3399, 0
        %3409 = vmatprep.subr.bf16.mxu0 0
        %3410 = vmatpush1.bf16.xpose.msra.mxu0 %v3407
        %3411 = vmatprep.subr.bf16.mxu0 0
        %3412 = vmatpush1.bf16.xpose.msra.mxu0 0
        %3413 = vmatprep.subr.bf16.mxu0 0
        %3414 = vmatpush1.bf16.xpose.msra.mxu0 0
        %3415 = vmatprep.subr.bf16.mxu0 0
        %3416 = vmatpush1.bf16.xpose.msra.mxu0 0
        %3417 = vmatprep.subr.bf16.mxu0 0
        %3418 = vmatpush1.bf16.xpose.msra.mxu0 0
        %3419 = vmatprep.subr.bf16.mxu0 0
        %3420 = vmatpush1.bf16.xpose.msra.mxu0 0
        %3421 = vmatprep.subr.bf16.mxu0 0
        %3422 = vmatpush1.bf16.xpose.msra.mxu0 0
        %3423 = vmatprep.subr.bf16.mxu0 0
        %3424 = vmatpush1.bf16.xpose.msra.mxu0 0
        %3425 = vmatprep.subr.bf16.mxu0 0
        %3426 = vmatpush1.bf16.xpose.msra.mxu0 0
        %3427 = vmatprep.subr.bf16.mxu0 0
        %3428 = vmatpush1.bf16.xpose.msra.mxu0 0
        %3429 = vmatprep.subr.bf16.mxu0 0
        %3430 = vmatpush1.bf16.xpose.msra.mxu0 0
        %3431 = vmatprep.subr.bf16.mxu0 0
        %3432 = vmatpush1.bf16.xpose.msra.mxu0 0
        %3433 = vmatprep.subr.bf16.mxu0 0
        %3434 = vmatpush1.bf16.xpose.msra.mxu0 0
        %3435 = vmatprep.subr.bf16.mxu0 0
        %3436 = vmatpush1.bf16.xpose.msra.mxu0 0
        %3437 = vmatprep.subr.bf16.mxu0 0
        %3438 = vmatpush1.bf16.xpose.msra.mxu0 0
        %3439 = vmatprep.subr.bf16.mxu0 0
        %3440 = vmatpush1.bf16.xpose.msra.mxu0 0
        %3441 = vmatprep.mubr.bf16.mxu0 0
        %3442 = vmatmul.mubr.bf16.gmra.mrb[0].mxu0 %v3404
        %v3443 = vpop.f32.mrb[0].mxu0
        %v3444 = vadd.f32 0.0, %v3443
        %v3445 = vpop.f32.mrb[0].mxu0
        %v3446 = vpop.f32.mrb[0].mxu0
        %v3447 = vadd.f32 0.0, %v3446
        %v3448 = vpop.f32.mrb[0].mxu0
        %3449 = vdwg.mxu0
        %v3451 = vsel %vm1554, %v3396, 0
        %v3454 = vsel %vm1554, %v3400, 0
        %3456 = vmatprep.subr.bf16.mxu0 0
        %3457 = vmatpush1.bf16.xpose.msra.mxu0 %v3454
        %3458 = vmatprep.subr.bf16.mxu0 0
        %3459 = vmatpush1.bf16.xpose.msra.mxu0 0
        %3460 = vmatprep.subr.bf16.mxu0 0
        %3461 = vmatpush1.bf16.xpose.msra.mxu0 0
        %3462 = vmatprep.subr.bf16.mxu0 0
        %3463 = vmatpush1.bf16.xpose.msra.mxu0 0
        %3464 = vmatprep.subr.bf16.mxu0 0
        %3465 = vmatpush1.bf16.xpose.msra.mxu0 0
        %3466 = vmatprep.subr.bf16.mxu0 0
        %3467 = vmatpush1.bf16.xpose.msra.mxu0 0
        %3468 = vmatprep.subr.bf16.mxu0 0
        %3469 = vmatpush1.bf16.xpose.msra.mxu0 0
        %3470 = vmatprep.subr.bf16.mxu0 0
        %3471 = vmatpush1.bf16.xpose.msra.mxu0 0
        %3472 = vmatprep.subr.bf16.mxu0 0
        %3473 = vmatpush1.bf16.xpose.msra.mxu0 0
        %3474 = vmatprep.subr.bf16.mxu0 0
        %3475 = vmatpush1.bf16.xpose.msra.mxu0 0
        %3476 = vmatprep.subr.bf16.mxu0 0
        %3477 = vmatpush1.bf16.xpose.msra.mxu0 0
        %3478 = vmatprep.subr.bf16.mxu0 0
        %3479 = vmatpush1.bf16.xpose.msra.mxu0 0
        %3480 = vmatprep.subr.bf16.mxu0 0
        %3481 = vmatpush1.bf16.xpose.msra.mxu0 0
        %3482 = vmatprep.subr.bf16.mxu0 0
        %3483 = vmatpush1.bf16.xpose.msra.mxu0 0
        %3484 = vmatprep.subr.bf16.mxu0 0
        %3485 = vmatpush1.bf16.xpose.msra.mxu0 0
        %3486 = vmatprep.subr.bf16.mxu0 0
        %3487 = vmatpush1.bf16.xpose.msra.mxu0 0
        %3488 = vmatprep.mubr.bf16.mxu0 0
        %3489 = vmatmul.mubr.bf16.gmra.mrb[0].mxu0 %v3451
        %v3490 = vpop.f32.mrb[0].mxu0
        %v3491 = vadd.f32 0.0, %v3490
        %v3492 = vpop.f32.mrb[0].mxu0
        %v3493 = vpop.f32.mrb[0].mxu0
        %v3494 = vadd.f32 0.0, %v3493
        %v3495 = vpop.f32.mrb[0].mxu0
        %3496 = vdwg.mxu0
        %v3498 = vsel %vm1554, %v3397, 0
        %v3501 = vsel %vm1554, %v3401, 0
        %3503 = vmatprep.subr.bf16.mxu0 0
        %3504 = vmatpush1.bf16.xpose.msra.mxu0 %v3501
        %3505 = vmatprep.subr.bf16.mxu0 0
        %3506 = vmatpush1.bf16.xpose.msra.mxu0 0
        %3507 = vmatprep.subr.bf16.mxu0 0
        %3508 = vmatpush1.bf16.xpose.msra.mxu0 0
        %3509 = vmatprep.subr.bf16.mxu0 0
        %3510 = vmatpush1.bf16.xpose.msra.mxu0 0
        %3511 = vmatprep.subr.bf16.mxu0 0
        %3512 = vmatpush1.bf16.xpose.msra.mxu0 0
        %3513 = vmatprep.subr.bf16.mxu0 0
        %3514 = vmatpush1.bf16.xpose.msra.mxu0 0
        %3515 = vmatprep.subr.bf16.mxu0 0
        %3516 = vmatpush1.bf16.xpose.msra.mxu0 0
        %3517 = vmatprep.subr.bf16.mxu0 0
        %3518 = vmatpush1.bf16.xpose.msra.mxu0 0
        %3519 = vmatprep.subr.bf16.mxu0 0
        %3520 = vmatpush1.bf16.xpose.msra.mxu0 0
        %3521 = vmatprep.subr.bf16.mxu0 0
        %3522 = vmatpush1.bf16.xpose.msra.mxu0 0
        %3523 = vmatprep.subr.bf16.mxu0 0
        %3524 = vmatpush1.bf16.xpose.msra.mxu0 0
        %3525 = vmatprep.subr.bf16.mxu0 0
        %3526 = vmatpush1.bf16.xpose.msra.mxu0 0
        %3527 = vmatprep.subr.bf16.mxu0 0
        %3528 = vmatpush1.bf16.xpose.msra.mxu0 0
        %3529 = vmatprep.subr.bf16.mxu0 0
        %3530 = vmatpush1.bf16.xpose.msra.mxu0 0
        %3531 = vmatprep.subr.bf16.mxu0 0
        %3532 = vmatpush1.bf16.xpose.msra.mxu0 0
        %3533 = vmatprep.subr.bf16.mxu0 0
        %3534 = vmatpush1.bf16.xpose.msra.mxu0 0
        %3535 = vmatprep.mubr.bf16.mxu0 0
        %3536 = vmatmul.mubr.bf16.gmra.mrb[0].mxu0 %v3498
        %v3537 = vpop.f32.mrb[0].mxu0
        %v3538 = vadd.f32 0.0, %v3537
        %v3539 = vpop.f32.mrb[0].mxu0
        %v3540 = vpop.f32.mrb[0].mxu0
        %v3541 = vadd.f32 0.0, %v3540
        %v3542 = vpop.f32.mrb[0].mxu0
        %3543 = vdwg.mxu0
        %v3545 = vsel %vm1554, %v3398, 0
        %v3548 = vsel %vm1554, %v3402, 0
        %3550 = vmatprep.subr.bf16.mxu0 0
        %3551 = vmatpush1.bf16.xpose.msra.mxu0 %v3548
        %3552 = vmatprep.subr.bf16.mxu0 0
        %3553 = vmatpush1.bf16.xpose.msra.mxu0 0
        %3554 = vmatprep.subr.bf16.mxu0 0
        %3555 = vmatpush1.bf16.xpose.msra.mxu0 0
        %3556 = vmatprep.subr.bf16.mxu0 0
        %3557 = vmatpush1.bf16.xpose.msra.mxu0 0
        %3558 = vmatprep.subr.bf16.mxu0 0
        %3559 = vmatpush1.bf16.xpose.msra.mxu0 0
        %3560 = vmatprep.subr.bf16.mxu0 0
        %3561 = vmatpush1.bf16.xpose.msra.mxu0 0
        %3562 = vmatprep.subr.bf16.mxu0 0
        %3563 = vmatpush1.bf16.xpose.msra.mxu0 0
        %3564 = vmatprep.subr.bf16.mxu0 0
        %3565 = vmatpush1.bf16.xpose.msra.mxu0 0
        %3566 = vmatprep.subr.bf16.mxu0 0
        %3567 = vmatpush1.bf16.xpose.msra.mxu0 0
        %3568 = vmatprep.subr.bf16.mxu0 0
        %3569 = vmatpush1.bf16.xpose.msra.mxu0 0
        %3570 = vmatprep.subr.bf16.mxu0 0
        %3571 = vmatpush1.bf16.xpose.msra.mxu0 0
        %3572 = vmatprep.subr.bf16.mxu0 0
        %3573 = vmatpush1.bf16.xpose.msra.mxu0 0
        %3574 = vmatprep.subr.bf16.mxu0 0
        %3575 = vmatpush1.bf16.xpose.msra.mxu0 0
        %3576 = vmatprep.subr.bf16.mxu0 0
        %3577 = vmatpush1.bf16.xpose.msra.mxu0 0
        %3578 = vmatprep.subr.bf16.mxu0 0
        %3579 = vmatpush1.bf16.xpose.msra.mxu0 0
        %3580 = vmatprep.subr.bf16.mxu0 0
        %3581 = vmatpush1.bf16.xpose.msra.mxu0 0
        %3582 = vmatprep.mubr.bf16.mxu0 0
        %3583 = vmatmul.mubr.bf16.gmra.mrb[0].mxu0 %v3545
        %v3584 = vpop.f32.mrb[0].mxu0
        %v3585 = vadd.f32 0.0, %v3584
        %v3586 = vpop.f32.mrb[0].mxu0
        %v3587 = vpop.f32.mrb[0].mxu0
        %v3588 = vadd.f32 0.0, %v3587
        %v3589 = vpop.f32.mrb[0].mxu0
        %3590 = vdwg.mxu0
        %v3591 = vsel %vm1743, %v3444, -inf
        %3592 = vmax.xlane.f32.xlu0 %v3591
        %v3593 = vpop.xlane.xlu0 %3592
        %v3594 = vsel %vm1743, %v3447, -inf
        %3595 = vmax.xlane.f32.xlu0 %v3594
        %v3596 = vpop.xlane.xlu0 %3595
        %v3597 = vsel %vm1743, %v3491, -inf
        %3598 = vmax.xlane.f32.xlu0 %v3597
        %v3599 = vpop.xlane.xlu0 %3598
        %v3600 = vsel %vm1743, %v3494, -inf
        %3601 = vmax.xlane.f32.xlu0 %v3600
        %v3602 = vpop.xlane.xlu0 %3601
        %v3603 = vsel %vm1743, %v3538, -inf
        %3604 = vmax.xlane.f32.xlu0 %v3603
        %v3605 = vpop.xlane.xlu0 %3604
        %v3606 = vsel %vm1743, %v3541, -inf
        %3607 = vmax.xlane.f32.xlu0 %v3606
        %v3608 = vpop.xlane.xlu0 %3607
        %v3609 = vsel %vm1743, %v3585, -inf
        %3610 = vmax.xlane.f32.xlu0 %v3609
        %v3611 = vpop.xlane.xlu0 %3610
        %v3612 = vsel %vm1743, %v3588, -inf
        %3613 = vmax.xlane.f32.xlu0 %v3612
        %v3614 = vpop.xlane.xlu0 %3613
        %v3615 = vsub.f32 %v3444, %v3593
        %v3616 = vsub.f32 %v3447, %v3596
        %v3617 = vsub.f32 %v3491, %v3599
        %v3618 = vsub.f32 %v3494, %v3602
        %v3619 = vsub.f32 %v3538, %v3605
        %v3620 = vsub.f32 %v3541, %v3608
        %v3621 = vsub.f32 %v3585, %v3611
        %v3622 = vsub.f32 %v3588, %v3614
        %v3623 = vmul.f32 %v3615, 1.442695
        %v3624 = vpow.pop %v3623
        %v3625 = vmul.f32 %v3616, 1.442695
        %v3626 = vpow.pop %v3625
        %v3627 = vmul.f32 %v3617, 1.442695
        %v3628 = vpow.pop %v3627
        %v3629 = vmul.f32 %v3618, 1.442695
        %v3630 = vpow.pop %v3629
        %v3631 = vmul.f32 %v3619, 1.442695
        %v3632 = vpow.pop %v3631
        %v3633 = vmul.f32 %v3620, 1.442695
        %v3634 = vpow.pop %v3633
        %v3635 = vmul.f32 %v3621, 1.442695
        %v3636 = vpow.pop %v3635
        %v3637 = vmul.f32 %v3622, 1.442695
        %v3638 = vpow.pop %v3637
        %v3639 = vsel %vm1743, %v3624, 0.0
        %3640 = vadd.xlane.f32.xlu0 %v3639
        %v3641 = vpop.xlane.xlu0 %3640
        %v3642 = vsel %vm1743, %v3626, 0.0
        %3643 = vadd.xlane.f32.xlu0 %v3642
        %v3644 = vpop.xlane.xlu0 %3643
        %v3645 = vsel %vm1743, %v3628, 0.0
        %3646 = vadd.xlane.f32.xlu0 %v3645
        %v3647 = vpop.xlane.xlu0 %3646
        %v3648 = vsel %vm1743, %v3630, 0.0
        %3649 = vadd.xlane.f32.xlu0 %v3648
        %v3650 = vpop.xlane.xlu0 %3649
        %v3651 = vsel %vm1743, %v3632, 0.0
        %3652 = vadd.xlane.f32.xlu0 %v3651
        %v3653 = vpop.xlane.xlu0 %3652
        %v3654 = vsel %vm1743, %v3634, 0.0
        %3655 = vadd.xlane.f32.xlu0 %v3654
        %v3656 = vpop.xlane.xlu0 %3655
        %v3657 = vsel %vm1743, %v3636, 0.0
        %3658 = vadd.xlane.f32.xlu0 %v3657
        %v3659 = vpop.xlane.xlu0 %3658
        %v3660 = vsel %vm1743, %v3638, 0.0
        %3661 = vadd.xlane.f32.xlu0 %v3660
        %v3662 = vpop.xlane.xlu0 %3661
        %v3663 = vrcp.pop %v3641
        %v3664 = vrcp.pop %v3644
        %v3665 = vrcp.pop %v3647
        %v3666 = vrcp.pop %v3650
        %v3667 = vrcp.pop %v3653
        %v3668 = vrcp.pop %v3656
        %v3669 = vrcp.pop %v3659
        %v3670 = vrcp.pop %v3662
        %v3671 = vmul.f32 %v3624, %v3663
        %v3672 = vmul.f32 %v3626, %v3664
        %v3673 = vmul.f32 %v3628, %v3665
        %v3674 = vmul.f32 %v3630, %v3666
        %v3675 = vmul.f32 %v3632, %v3667
        %v3676 = vmul.f32 %v3634, %v3668
        %v3677 = vmul.f32 %v3636, %v3669
        %v3678 = vmul.f32 %v3638, %v3670
        %v3679 = vpack.c.bf16 %v3672, %v3671
        %v3680 = vpack.c.bf16 %v3674, %v3673
        %v3681 = vpack.c.bf16 %v3676, %v3675
        %v3682 = vpack.c.bf16 %v3678, %v3677
        %v3683 = vpack.c.bf16 %v3391, %v3323
        %v3684 = vpack.c.bf16 %v3392, %v3324
        %v3685 = vpack.c.bf16 %v3393, %v3325
        %v3686 = vpack.c.bf16 %v3394, %v3326
        %3687 = vxpose.xlu0.c.b16.start [1/8] %v3683, 128
        %3688 = vxpose.xlu0.c.b16.cont [2/8] 0, 128
        %3689 = vxpose.xlu0.c.b16.cont [3/8] 0, 128
        %3690 = vxpose.xlu0.c.b16.cont [4/8] 0, 128
        %3691 = vxpose.xlu0.c.b16.cont [5/8] 0, 128
        %3692 = vxpose.xlu0.c.b16.cont [6/8] 0, 128
        %3693 = vxpose.xlu0.c.b16.cont [7/8] 0, 128
        %3694 = vxpose.xlu0.c.b16.end [8/8] 0, 128
        %v3695 = vpop.trf.xlu0
        %v3696 = vpop.trf.xlu0
        %v3697 = vpop.trf.xlu0
        %v3698 = vpop.trf.xlu0
        %v3699 = vpop.trf.xlu0
        %v3700 = vpop.trf.xlu0
        %v3701 = vpop.trf.xlu0
        %v3702 = vpop.trf.xlu0
        %v3704 = vsel %vm1743, %v3695, 0
        %v3707 = vsel %vm1743, %v3679, 0
        %3709 = vmatprep.subr.bf16.mxu0 0
        %3710 = vmatpush1.bf16.xpose.msra.mxu0 %v3707
        %3711 = vmatprep.subr.bf16.mxu0 0
        %3712 = vmatpush1.bf16.xpose.msra.mxu0 0
        %3713 = vmatprep.subr.bf16.mxu0 0
        %3714 = vmatpush1.bf16.xpose.msra.mxu0 0
        %3715 = vmatprep.subr.bf16.mxu0 0
        %3716 = vmatpush1.bf16.xpose.msra.mxu0 0
        %3717 = vmatprep.subr.bf16.mxu0 0
        %3718 = vmatpush1.bf16.xpose.msra.mxu0 0
        %3719 = vmatprep.subr.bf16.mxu0 0
        %3720 = vmatpush1.bf16.xpose.msra.mxu0 0
        %3721 = vmatprep.subr.bf16.mxu0 0
        %3722 = vmatpush1.bf16.xpose.msra.mxu0 0
        %3723 = vmatprep.subr.bf16.mxu0 0
        %3724 = vmatpush1.bf16.xpose.msra.mxu0 0
        %3725 = vmatprep.subr.bf16.mxu0 0
        %3726 = vmatpush1.bf16.xpose.msra.mxu0 0
        %3727 = vmatprep.subr.bf16.mxu0 0
        %3728 = vmatpush1.bf16.xpose.msra.mxu0 0
        %3729 = vmatprep.subr.bf16.mxu0 0
        %3730 = vmatpush1.bf16.xpose.msra.mxu0 0
        %3731 = vmatprep.subr.bf16.mxu0 0
        %3732 = vmatpush1.bf16.xpose.msra.mxu0 0
        %3733 = vmatprep.subr.bf16.mxu0 0
        %3734 = vmatpush1.bf16.xpose.msra.mxu0 0
        %3735 = vmatprep.subr.bf16.mxu0 0
        %3736 = vmatpush1.bf16.xpose.msra.mxu0 0
        %3737 = vmatprep.subr.bf16.mxu0 0
        %3738 = vmatpush1.bf16.xpose.msra.mxu0 0
        %3739 = vmatprep.subr.bf16.mxu0 0
        %3740 = vmatpush1.bf16.xpose.msra.mxu0 0
        %3741 = vmatprep.mubr.bf16.mxu0 0
        %3742 = vmatmul.mubr.bf16.gmra.mrb[0].mxu0 %v3704
        %v3743 = vpop.f32.mrb[0].mxu0
        %v3744 = vadd.f32 0.0, %v3743
        %v3745 = vpop.f32.mrb[0].mxu0
        %v3746 = vpop.f32.mrb[0].mxu0
        %v3747 = vpop.f32.mrb[0].mxu0
        %3748 = vdwg.mxu0
        %3749 = vxpose.xlu0.c.b16.start [1/8] %v3684, 128
        %3750 = vxpose.xlu0.c.b16.cont [2/8] 0, 128
        %3751 = vxpose.xlu0.c.b16.cont [3/8] 0, 128
        %3752 = vxpose.xlu0.c.b16.cont [4/8] 0, 128
        %3753 = vxpose.xlu0.c.b16.cont [5/8] 0, 128
        %3754 = vxpose.xlu0.c.b16.cont [6/8] 0, 128
        %3755 = vxpose.xlu0.c.b16.cont [7/8] 0, 128
        %3756 = vxpose.xlu0.c.b16.end [8/8] 0, 128
        %v3757 = vpop.trf.xlu0
        %v3758 = vpop.trf.xlu0
        %v3759 = vpop.trf.xlu0
        %v3760 = vpop.trf.xlu0
        %v3761 = vpop.trf.xlu0
        %v3762 = vpop.trf.xlu0
        %v3763 = vpop.trf.xlu0
        %v3764 = vpop.trf.xlu0
        %v3766 = vsel %vm1743, %v3757, 0
        %v3769 = vsel %vm1743, %v3680, 0
        %3771 = vmatprep.subr.bf16.mxu0 0
        %3772 = vmatpush1.bf16.xpose.msra.mxu0 %v3769
        %3773 = vmatprep.subr.bf16.mxu0 0
        %3774 = vmatpush1.bf16.xpose.msra.mxu0 0
        %3775 = vmatprep.subr.bf16.mxu0 0
        %3776 = vmatpush1.bf16.xpose.msra.mxu0 0
        %3777 = vmatprep.subr.bf16.mxu0 0
        %3778 = vmatpush1.bf16.xpose.msra.mxu0 0
        %3779 = vmatprep.subr.bf16.mxu0 0
        %3780 = vmatpush1.bf16.xpose.msra.mxu0 0
        %3781 = vmatprep.subr.bf16.mxu0 0
        %3782 = vmatpush1.bf16.xpose.msra.mxu0 0
        %3783 = vmatprep.subr.bf16.mxu0 0
        %3784 = vmatpush1.bf16.xpose.msra.mxu0 0
        %3785 = vmatprep.subr.bf16.mxu0 0
        %3786 = vmatpush1.bf16.xpose.msra.mxu0 0
        %3787 = vmatprep.subr.bf16.mxu0 0
        %3788 = vmatpush1.bf16.xpose.msra.mxu0 0
        %3789 = vmatprep.subr.bf16.mxu0 0
        %3790 = vmatpush1.bf16.xpose.msra.mxu0 0
        %3791 = vmatprep.subr.bf16.mxu0 0
        %3792 = vmatpush1.bf16.xpose.msra.mxu0 0
        %3793 = vmatprep.subr.bf16.mxu0 0
        %3794 = vmatpush1.bf16.xpose.msra.mxu0 0
        %3795 = vmatprep.subr.bf16.mxu0 0
        %3796 = vmatpush1.bf16.xpose.msra.mxu0 0
        %3797 = vmatprep.subr.bf16.mxu0 0
        %3798 = vmatpush1.bf16.xpose.msra.mxu0 0
        %3799 = vmatprep.subr.bf16.mxu0 0
        %3800 = vmatpush1.bf16.xpose.msra.mxu0 0
        %3801 = vmatprep.subr.bf16.mxu0 0
        %3802 = vmatpush1.bf16.xpose.msra.mxu0 0
        %3803 = vmatprep.mubr.bf16.mxu0 0
        %3804 = vmatmul.mubr.bf16.gmra.mrb[0].mxu0 %v3766
        %v3805 = vpop.f32.mrb[0].mxu0
        %v3806 = vadd.f32 0.0, %v3805
        %v3807 = vpop.f32.mrb[0].mxu0
        %v3808 = vpop.f32.mrb[0].mxu0
        %v3809 = vpop.f32.mrb[0].mxu0
        %3810 = vdwg.mxu0
        %3811 = vxpose.xlu0.c.b16.start [1/8] %v3685, 128
        %3812 = vxpose.xlu0.c.b16.cont [2/8] 0, 128
        %3813 = vxpose.xlu0.c.b16.cont [3/8] 0, 128
        %3814 = vxpose.xlu0.c.b16.cont [4/8] 0, 128
        %3815 = vxpose.xlu0.c.b16.cont [5/8] 0, 128
        %3816 = vxpose.xlu0.c.b16.cont [6/8] 0, 128
        %3817 = vxpose.xlu0.c.b16.cont [7/8] 0, 128
        %3818 = vxpose.xlu0.c.b16.end [8/8] 0, 128
        %v3819 = vpop.trf.xlu0
        %v3820 = vpop.trf.xlu0
        %v3821 = vpop.trf.xlu0
        %v3822 = vpop.trf.xlu0
        %v3823 = vpop.trf.xlu0
        %v3824 = vpop.trf.xlu0
        %v3825 = vpop.trf.xlu0
        %v3826 = vpop.trf.xlu0
        %v3828 = vsel %vm1743, %v3819, 0
        %v3831 = vsel %vm1743, %v3681, 0
        %3833 = vmatprep.subr.bf16.mxu0 0
        %3834 = vmatpush1.bf16.xpose.msra.mxu0 %v3831
        %3835 = vmatprep.subr.bf16.mxu0 0
        %3836 = vmatpush1.bf16.xpose.msra.mxu0 0
        %3837 = vmatprep.subr.bf16.mxu0 0
        %3838 = vmatpush1.bf16.xpose.msra.mxu0 0
        %3839 = vmatprep.subr.bf16.mxu0 0
        %3840 = vmatpush1.bf16.xpose.msra.mxu0 0
        %3841 = vmatprep.subr.bf16.mxu0 0
        %3842 = vmatpush1.bf16.xpose.msra.mxu0 0
        %3843 = vmatprep.subr.bf16.mxu0 0
        %3844 = vmatpush1.bf16.xpose.msra.mxu0 0
        %3845 = vmatprep.subr.bf16.mxu0 0
        %3846 = vmatpush1.bf16.xpose.msra.mxu0 0
        %3847 = vmatprep.subr.bf16.mxu0 0
        %3848 = vmatpush1.bf16.xpose.msra.mxu0 0
        %3849 = vmatprep.subr.bf16.mxu0 0
        %3850 = vmatpush1.bf16.xpose.msra.mxu0 0
        %3851 = vmatprep.subr.bf16.mxu0 0
        %3852 = vmatpush1.bf16.xpose.msra.mxu0 0
        %3853 = vmatprep.subr.bf16.mxu0 0
        %3854 = vmatpush1.bf16.xpose.msra.mxu0 0
        %3855 = vmatprep.subr.bf16.mxu0 0
        %3856 = vmatpush1.bf16.xpose.msra.mxu0 0
        %3857 = vmatprep.subr.bf16.mxu0 0
        %3858 = vmatpush1.bf16.xpose.msra.mxu0 0
        %3859 = vmatprep.subr.bf16.mxu0 0
        %3860 = vmatpush1.bf16.xpose.msra.mxu0 0
        %3861 = vmatprep.subr.bf16.mxu0 0
        %3862 = vmatpush1.bf16.xpose.msra.mxu0 0
        %3863 = vmatprep.subr.bf16.mxu0 0
        %3864 = vmatpush1.bf16.xpose.msra.mxu0 0
        %3865 = vmatprep.mubr.bf16.mxu0 0
        %3866 = vmatmul.mubr.bf16.gmra.mrb[0].mxu0 %v3828
        %v3867 = vpop.f32.mrb[0].mxu0
        %v3868 = vadd.f32 0.0, %v3867
        %v3869 = vpop.f32.mrb[0].mxu0
        %v3870 = vpop.f32.mrb[0].mxu0
        %v3871 = vpop.f32.mrb[0].mxu0
        %3872 = vdwg.mxu0
        %3873 = vxpose.xlu0.c.b16.start [1/8] %v3686, 128
        %3874 = vxpose.xlu0.c.b16.cont [2/8] 0, 128
        %3875 = vxpose.xlu0.c.b16.cont [3/8] 0, 128
        %3876 = vxpose.xlu0.c.b16.cont [4/8] 0, 128
        %3877 = vxpose.xlu0.c.b16.cont [5/8] 0, 128
        %3878 = vxpose.xlu0.c.b16.cont [6/8] 0, 128
        %3879 = vxpose.xlu0.c.b16.cont [7/8] 0, 128
        %3880 = vxpose.xlu0.c.b16.end [8/8] 0, 128
        %v3881 = vpop.trf.xlu0
        %v3882 = vpop.trf.xlu0
        %v3883 = vpop.trf.xlu0
        %v3884 = vpop.trf.xlu0
        %v3885 = vpop.trf.xlu0
        %v3886 = vpop.trf.xlu0
        %v3887 = vpop.trf.xlu0
        %v3888 = vpop.trf.xlu0
        %v3890 = vsel %vm1743, %v3881, 0
        %v3893 = vsel %vm1743, %v3682, 0
        %3895 = vmatprep.subr.bf16.mxu0 0
        %3896 = vmatpush1.bf16.xpose.msra.mxu0 %v3893
        %3897 = vmatprep.subr.bf16.mxu0 0
        %3898 = vmatpush1.bf16.xpose.msra.mxu0 0
        %3899 = vmatprep.subr.bf16.mxu0 0
        %3900 = vmatpush1.bf16.xpose.msra.mxu0 0
        %3901 = vmatprep.subr.bf16.mxu0 0
        %3902 = vmatpush1.bf16.xpose.msra.mxu0 0
        %3903 = vmatprep.subr.bf16.mxu0 0
        %3904 = vmatpush1.bf16.xpose.msra.mxu0 0
        %3905 = vmatprep.subr.bf16.mxu0 0
        %3906 = vmatpush1.bf16.xpose.msra.mxu0 0
        %3907 = vmatprep.subr.bf16.mxu0 0
        %3908 = vmatpush1.bf16.xpose.msra.mxu0 0
        %3909 = vmatprep.subr.bf16.mxu0 0
        %3910 = vmatpush1.bf16.xpose.msra.mxu0 0
        %3911 = vmatprep.subr.bf16.mxu0 0
        %3912 = vmatpush1.bf16.xpose.msra.mxu0 0
        %3913 = vmatprep.subr.bf16.mxu0 0
        %3914 = vmatpush1.bf16.xpose.msra.mxu0 0
        %3915 = vmatprep.subr.bf16.mxu0 0
        %3916 = vmatpush1.bf16.xpose.msra.mxu0 0
        %3917 = vmatprep.subr.bf16.mxu0 0
        %3918 = vmatpush1.bf16.xpose.msra.mxu0 0
        %3919 = vmatprep.subr.bf16.mxu0 0
        %3920 = vmatpush1.bf16.xpose.msra.mxu0 0
        %3921 = vmatprep.subr.bf16.mxu0 0
        %3922 = vmatpush1.bf16.xpose.msra.mxu0 0
        %3923 = vmatprep.subr.bf16.mxu0 0
        %3924 = vmatpush1.bf16.xpose.msra.mxu0 0
        %3925 = vmatprep.subr.bf16.mxu0 0
        %3926 = vmatpush1.bf16.xpose.msra.mxu0 0
        %3927 = vmatprep.mubr.bf16.mxu0 0
        %3928 = vmatmul.mubr.bf16.gmra.mrb[0].mxu0 %v3890
        %v3929 = vpop.f32.mrb[0].mxu0
        %v3930 = vadd.f32 0.0, %v3929
        %v3931 = vpop.f32.mrb[0].mxu0
        %v3932 = vpop.f32.mrb[0].mxu0
        %v3933 = vpop.f32.mrb[0].mxu0
        %3934 = vdwg.mxu0
        %3935 = vxpose.xlu0.b32.start [1/16] %v3744, 128
        %3936 = vxpose.xlu0.b32.cont [2/16] 0.0, 128
        %3937 = vxpose.xlu0.b32.cont [3/16] 0.0, 128
        %3938 = vxpose.xlu0.b32.cont [4/16] 0.0, 128
        %3939 = vxpose.xlu0.b32.cont [5/16] 0.0, 128
        %3940 = vxpose.xlu0.b32.cont [6/16] 0.0, 128
        %3941 = vxpose.xlu0.b32.cont [7/16] 0.0, 128
        %3942 = vxpose.xlu0.b32.cont [8/16] 0.0, 128
        %3943 = vxpose.xlu0.b32.cont [9/16] 0.0, 128
        %3944 = vxpose.xlu0.b32.cont [10/16] 0.0, 128
        %3945 = vxpose.xlu0.b32.cont [11/16] 0.0, 128
        %3946 = vxpose.xlu0.b32.cont [12/16] 0.0, 128
        %3947 = vxpose.xlu0.b32.cont [13/16] 0.0, 128
        %3948 = vxpose.xlu0.b32.cont [14/16] 0.0, 128
        %3949 = vxpose.xlu0.b32.cont [15/16] 0.0, 128
        %3950 = vxpose.xlu0.b32.end [16/16] 0.0, 128
        %v3951 = vpop.trf.xlu0
        %v3952 = vpop.trf.xlu0
        %v3953 = vpop.trf.xlu0
        %v3954 = vpop.trf.xlu0
        %v3955 = vpop.trf.xlu0
        %v3956 = vpop.trf.xlu0
        %v3957 = vpop.trf.xlu0
        %v3958 = vpop.trf.xlu0
        %v3959 = vpop.trf.xlu0
        %v3960 = vpop.trf.xlu0
        %v3961 = vpop.trf.xlu0
        %v3962 = vpop.trf.xlu0
        %v3963 = vpop.trf.xlu0
        %v3964 = vpop.trf.xlu0
        %v3965 = vpop.trf.xlu0
        %v3966 = vpop.trf.xlu0
        %3967 = vxpose.xlu0.b32.start [1/16] %v3806, 128
        %3968 = vxpose.xlu0.b32.cont [2/16] 0.0, 128
        %3969 = vxpose.xlu0.b32.cont [3/16] 0.0, 128
        %3970 = vxpose.xlu0.b32.cont [4/16] 0.0, 128
        %3971 = vxpose.xlu0.b32.cont [5/16] 0.0, 128
        %3972 = vxpose.xlu0.b32.cont [6/16] 0.0, 128
        %3973 = vxpose.xlu0.b32.cont [7/16] 0.0, 128
        %3974 = vxpose.xlu0.b32.cont [8/16] 0.0, 128
        %3975 = vxpose.xlu0.b32.cont [9/16] 0.0, 128
        %3976 = vxpose.xlu0.b32.cont [10/16] 0.0, 128
        %3977 = vxpose.xlu0.b32.cont [11/16] 0.0, 128
        %3978 = vxpose.xlu0.b32.cont [12/16] 0.0, 128
        %3979 = vxpose.xlu0.b32.cont [13/16] 0.0, 128
        %3980 = vxpose.xlu0.b32.cont [14/16] 0.0, 128
        %3981 = vxpose.xlu0.b32.cont [15/16] 0.0, 128
        %3982 = vxpose.xlu0.b32.end [16/16] 0.0, 128
        %v3983 = vpop.trf.xlu0
        %v3984 = vpop.trf.xlu0
        %v3985 = vpop.trf.xlu0
        %v3986 = vpop.trf.xlu0
        %v3987 = vpop.trf.xlu0
        %v3988 = vpop.trf.xlu0
        %v3989 = vpop.trf.xlu0
        %v3990 = vpop.trf.xlu0
        %v3991 = vpop.trf.xlu0
        %v3992 = vpop.trf.xlu0
        %v3993 = vpop.trf.xlu0
        %v3994 = vpop.trf.xlu0
        %v3995 = vpop.trf.xlu0
        %v3996 = vpop.trf.xlu0
        %v3997 = vpop.trf.xlu0
        %v3998 = vpop.trf.xlu0
        %3999 = vxpose.xlu0.b32.start [1/16] %v3868, 128
        %4000 = vxpose.xlu0.b32.cont [2/16] 0.0, 128
        %4001 = vxpose.xlu0.b32.cont [3/16] 0.0, 128
        %4002 = vxpose.xlu0.b32.cont [4/16] 0.0, 128
        %4003 = vxpose.xlu0.b32.cont [5/16] 0.0, 128
        %4004 = vxpose.xlu0.b32.cont [6/16] 0.0, 128
        %4005 = vxpose.xlu0.b32.cont [7/16] 0.0, 128
        %4006 = vxpose.xlu0.b32.cont [8/16] 0.0, 128
        %4007 = vxpose.xlu0.b32.cont [9/16] 0.0, 128
        %4008 = vxpose.xlu0.b32.cont [10/16] 0.0, 128
        %4009 = vxpose.xlu0.b32.cont [11/16] 0.0, 128
        %4010 = vxpose.xlu0.b32.cont [12/16] 0.0, 128
        %4011 = vxpose.xlu0.b32.cont [13/16] 0.0, 128
        %4012 = vxpose.xlu0.b32.cont [14/16] 0.0, 128
        %4013 = vxpose.xlu0.b32.cont [15/16] 0.0, 128
        %4014 = vxpose.xlu0.b32.end [16/16] 0.0, 128
        %v4015 = vpop.trf.xlu0
        %v4016 = vpop.trf.xlu0
        %v4017 = vpop.trf.xlu0
        %v4018 = vpop.trf.xlu0
        %v4019 = vpop.trf.xlu0
        %v4020 = vpop.trf.xlu0
        %v4021 = vpop.trf.xlu0
        %v4022 = vpop.trf.xlu0
        %v4023 = vpop.trf.xlu0
        %v4024 = vpop.trf.xlu0
        %v4025 = vpop.trf.xlu0
        %v4026 = vpop.trf.xlu0
        %v4027 = vpop.trf.xlu0
        %v4028 = vpop.trf.xlu0
        %v4029 = vpop.trf.xlu0
        %v4030 = vpop.trf.xlu0
        %4031 = vxpose.xlu0.b32.start [1/16] %v3930, 128
        %4032 = vxpose.xlu0.b32.cont [2/16] 0.0, 128
        %4033 = vxpose.xlu0.b32.cont [3/16] 0.0, 128
        %4034 = vxpose.xlu0.b32.cont [4/16] 0.0, 128
        %4035 = vxpose.xlu0.b32.cont [5/16] 0.0, 128
        %4036 = vxpose.xlu0.b32.cont [6/16] 0.0, 128
        %4037 = vxpose.xlu0.b32.cont [7/16] 0.0, 128
        %4038 = vxpose.xlu0.b32.cont [8/16] 0.0, 128
        %4039 = vxpose.xlu0.b32.cont [9/16] 0.0, 128
        %4040 = vxpose.xlu0.b32.cont [10/16] 0.0, 128
        %4041 = vxpose.xlu0.b32.cont [11/16] 0.0, 128
        %4042 = vxpose.xlu0.b32.cont [12/16] 0.0, 128
        %4043 = vxpose.xlu0.b32.cont [13/16] 0.0, 128
        %4044 = vxpose.xlu0.b32.cont [14/16] 0.0, 128
        %4045 = vxpose.xlu0.b32.cont [15/16] 0.0, 128
        %4046 = vxpose.xlu0.b32.end [16/16] 0.0, 128
        %v4047 = vpop.trf.xlu0
        %v4048 = vpop.trf.xlu0
        %v4049 = vpop.trf.xlu0
        %v4050 = vpop.trf.xlu0
        %v4051 = vpop.trf.xlu0
        %v4052 = vpop.trf.xlu0
        %v4053 = vpop.trf.xlu0
        %v4054 = vpop.trf.xlu0
        %v4055 = vpop.trf.xlu0
        %v4056 = vpop.trf.xlu0
        %v4057 = vpop.trf.xlu0
        %v4058 = vpop.trf.xlu0
        %v4059 = vpop.trf.xlu0
        %v4060 = vpop.trf.xlu0
        %v4061 = vpop.trf.xlu0
        %v4062 = vpop.trf.xlu0
        %v4063 = vcombine.low %v3951, %v4015
        %v4064 = vcombine.high %v3951, %v4015
        %v4066 = vunpack.c.l.s4 1983009808
        %v4067 = vunpack.c.0.s8 %v4066
        %v4068 = vlaneseq
        %v4069 = vshrl.u32 %v4068, 7
        %v4070 = vsub.s32 %v4067, %v4069
        %v4071 = vrot.slane %v4063, %v4070
        %v4073 = vunpack.c.l.s4 1983009808
        %v4074 = vunpack.c.0.s8 %v4073
        %v4075 = vlaneseq
        %v4076 = vshrl.u32 %v4075, 7
        %v4077 = vsub.s32 %v4074, %v4076
        %v4078 = vrot.slane %v4064, %v4077
        %v4079 = vcombine.low %v3983, %v4047
        %v4080 = vcombine.high %v3983, %v4047
        %v4082 = vunpack.c.l.s4 1983009808
        %v4083 = vunpack.c.0.s8 %v4082
        %v4084 = vlaneseq
        %v4085 = vshrl.u32 %v4084, 7
        %v4086 = vsub.s32 %v4083, %v4085
        %v4087 = vrot.slane %v4079, %v4086
        %v4089 = vunpack.c.l.s4 1983009808
        %v4090 = vunpack.c.0.s8 %v4089
        %v4091 = vlaneseq
        %v4092 = vshrl.u32 %v4091, 7
        %v4093 = vsub.s32 %v4090, %v4092
        %v4094 = vrot.slane %v4080, %v4093
        %v4095 = vcombine.low %v4071, %v4087
        %v4096 = vcombine.high %v4071, %v4087
        %v4098 = vunpack.c.l.s4 1934713408
        %v4099 = vunpack.c.0.s8 %v4098
        %v4100 = vlaneseq
        %v4101 = vshrl.u32 %v4100, 7
        %v4102 = vsub.s32 %v4099, %v4101
        %v4103 = vrot.slane %v4095, %v4102
        %v4105 = vunpack.c.l.s4 1934713408
        %v4106 = vunpack.c.0.s8 %v4105
        %v4107 = vlaneseq
        %v4108 = vshrl.u32 %v4107, 7
        %v4109 = vsub.s32 %v4106, %v4108
        %v4110 = vrot.slane %v4096, %v4109
        %v4111 = vcombine.low %v4078, %v4094
        %v4112 = vcombine.high %v4078, %v4094
        %v4114 = vunpack.c.l.s4 1934713408
        %v4115 = vunpack.c.0.s8 %v4114
        %v4116 = vlaneseq
        %v4117 = vshrl.u32 %v4116, 7
        %v4118 = vsub.s32 %v4115, %v4117
        %v4119 = vrot.slane %v4111, %v4118
        %v4121 = vunpack.c.l.s4 1934713408
        %v4122 = vunpack.c.0.s8 %v4121
        %v4123 = vlaneseq
        %v4124 = vshrl.u32 %v4123, 7
        %v4125 = vsub.s32 %v4122, %v4124
        %v4126 = vrot.slane %v4112, %v4125
        %v4127 = vcombine.high %v4103, 0.0
        %v4128 = vcombine.high %v4110, 0.0
        %v4129 = vcombine.high %v4119, 0.0
        %v4130 = vcombine.high %v4126, 0.0
        %v4131 = vcombine.low %v3952, %v4016
        %v4132 = vcombine.high %v3952, %v4016
        %v4134 = vunpack.c.l.s4 1983009808
        %v4135 = vunpack.c.0.s8 %v4134
        %v4136 = vlaneseq
        %v4137 = vshrl.u32 %v4136, 7
        %v4138 = vsub.s32 %v4135, %v4137
        %v4139 = vrot.slane %v4131, %v4138
        %v4141 = vunpack.c.l.s4 1983009808
        %v4142 = vunpack.c.0.s8 %v4141
        %v4143 = vlaneseq
        %v4144 = vshrl.u32 %v4143, 7
        %v4145 = vsub.s32 %v4142, %v4144
        %v4146 = vrot.slane %v4132, %v4145
        %v4147 = vcombine.low %v3984, %v4048
        %v4148 = vcombine.high %v3984, %v4048
        %v4150 = vunpack.c.l.s4 1983009808
        %v4151 = vunpack.c.0.s8 %v4150
        %v4152 = vlaneseq
        %v4153 = vshrl.u32 %v4152, 7
        %v4154 = vsub.s32 %v4151, %v4153
        %v4155 = vrot.slane %v4147, %v4154
        %v4157 = vunpack.c.l.s4 1983009808
        %v4158 = vunpack.c.0.s8 %v4157
        %v4159 = vlaneseq
        %v4160 = vshrl.u32 %v4159, 7
        %v4161 = vsub.s32 %v4158, %v4160
        %v4162 = vrot.slane %v4148, %v4161
        %v4163 = vcombine.low %v4139, %v4155
        %v4164 = vcombine.high %v4139, %v4155
        %v4166 = vunpack.c.l.s4 1934713408
        %v4167 = vunpack.c.0.s8 %v4166
        %v4168 = vlaneseq
        %v4169 = vshrl.u32 %v4168, 7
        %v4170 = vsub.s32 %v4167, %v4169
        %v4171 = vrot.slane %v4163, %v4170
        %v4173 = vunpack.c.l.s4 1934713408
        %v4174 = vunpack.c.0.s8 %v4173
        %v4175 = vlaneseq
        %v4176 = vshrl.u32 %v4175, 7
        %v4177 = vsub.s32 %v4174, %v4176
        %v4178 = vrot.slane %v4164, %v4177
        %v4179 = vcombine.low %v4146, %v4162
        %v4180 = vcombine.high %v4146, %v4162
        %v4182 = vunpack.c.l.s4 1934713408
        %v4183 = vunpack.c.0.s8 %v4182
        %v4184 = vlaneseq
        %v4185 = vshrl.u32 %v4184, 7
        %v4186 = vsub.s32 %v4183, %v4185
        %v4187 = vrot.slane %v4179, %v4186
        %v4189 = vunpack.c.l.s4 1934713408
        %v4190 = vunpack.c.0.s8 %v4189
        %v4191 = vlaneseq
        %v4192 = vshrl.u32 %v4191, 7
        %v4193 = vsub.s32 %v4190, %v4192
        %v4194 = vrot.slane %v4180, %v4193
        %v4195 = vcombine.high %v4171, 0.0
        %v4196 = vcombine.high %v4178, 0.0
        %v4197 = vcombine.high %v4187, 0.0
        %v4198 = vcombine.high %v4194, 0.0
        %v4199 = vcombine.low %v4103, %v4110
        %v4201 = vunpack.c.l.s4 1983009808
        %v4202 = vunpack.c.0.s8 %v4201
        %v4203 = vlaneseq
        %v4204 = vshrl.u32 %v4203, 7
        %v4205 = vsub.s32 %v4202, %v4204
        %v4206 = vrot.slane %v4199, %v4205
        %v4207 = vcombine.low %v4127, %v4128
        %v4209 = vunpack.c.l.s4 1983009808
        %v4210 = vunpack.c.0.s8 %v4209
        %v4211 = vlaneseq
        %v4212 = vshrl.u32 %v4211, 7
        %v4213 = vsub.s32 %v4210, %v4212
        %v4214 = vrot.slane %v4207, %v4213
        %v4215 = vcombine.low %v4119, %v4126
        %v4217 = vunpack.c.l.s4 1983009808
        %v4218 = vunpack.c.0.s8 %v4217
        %v4219 = vlaneseq
        %v4220 = vshrl.u32 %v4219, 7
        %v4221 = vsub.s32 %v4218, %v4220
        %v4222 = vrot.slane %v4215, %v4221
        %v4223 = vcombine.low %v4129, %v4130
        %v4225 = vunpack.c.l.s4 1983009808
        %v4226 = vunpack.c.0.s8 %v4225
        %v4227 = vlaneseq
        %v4228 = vshrl.u32 %v4227, 7
        %v4229 = vsub.s32 %v4226, %v4228
        %v4230 = vrot.slane %v4223, %v4229
        %v4231 = vcombine.low %v4206, %v4214
        %v4232 = vcombine.high %v4206, %v4214
        %v4234 = vunpack.c.l.s4 1934713408
        %v4235 = vunpack.c.0.s8 %v4234
        %v4236 = vlaneseq
        %v4237 = vshrl.u32 %v4236, 7
        %v4238 = vsub.s32 %v4235, %v4237
        %v4239 = vrot.slane %v4231, %v4238
        %v4241 = vunpack.c.l.s4 1934713408
        %v4242 = vunpack.c.0.s8 %v4241
        %v4243 = vlaneseq
        %v4244 = vshrl.u32 %v4243, 7
        %v4245 = vsub.s32 %v4242, %v4244
        %v4246 = vrot.slane %v4232, %v4245
        %v4247 = vcombine.low %v4222, %v4230
        %v4248 = vcombine.high %v4222, %v4230
        %v4250 = vunpack.c.l.s4 1934713408
        %v4251 = vunpack.c.0.s8 %v4250
        %v4252 = vlaneseq
        %v4253 = vshrl.u32 %v4252, 7
        %v4254 = vsub.s32 %v4251, %v4253
        %v4255 = vrot.slane %v4247, %v4254
        %v4257 = vunpack.c.l.s4 1934713408
        %v4258 = vunpack.c.0.s8 %v4257
        %v4259 = vlaneseq
        %v4260 = vshrl.u32 %v4259, 7
        %v4261 = vsub.s32 %v4258, %v4260
        %v4262 = vrot.slane %v4248, %v4261
        %v4263 = vcombine.low %v4239, %v4255
        %v4264 = vcombine.high %v4239, %v4255
        %v4265 = vcombine.low %v4246, %v4262
        %v4266 = vcombine.high %v4246, %v4262
        %v4267 = vcombine.low %v4171, %v4178
        %v4269 = vunpack.c.l.s4 1983009808
        %v4270 = vunpack.c.0.s8 %v4269
        %v4271 = vlaneseq
        %v4272 = vshrl.u32 %v4271, 7
        %v4273 = vsub.s32 %v4270, %v4272
        %v4274 = vrot.slane %v4267, %v4273
        %v4275 = vcombine.low %v4195, %v4196
        %v4277 = vunpack.c.l.s4 1983009808
        %v4278 = vunpack.c.0.s8 %v4277
        %v4279 = vlaneseq
        %v4280 = vshrl.u32 %v4279, 7
        %v4281 = vsub.s32 %v4278, %v4280
        %v4282 = vrot.slane %v4275, %v4281
        %v4283 = vcombine.low %v4187, %v4194
        %v4285 = vunpack.c.l.s4 1983009808
        %v4286 = vunpack.c.0.s8 %v4285
        %v4287 = vlaneseq
        %v4288 = vshrl.u32 %v4287, 7
        %v4289 = vsub.s32 %v4286, %v4288
        %v4290 = vrot.slane %v4283, %v4289
        %v4291 = vcombine.low %v4197, %v4198
        %v4293 = vunpack.c.l.s4 1983009808
        %v4294 = vunpack.c.0.s8 %v4293
        %v4295 = vlaneseq
        %v4296 = vshrl.u32 %v4295, 7
        %v4297 = vsub.s32 %v4294, %v4296
        %v4298 = vrot.slane %v4291, %v4297
        %v4299 = vcombine.low %v4274, %v4282
        %v4300 = vcombine.high %v4274, %v4282
        %v4302 = vunpack.c.l.s4 1934713408
        %v4303 = vunpack.c.0.s8 %v4302
        %v4304 = vlaneseq
        %v4305 = vshrl.u32 %v4304, 7
        %v4306 = vsub.s32 %v4303, %v4305
        %v4307 = vrot.slane %v4299, %v4306
        %v4309 = vunpack.c.l.s4 1934713408
        %v4310 = vunpack.c.0.s8 %v4309
        %v4311 = vlaneseq
        %v4312 = vshrl.u32 %v4311, 7
        %v4313 = vsub.s32 %v4310, %v4312
        %v4314 = vrot.slane %v4300, %v4313
        %v4315 = vcombine.low %v4290, %v4298
        %v4316 = vcombine.high %v4290, %v4298
        %v4318 = vunpack.c.l.s4 1934713408
        %v4319 = vunpack.c.0.s8 %v4318
        %v4320 = vlaneseq
        %v4321 = vshrl.u32 %v4320, 7
        %v4322 = vsub.s32 %v4319, %v4321
        %v4323 = vrot.slane %v4315, %v4322
        %v4325 = vunpack.c.l.s4 1934713408
        %v4326 = vunpack.c.0.s8 %v4325
        %v4327 = vlaneseq
        %v4328 = vshrl.u32 %v4327, 7
        %v4329 = vsub.s32 %v4326, %v4328
        %v4330 = vrot.slane %v4316, %v4329
        %v4331 = vcombine.low %v4307, %v4323
        %v4332 = vcombine.high %v4307, %v4323
        %v4333 = vcombine.low %v4314, %v4330
        %v4334 = vcombine.high %v4314, %v4330
        %4337 = vrot.lane.b32.xlu0 %v4264, 8
        %v4338 = vpop.permute.xlu0 %4337
        %4339 = vrot.lane.b32.xlu0 %v4332, 8
        %v4340 = vpop.permute.xlu0 %4339
        %4345 = vrot.lane.b32.xlu0 %v4265, 16
        %v4346 = vpop.permute.xlu0 %4345
        %4347 = vrot.lane.b32.xlu0 %v4333, 16
        %v4348 = vpop.permute.xlu0 %4347
        %4353 = vrot.lane.b32.xlu0 %v4266, 24
        %v4354 = vpop.permute.xlu0 %4353
        %4355 = vrot.lane.b32.xlu0 %v4334, 24
        %v4356 = vpop.permute.xlu0 %4355
        %v4359 = vsel %vm1554, %v4263, %v4338
        %v4360 = vsel %vm1554, %v4331, %v4340
        %v4361 = vsel %vm1743, %v4359, %v4346
        %v4362 = vsel %vm1743, %v4360, %v4348
        %v4363 = vsel %vm2516, %v4361, %v4354
        %v4364 = vsel %vm2516, %v4362, %v4356
        %v4365 = vpack.c.bf16 %v2518, %v2517
        %v4366 = vpack.c.bf16 %v4364, %v4363
        %v4367 = vld [vmem:[%s352] sm:$0xf]
        %v4368 = vld [vmem:[%s352 + $0x4] sm:$0xf]
        %v4369 = vld [vmem:[%s352 + $0x8] sm:$0xf]
        %v4370 = vld [vmem:[%s352 + $0xc] sm:$0xf]
        %v4371 = vlaneseq
        %v4372 = vshrl.u32 %v4371, 7
        %v4373 = vsub.s32 0, %v4372
        %v4374 = vrot.slane %v447, %v4373
        %v4379 = vunpack.c.l.b16 %v4367
        %v4380 = vunpack.c.l.b16 %v4368
        %v4381 = vunpack.c.l.b16 %v4369
        %v4382 = vunpack.c.l.b16 %v4370
        %v4383 = vpack.c.b16 %v4380, %v4379
        %v4384 = vpack.c.b16 %v4382, %v4381
        %v4388 = vsel %vm474, %v4365, 0
        %v4391 = vsel %vm474, %v4366, 0
        %4393 = vmatprep.subr.bf16.mxu0 0
        %4394 = vmatpush1.bf16.msra.mxu0 %v4383
        %4395 = vmatprep.subr.bf16.mxu0 0
        %4396 = vmatpush1.bf16.msra.mxu0 %v4384
        %4397 = vmatprep.subr.bf16.mxu0 0
        %4398 = vmatpush1.bf16.msra.mxu0 0
        %4399 = vmatprep.subr.bf16.mxu0 0
        %4400 = vmatpush1.bf16.msra.mxu0 0
        %4401 = vmatprep.subr.bf16.mxu0 0
        %4402 = vmatpush1.bf16.msra.mxu0 0
        %4403 = vmatprep.subr.bf16.mxu0 0
        %4404 = vmatpush1.bf16.msra.mxu0 0
        %4405 = vmatprep.subr.bf16.mxu0 0
        %4406 = vmatpush1.bf16.msra.mxu0 0
        %4407 = vmatprep.subr.bf16.mxu0 0
        %4408 = vmatpush1.bf16.msra.mxu0 0
        %4409 = vmatprep.subr.bf16.mxu0 0
        %4410 = vmatpush1.bf16.msra.mxu0 0
        %4411 = vmatprep.subr.bf16.mxu0 0
        %4412 = vmatpush1.bf16.msra.mxu0 0
        %4413 = vmatprep.subr.bf16.mxu0 0
        %4414 = vmatpush1.bf16.msra.mxu0 0
        %4415 = vmatprep.subr.bf16.mxu0 0
        %4416 = vmatpush1.bf16.msra.mxu0 0
        %4417 = vmatprep.subr.bf16.mxu0 0
        %4418 = vmatpush1.bf16.msra.mxu0 0
        %4419 = vmatprep.subr.bf16.mxu0 0
        %4420 = vmatpush1.bf16.msra.mxu0 0
        %4421 = vmatprep.subr.bf16.mxu0 0
        %4422 = vmatpush1.bf16.msra.mxu0 0
        %4423 = vmatprep.subr.bf16.mxu0 0
        %4424 = vmatpush1.bf16.msra.mxu0 0
        %4425 = vmatprep.mubr.bf16.mxu0 0
        %4426 = vmatmul.mubr.bf16.gmra.mrb[0].mxu0 %v4388
        %v4427 = vpop.f32.mrb[0].mxu0
        %v4428 = vadd.f32 %v4374, %v4427
        %v4429 = vpop.f32.mrb[0].mxu0
        %v4430 = vpop.f32.mrb[0].mxu0
        %v4431 = vadd.f32 %v4374, %v4430
        %v4432 = vpop.f32.mrb[0].mxu0
        %4433 = vmatprep.mubr.bf16.mxu0 0
        %4434 = vmatmul.mubr.bf16.gmra.mrb[0].mxu0 %v4391
        %v4435 = vpop.f32.mrb[0].mxu0
        %v4436 = vadd.f32 %v4374, %v4435
        %v4437 = vpop.f32.mrb[0].mxu0
        %v4438 = vpop.f32.mrb[0].mxu0
        %v4439 = vadd.f32 %v4374, %v4438
        %v4440 = vpop.f32.mrb[0].mxu0
        %4441 = vdwg.mxu0
        %v4442 = vadd.f32 %v438, %v4428
        %v4443 = vadd.f32 %v439, %v4431
        %v4444 = vadd.f32 %v440, %v4436
        %v4445 = vadd.f32 %v441, %v4439
        %v4446 = vsel %vm474, %v4442, 0.0
        %4447 = vadd.xlane.f32.xlu0 %v4446
        %v4448 = vpop.xlane.xlu0 %4447
        %v4449 = vsel %vm474, %v4443, 0.0
        %4450 = vadd.xlane.f32.xlu0 %v4449
        %v4451 = vpop.xlane.xlu0 %4450
        %v4452 = vsel %vm474, %v4444, 0.0
        %4453 = vadd.xlane.f32.xlu0 %v4452
        %v4454 = vpop.xlane.xlu0 %4453
        %v4455 = vsel %vm474, %v4445, 0.0
        %4456 = vadd.xlane.f32.xlu0 %v4455
        %v4457 = vpop.xlane.xlu0 %4456
        %v4458 = vrcp.pop 32.0
        %v4459 = vmul.f32 %v4448, %v4458
        %v4460 = vmul.f32 %v4451, %v4458
        %v4461 = vmul.f32 %v4454, %v4458
        %v4462 = vmul.f32 %v4457, %v4458
        %v4463 = vsub.f32 %v4442, %v4459
        %v4464 = vsub.f32 %v4443, %v4460
        %v4465 = vsub.f32 %v4444, %v4461
        %v4466 = vsub.f32 %v4445, %v4462
        %v4467 = vmul.f32 %v4463, %v4463
        %v4468 = vmul.f32 %v4464, %v4464
        %v4469 = vmul.f32 %v4465, %v4465
        %v4470 = vmul.f32 %v4466, %v4466
        %v4471 = vsel %vm474, %v4467, 0.0
        %4472 = vadd.xlane.f32.xlu0 %v4471
        %v4473 = vpop.xlane.xlu0 %4472
        %v4474 = vsel %vm474, %v4468, 0.0
        %4475 = vadd.xlane.f32.xlu0 %v4474
        %v4476 = vpop.xlane.xlu0 %4475
        %v4477 = vsel %vm474, %v4469, 0.0
        %4478 = vadd.xlane.f32.xlu0 %v4477
        %v4479 = vpop.xlane.xlu0 %4478
        %v4480 = vsel %vm474, %v4470, 0.0
        %4481 = vadd.xlane.f32.xlu0 %v4480
        %v4482 = vpop.xlane.xlu0 %4481
        %v4483 = vmul.f32 %v4473, %v4458
        %v4484 = vmul.f32 %v4476, %v4458
        %v4485 = vmul.f32 %v4479, %v4458
        %v4486 = vmul.f32 %v4482, %v4458
        %v4487 = vadd.f32 %v4483, 1e-05
        %v4488 = vadd.f32 %v4484, 1e-05
        %v4489 = vadd.f32 %v4485, 1e-05
        %v4490 = vadd.f32 %v4486, 1e-05
        %v4491 = vrsqrt.pop %v4487
        %v4492 = vrsqrt.pop %v4488
        %v4493 = vrsqrt.pop %v4489
        %v4494 = vrsqrt.pop %v4490
        %v4495 = vmul.f32 %v4463, %v4491
        %v4496 = vmul.f32 %v4464, %v4492
        %v4497 = vmul.f32 %v4465, %v4493
        %v4498 = vmul.f32 %v4466, %v4494
        %v4499 = vlaneseq
        %v4500 = vshrl.u32 %v4499, 7
        %v4501 = vsub.s32 0, %v4500
        %v4502 = vrot.slane %v450, %v4501
        %v4503 = vmul.f32 %v4495, %v4502
        %v4504 = vmul.f32 %v4496, %v4502
        %v4505 = vmul.f32 %v4497, %v4502
        %v4506 = vmul.f32 %v4498, %v4502
        %v4507 = vlaneseq
        %v4508 = vshrl.u32 %v4507, 7
        %v4509 = vsub.s32 0, %v4508
        %v4510 = vrot.slane %v451, %v4509
        %v4511 = vadd.f32 %v4503, %v4510
        %v4512 = vadd.f32 %v4504, %v4510
        %v4513 = vadd.f32 %v4505, %v4510
        %v4514 = vadd.f32 %v4506, %v4510
        %v4515 = vpack.c.bf16 %v4512, %v4511
        %v4516 = vpack.c.bf16 %v4514, %v4513
        %v4517 = vld [vmem:[%s361] sm:$0xf]
        %v4518 = vld [vmem:[%s361 + $0x4] sm:$0xf]
        %v4519 = vld [vmem:[%s361 + $0x8] sm:$0xf]
        %v4520 = vld [vmem:[%s361 + $0xc] sm:$0xf]
        %v4521 = vlaneseq
        %v4522 = vshrl.u32 %v4521, 7
        %v4523 = vsub.s32 0, %v4522
        %v4524 = vrot.slane %v448, %v4523
        %v4529 = vunpack.c.l.b16 %v4517
        %v4530 = vunpack.c.l.b16 %v4518
        %v4531 = vunpack.c.l.b16 %v4519
        %v4532 = vunpack.c.l.b16 %v4520
        %v4533 = vpack.c.b16 %v4530, %v4529
        %v4534 = vpack.c.b16 %v4532, %v4531
        %v4538 = vsel %vm474, %v4515, 0
        %v4541 = vsel %vm474, %v4516, 0
        %4543 = vmatprep.subr.bf16.mxu0 0
        %4544 = vmatpush1.bf16.msra.mxu0 %v4533
        %4545 = vmatprep.subr.bf16.mxu0 0
        %4546 = vmatpush1.bf16.msra.mxu0 %v4534
        %4547 = vmatprep.subr.bf16.mxu0 0
        %4548 = vmatpush1.bf16.msra.mxu0 0
        %4549 = vmatprep.subr.bf16.mxu0 0
        %4550 = vmatpush1.bf16.msra.mxu0 0
        %4551 = vmatprep.subr.bf16.mxu0 0
        %4552 = vmatpush1.bf16.msra.mxu0 0
        %4553 = vmatprep.subr.bf16.mxu0 0
        %4554 = vmatpush1.bf16.msra.mxu0 0
        %4555 = vmatprep.subr.bf16.mxu0 0
        %4556 = vmatpush1.bf16.msra.mxu0 0
        %4557 = vmatprep.subr.bf16.mxu0 0
        %4558 = vmatpush1.bf16.msra.mxu0 0
        %4559 = vmatprep.subr.bf16.mxu0 0
        %4560 = vmatpush1.bf16.msra.mxu0 0
        %4561 = vmatprep.subr.bf16.mxu0 0
        %4562 = vmatpush1.bf16.msra.mxu0 0
        %4563 = vmatprep.subr.bf16.mxu0 0
        %4564 = vmatpush1.bf16.msra.mxu0 0
        %4565 = vmatprep.subr.bf16.mxu0 0
        %4566 = vmatpush1.bf16.msra.mxu0 0
        %4567 = vmatprep.subr.bf16.mxu0 0
        %4568 = vmatpush1.bf16.msra.mxu0 0
        %4569 = vmatprep.subr.bf16.mxu0 0
        %4570 = vmatpush1.bf16.msra.mxu0 0
        %4571 = vmatprep.subr.bf16.mxu0 0
        %4572 = vmatpush1.bf16.msra.mxu0 0
        %4573 = vmatprep.subr.bf16.mxu0 0
        %4574 = vmatpush1.bf16.msra.mxu0 0
        %4575 = vmatprep.mubr.bf16.mxu0 0
        %4576 = vmatmul.mubr.bf16.gmra.mrb[0].mxu0 %v4538
        %v4577 = vpop.f32.mrb[0].mxu0
        %v4578 = vadd.f32 %v4524, %v4577
        %v4579 = vpop.f32.mrb[0].mxu0
        %v4580 = vpop.f32.mrb[0].mxu0
        %v4581 = vadd.f32 %v4524, %v4580
        %v4582 = vpop.f32.mrb[0].mxu0
        %4583 = vmatprep.mubr.bf16.mxu0 0
        %4584 = vmatmul.mubr.bf16.gmra.mrb[0].mxu0 %v4541
        %v4585 = vpop.f32.mrb[0].mxu0
        %v4586 = vadd.f32 %v4524, %v4585
        %v4587 = vpop.f32.mrb[0].mxu0
        %v4588 = vpop.f32.mrb[0].mxu0
        %v4589 = vadd.f32 %v4524, %v4588
        %v4590 = vpop.f32.mrb[0].mxu0
        %4591 = vdwg.mxu0
        %v4592 = vmax.f32 %v4578, 0.0
        %v4593 = vmax.f32 %v4581, 0.0
        %v4594 = vmax.f32 %v4586, 0.0
        %v4595 = vmax.f32 %v4589, 0.0
        %v4596 = vpack.c.bf16 %v4593, %v4592
        %v4597 = vpack.c.bf16 %v4595, %v4594
        %v4598 = vld [vmem:[%s417] sm:$0xf]
        %v4599 = vld [vmem:[%s417 + $0x4] sm:$0xf]
        %v4600 = vld [vmem:[%s417 + $0x8] sm:$0xf]
        %v4601 = vld [vmem:[%s417 + $0xc] sm:$0xf]
        %v4602 = vld [vmem:[%s417 + $0x10] sm:$0xf]
        %v4603 = vld [vmem:[%s417 + $0x14] sm:$0xf]
        %v4604 = vld [vmem:[%s417 + $0x18] sm:$0xf]
        %v4605 = vld [vmem:[%s417 + $0x1c] sm:$0xf]
        %v4606 = vlaneseq
        %v4607 = vshrl.u32 %v4606, 7
        %v4608 = vsub.s32 0, %v4607
        %v4609 = vrot.slane %v449, %v4608
        %v4618 = vunpack.c.l.b16 %v4598
        %v4619 = vunpack.c.l.b16 %v4599
        %v4620 = vunpack.c.l.b16 %v4600
        %v4621 = vunpack.c.l.b16 %v4601
        %v4622 = vunpack.c.l.b16 %v4602
        %v4623 = vunpack.c.l.b16 %v4603
        %v4624 = vunpack.c.l.b16 %v4604
        %v4625 = vunpack.c.l.b16 %v4605
        %v4626 = vpack.c.b16 %v4619, %v4618
        %v4627 = vpack.c.b16 %v4621, %v4620
        %v4628 = vpack.c.b16 %v4623, %v4622
        %v4629 = vpack.c.b16 %v4625, %v4624
        %vm4634 = vcmask 523264
        %v4636 = vsel %vm4634, %v4596, 0
        %v4639 = vsel %vm4634, %v4597, 0
        %4641 = vmatprep.subr.bf16.mxu0 0
        %4642 = vmatpush1.bf16.msra.mxu0 %v4626
        %4643 = vmatprep.subr.bf16.mxu0 0
        %4644 = vmatpush1.bf16.msra.mxu0 %v4627
        %4645 = vmatprep.subr.bf16.mxu0 0
        %4646 = vmatpush1.bf16.msra.mxu0 %v4628
        %4647 = vmatprep.subr.bf16.mxu0 0
        %4648 = vmatpush1.bf16.msra.mxu0 %v4629
        %4649 = vmatprep.subr.bf16.mxu0 0
        %4650 = vmatpush1.bf16.msra.mxu0 0
        %4651 = vmatprep.subr.bf16.mxu0 0
        %4652 = vmatpush1.bf16.msra.mxu0 0
        %4653 = vmatprep.subr.bf16.mxu0 0
        %4654 = vmatpush1.bf16.msra.mxu0 0
        %4655 = vmatprep.subr.bf16.mxu0 0
        %4656 = vmatpush1.bf16.msra.mxu0 0
        %4657 = vmatprep.subr.bf16.mxu0 0
        %4658 = vmatpush1.bf16.msra.mxu0 0
        %4659 = vmatprep.subr.bf16.mxu0 0
        %4660 = vmatpush1.bf16.msra.mxu0 0
        %4661 = vmatprep.subr.bf16.mxu0 0
        %4662 = vmatpush1.bf16.msra.mxu0 0
        %4663 = vmatprep.subr.bf16.mxu0 0
        %4664 = vmatpush1.bf16.msra.mxu0 0
        %4665 = vmatprep.subr.bf16.mxu0 0
        %4666 = vmatpush1.bf16.msra.mxu0 0
        %4667 = vmatprep.subr.bf16.mxu0 0
        %4668 = vmatpush1.bf16.msra.mxu0 0
        %4669 = vmatprep.subr.bf16.mxu0 0
        %4670 = vmatpush1.bf16.msra.mxu0 0
        %4671 = vmatprep.subr.bf16.mxu0 0
        %4672 = vmatpush1.bf16.msra.mxu0 0
        %4673 = vmatprep.mubr.bf16.mxu0 0
        %4674 = vmatmul.mubr.bf16.gmra.mrb[0].mxu0 %v4636
        %v4675 = vpop.f32.mrb[0].mxu0
        %v4676 = vadd.f32 %v4609, %v4675
        %v4677 = vpop.f32.mrb[0].mxu0
        %v4678 = vpop.f32.mrb[0].mxu0
        %v4679 = vadd.f32 %v4609, %v4678
        %v4680 = vpop.f32.mrb[0].mxu0
        %4681 = vmatprep.mubr.bf16.mxu0 0
        %4682 = vmatmul.mubr.bf16.gmra.mrb[0].mxu0 %v4639
        %v4683 = vpop.f32.mrb[0].mxu0
        %v4684 = vadd.f32 %v4609, %v4683
        %v4685 = vpop.f32.mrb[0].mxu0
        %v4686 = vpop.f32.mrb[0].mxu0
        %v4687 = vadd.f32 %v4609, %v4686
        %v4688 = vpop.f32.mrb[0].mxu0
        %4689 = vdwg.mxu0
        %v4690 = vadd.f32 %v4511, %v4676
        %v4691 = vadd.f32 %v4512, %v4679
        %v4692 = vadd.f32 %v4513, %v4684
        %v4693 = vadd.f32 %v4514, %v4687
        %v4694 = vsel %vm474, %v4690, 0.0
        %4695 = vadd.xlane.f32.xlu0 %v4694
        %v4696 = vpop.xlane.xlu0 %4695
        %v4697 = vsel %vm474, %v4691, 0.0
        %4698 = vadd.xlane.f32.xlu0 %v4697
        %v4699 = vpop.xlane.xlu0 %4698
        %v4700 = vsel %vm474, %v4692, 0.0
        %4701 = vadd.xlane.f32.xlu0 %v4700
        %v4702 = vpop.xlane.xlu0 %4701
        %v4703 = vsel %vm474, %v4693, 0.0
        %4704 = vadd.xlane.f32.xlu0 %v4703
        %v4705 = vpop.xlane.xlu0 %4704
        %v4706 = vmul.f32 %v4696, %v4458
        %v4707 = vmul.f32 %v4699, %v4458
        %v4708 = vmul.f32 %v4702, %v4458
        %v4709 = vmul.f32 %v4705, %v4458
        %v4710 = vsub.f32 %v4690, %v4706
        %v4711 = vsub.f32 %v4691, %v4707
        %v4712 = vsub.f32 %v4692, %v4708
        %v4713 = vsub.f32 %v4693, %v4709
        %v4714 = vmul.f32 %v4710, %v4710
        %v4715 = vmul.f32 %v4711, %v4711
        %v4716 = vmul.f32 %v4712, %v4712
        %v4717 = vmul.f32 %v4713, %v4713
        %v4718 = vsel %vm474, %v4714, 0.0
        %4719 = vadd.xlane.f32.xlu0 %v4718
        %v4720 = vpop.xlane.xlu0 %4719
        %v4721 = vsel %vm474, %v4715, 0.0
        %4722 = vadd.xlane.f32.xlu0 %v4721
        %v4723 = vpop.xlane.xlu0 %4722
        %v4724 = vsel %vm474, %v4716, 0.0
        %4725 = vadd.xlane.f32.xlu0 %v4724
        %v4726 = vpop.xlane.xlu0 %4725
        %v4727 = vsel %vm474, %v4717, 0.0
        %4728 = vadd.xlane.f32.xlu0 %v4727
        %v4729 = vpop.xlane.xlu0 %4728
        %v4730 = vmul.f32 %v4720, %v4458
        %v4731 = vmul.f32 %v4723, %v4458
        %v4732 = vmul.f32 %v4726, %v4458
        %v4733 = vmul.f32 %v4729, %v4458
        %v4734 = vadd.f32 %v4730, 1e-05
        %v4735 = vadd.f32 %v4731, 1e-05
        %v4736 = vadd.f32 %v4732, 1e-05
        %v4737 = vadd.f32 %v4733, 1e-05
        %v4738 = vrsqrt.pop %v4734
        %v4739 = vrsqrt.pop %v4735
        %v4740 = vrsqrt.pop %v4736
        %v4741 = vrsqrt.pop %v4737
        %v4742 = vmul.f32 %v4710, %v4738
        %v4743 = vmul.f32 %v4711, %v4739
        %v4744 = vmul.f32 %v4712, %v4740
        %v4745 = vmul.f32 %v4713, %v4741
        %v4746 = vlaneseq
        %v4747 = vshrl.u32 %v4746, 7
        %v4748 = vsub.s32 0, %v4747
        %v4749 = vrot.slane %v452, %v4748
        %v4750 = vmul.f32 %v4742, %v4749
        %v4751 = vmul.f32 %v4743, %v4749
        %v4752 = vmul.f32 %v4744, %v4749
        %v4753 = vmul.f32 %v4745, %v4749
        %v4754 = vlaneseq
        %v4755 = vshrl.u32 %v4754, 7
        %v4756 = vsub.s32 0, %v4755
        %v4757 = vrot.slane %v453, %v4756
        %v4758 = vadd.f32 %v4750, %v4757
        %v4759 = vadd.f32 %v4751, %v4757
        %v4760 = vadd.f32 %v4752, %v4757
        %v4761 = vadd.f32 %v4753, %v4757
        %4762 = vst.msk [vmem:[#allocation2] sm:$0xff] %vm474, %v4758
        %4763 = vst.msk [vmem:[#allocation2 + $0x8] sm:$0xff] %vm474, %v4759
        %4764 = vst.msk [vmem:[#allocation2 + $0x10] sm:$0xff] %vm474, %v4760
        %4765 = vst.msk [vmem:[#allocation2 + $0x18] sm:$0xff] %vm474, %v4761
        %p4766 = scmp.eq.s32.totalorder %s28, 1
        // Predicated region
        $region65: #{tpu_custom_call.1} parent=47 // pred_check
          %p4767 = pneg %p4766
        $region66: #{tpu_custom_call.1} parent=47 // pred_check_branch
          %4769 = sbr.rel (%p4767) target = $region68
        $region67: #{tpu_custom_call.1} parent=47 // pred_region
          %v4770 = vld [vmem:[%s6] sm:$0x1]
          %v4771 = vld [vmem:[%s6 + $0x1] sm:$0x1]
          %v4772 = vsel %vm474, %v4758, 0.0
          %4773 = vadd.xlane.f32.xlu0 %v4772
          %v4774 = vpop.xlane.xlu0 %4773
          %v4775 = vsel %vm474, %v4759, 0.0
          %4776 = vadd.xlane.f32.xlu0 %v4775
          %v4777 = vpop.xlane.xlu0 %4776
          %v4778 = vsel %vm474, %v4760, 0.0
          %4779 = vadd.xlane.f32.xlu0 %v4778
          %v4780 = vpop.xlane.xlu0 %4779
          %v4781 = vsel %vm474, %v4761, 0.0
          %4782 = vadd.xlane.f32.xlu0 %v4781
          %v4783 = vpop.xlane.xlu0 %4782
          %v4784 = vmul.f32 %v4774, %v4458
          %v4785 = vmul.f32 %v4777, %v4458
          %v4786 = vmul.f32 %v4780, %v4458
          %v4787 = vmul.f32 %v4783, %v4458
          %v4788 = vsub.f32 %v4758, %v4784
          %v4789 = vsub.f32 %v4759, %v4785
          %v4790 = vsub.f32 %v4760, %v4786
          %v4791 = vsub.f32 %v4761, %v4787
          %v4792 = vmul.f32 %v4788, %v4788
          %v4793 = vmul.f32 %v4789, %v4789
          %v4794 = vmul.f32 %v4790, %v4790
          %v4795 = vmul.f32 %v4791, %v4791
          %v4796 = vsel %vm474, %v4792, 0.0
          %4797 = vadd.xlane.f32.xlu0 %v4796
          %v4798 = vpop.xlane.xlu0 %4797
          %v4799 = vsel %vm474, %v4793, 0.0
          %4800 = vadd.xlane.f32.xlu0 %v4799
          %v4801 = vpop.xlane.xlu0 %4800
          %v4802 = vsel %vm474, %v4794, 0.0
          %4803 = vadd.xlane.f32.xlu0 %v4802
          %v4804 = vpop.xlane.xlu0 %4803
          %v4805 = vsel %vm474, %v4795, 0.0
          %4806 = vadd.xlane.f32.xlu0 %v4805
          %v4807 = vpop.xlane.xlu0 %4806
          %v4808 = vmul.f32 %v4798, %v4458
          %v4809 = vmul.f32 %v4801, %v4458
          %v4810 = vmul.f32 %v4804, %v4458
          %v4811 = vmul.f32 %v4807, %v4458
          %v4812 = vadd.f32 %v4808, 1e-05
          %v4813 = vadd.f32 %v4809, 1e-05
          %v4814 = vadd.f32 %v4810, 1e-05
          %v4815 = vadd.f32 %v4811, 1e-05
          %v4816 = vrsqrt.pop %v4812
          %v4817 = vrsqrt.pop %v4813
          %v4818 = vrsqrt.pop %v4814
          %v4819 = vrsqrt.pop %v4815
          %v4820 = vmul.f32 %v4788, %v4816
          %v4821 = vmul.f32 %v4789, %v4817
          %v4822 = vmul.f32 %v4790, %v4818
          %v4823 = vmul.f32 %v4791, %v4819
          %v4824 = vlaneseq
          %v4825 = vshrl.u32 %v4824, 7
          %v4826 = vsub.s32 0, %v4825
          %v4827 = vrot.slane %v4770, %v4826
          %v4828 = vmul.f32 %v4820, %v4827
          %v4829 = vmul.f32 %v4821, %v4827
          %v4830 = vmul.f32 %v4822, %v4827
          %v4831 = vmul.f32 %v4823, %v4827
          %v4832 = vlaneseq
          %v4833 = vshrl.u32 %v4832, 7
          %v4834 = vsub.s32 0, %v4833
          %v4835 = vrot.slane %v4771, %v4834
          %v4836 = vadd.f32 %v4828, %v4835
          %v4837 = vadd.f32 %v4829, %v4835
          %v4838 = vadd.f32 %v4830, %v4835
          %v4839 = vadd.f32 %v4831, %v4835
          %4840 = vst.msk [vmem:[#allocation9] sm:$0xff] %vm474, %v4836
          %4841 = vst.msk [vmem:[#allocation9 + $0x8] sm:$0xff] %vm474, %v4837
          %4842 = vst.msk [vmem:[#allocation9 + $0x10] sm:$0xff] %vm474, %v4838
          %4843 = vst.msk [vmem:[#allocation9 + $0x18] sm:$0xff] %vm474, %v4839
        $region68: #{tpu_custom_call.1} parent=47 // pred_fallthru
          _
        // Predicated region
        $region69: #{tpu_custom_call.1} parent=47 // pred_check
          %p4844 = pneg %p230
        $region70: #{tpu_custom_call.1} parent=47 // pred_check_branch
          %4846 = sbr.rel (%p4844) target = $region72
        $region71: #{tpu_custom_call.1} parent=47 // pred_region
          %s4847 = smul.u32 4, %s27
          %s4849 = ssub.s32 512, 512
          %4850 = vsyncadd [#allocation5], %s4849
          %s4851 = smul.addr %s4847, 128
          %s4852 = scalar_lea.hbm %s7, %s4851
          %s4853 = sshll.u32 [#allocation9], 4
          %s4854 = int_to_ptr.vmem [resolvable:$true] %s4853
          %4859 = dma.vmem_to_hbm [thread:$0]  %s4854, 512, %s4852, [#allocation5], 128, 128, 8
        $region72: #{tpu_custom_call.1} parent=47 // pred_fallthru
          _
        // Predicated region
        $region73: #{tpu_custom_call.1} parent=47 // pred_check
          %p4860 = pneg %p230
        $region74: #{tpu_custom_call.1} parent=47 // pred_check_branch
          %4862 = sbr.rel (%p4860) target = $region76
        $region75: #{tpu_custom_call.1} parent=47 // pred_region
          %4863 = dma.done [#allocation5], 512
        $region76: #{tpu_custom_call.1} parent=47 // pred_fallthru
          _
      $region48: #{tpu_custom_call.1} parent=5 // pred_fallthru
        _
      %p4864 = scmp.le.s32.totalorder 2, %s18
      // Predicated region
      $region77: #{tpu_custom_call.1} parent=5 // pred_check
        %p4865 = pneg %p4864
      $region78: #{tpu_custom_call.1} parent=5 // pred_check_branch
        %4867 = sbr.rel (%p4865) target = $region80
      $region79: #{tpu_custom_call.1} parent=5 // pred_region
        %s4868 = ssub.s32 %s18, 2
      $region80: #{tpu_custom_call.1} parent=5 // pred_fallthru
        _
    $region6: #{tpu_custom_call.1} parent=1 // loop_footer
      %s22 = sadd.s32 1, %s18
    $region7: #{tpu_custom_call.1} parent=1 // loop_footer_branch
      %17 = sbr.rel target = $region3
    $region8: #{tpu_custom_call.1} parent=1 // loop_exit
      _
    %4869 = vsyncpa [#allocation4], 1
    %s4870 = scalar_lea.sflag [#allocation4], 1
    %4871 = vsyncpa %s4870, 1
    %4872 = vsyncpa [#allocation7], 1
    %s4873 = scalar_lea.sflag [#allocation7], 1
    %4874 = vsyncpa %s4873, 1
    %4875 = vsyncpa [#allocation5], 1
    %s4876 = scalar_lea.sflag [#allocation5], 1
    %4877 = vsyncpa %s4876, 1

</llo_original>
